<compile_context>
chip_gen: v5e
topology: v5e:2x2
jax: 0.10.0
libtpu: 0.0.40
codegen_flags: <defaults>
</compile_context>

<pallas_src>
import functools

import jax
import jax.numpy as jnp
import numpy as np
from jax.experimental import pallas as pl
from jax.experimental.pallas import tpu as pltpu


def _round_up(x, m):
    return ((x + m - 1) // m) * m


def _pick_hw_tile(hw):
    # Prefer ~128-row HW tiles: keeps the feature-map block small in VMEM and
    # exercises the accumulator pipeline across grid steps.
    for t in (128, 256, 64, 32, 16, 8, 4, 2, 1):
        if hw % t == 0:
            return t
    return hw


# ---------------------------------------------------------------------------
# Kernel 1: fused 3x3 conv (synthetic backbone stem), one image per grid step.
#   - taps are sliced from the halo-padded VMEM block (no HBM im2col)
#   - bf16 operands, f32 MXU accumulation directly into the output block
#   - Cout padded to a multiple of 128 lanes, Cin padded to a multiple of 8
# ---------------------------------------------------------------------------
def _conv3x3_kernel(H, W, cin_p, cout_p, xp_ref, w_ref, b_ref, o_ref):
    # xp_ref: (H+2, W+2, cin_p) bf16   w_ref: (9*cin_p, cout_p) bf16
    # b_ref : (1, cout_p)      f32     o_ref: (H*W, cout_p)     f32
    o_ref[...] = jnp.broadcast_to(b_ref[...], (H * W, cout_p))
    tap = 0
    for dh in range(3):
        for dw in range(3):
            patch = xp_ref[dh:dh + H, dw:dw + W, :].reshape(H * W, cin_p)
            w_tap = w_ref[tap * cin_p:(tap + 1) * cin_p, :]
            o_ref[...] += jnp.dot(patch, w_tap,
                                  preferred_element_type=jnp.float32)
            tap += 1


def conv3x3_forward(x_nhwc, w, b):
    N, H, W, Cin = x_nhwc.shape
    Cout = w.shape[-1]
    cin_p = _round_up(Cin, 8)
    cout_p = _round_up(Cout, 128)

    # Halo pad + channel pad once; cast to bf16 for the native MXU path.
    # TODO(synk): fold the pad (and the wrapper NCHW->NHWC transpose) into the
    # kernel DMA index maps once the real torchvision backbone replaces this stem.
    xp = jnp.pad(x_nhwc, ((0, 0), (1, 1), (1, 1), (0, cin_p - Cin)))
    xp = xp.astype(jnp.bfloat16)
    wp = jnp.pad(w, ((0, 0), (0, 0), (0, cin_p - Cin), (0, cout_p - Cout)))
    wp = wp.reshape(9 * cin_p, cout_p).astype(jnp.bfloat16)
    bp = jnp.pad(b, ((0, cout_p - Cout),)).reshape(1, cout_p).astype(jnp.float32)

    kernel = functools.partial(_conv3x3_kernel, H, W, cin_p, cout_p)
    out = pl.pallas_call(
        kernel,
        out_shape=jax.ShapeDtypeStruct((N, H * W, cout_p), jnp.float32),
        grid=(N,),
        in_specs=[
            pl.BlockSpec((pl.Squeezed(), H + 2, W + 2, cin_p),
                         lambda n: (n, 0, 0, 0)),
            pl.BlockSpec((9 * cin_p, cout_p), lambda n: (0, 0)),
            pl.BlockSpec((1, cout_p), lambda n: (0, 0)),
        ],
        out_specs=pl.BlockSpec((pl.Squeezed(), H * W, cout_p),
                               lambda n: (n, 0, 0)),
        compiler_params=pltpu.CompilerParams(
            dimension_semantics=("parallel",),          # shards across v7x's 2 TCs
            vmem_limit_bytes=32 * 1024 * 1024,
        ),
    )(xp, wp, bp)
    return out  # (N, H*W, cout_p) f32


# ---------------------------------------------------------------------------
# Kernel 2: classifier head, HW-tiled accumulator.
#   relu -> adaptive_avg_pool2d((1,1)) -> flatten -> F.normalize(dim=1)
#   -> fused [ce_classifier | normal_classifier] GEMM (lane-dense, padded to 128)
# ---------------------------------------------------------------------------
def _head_kernel(inv_hw, ncp, f_ref, wcat_ref, bce_ref, bn_ref,
                 nfea_ref, nout_ref, ceout_ref, sum_sc):
    k = pl.program_id(0)

    @pl.when(k == 0)
    def _():
        sum_sc[...] = jnp.zeros_like(sum_sc)

    f = jnp.maximum(f_ref[...].astype(jnp.float32), 0.0)      # F.relu
    sum_sc[...] += jnp.sum(f, axis=1)                          # running pool sum

    @pl.when(k == pl.num_programs(0) - 1)
    def _():
        pooled = sum_sc[...] * inv_hw                          # avg pool + flatten
        sq = jnp.sum(pooled * pooled, axis=1, keepdims=True)
        inv = jax.lax.rsqrt(jnp.maximum(sq, 1e-24))            # 1/max(||x||, 1e-12)
        nfea_ref[...] = pooled * inv                           # F.normalize(dim=1)
        # Fused classifier GEMM: normalize is a per-row scale, so it commutes.
        p = jnp.dot(pooled, wcat_ref[...], preferred_element_type=jnp.float32)
        ceout_ref[...] = p[:, :ncp] + bce_ref[...]             # ce_classifier(fea)
        nout_ref[...] = inv * p[:, ncp:] + bn_ref[...]         # normal_classifier(normal_fea)


def head_forward(features_nlc, w_ce, b_ce, w_n, b_n):
    N, HW, C = features_nlc.shape
    c_feat, n_classes = w_ce.shape
    ncp = _round_up(n_classes, 128)                            # lane-dense outputs

    def pad_w(w):
        return jnp.pad(w, ((0, C - c_feat), (0, ncp - n_classes))).astype(jnp.float32)

    wcat = jnp.concatenate([pad_w(w_ce), pad_w(w_n)], axis=1)  # (C, 2*ncp)
    bce = jnp.pad(b_ce, ((0, ncp - n_classes),)).reshape(1, ncp).astype(jnp.float32)
    bn = jnp.pad(b_n, ((0, ncp - n_classes),)).reshape(1, ncp).astype(jnp.float32)

    t_hw = _pick_hw_tile(HW)
    kernel = functools.partial(_head_kernel, 1.0 / HW, ncp)
    nfea, nout, ceout = pl.pallas_call(
        kernel,
        out_shape=(
            jax.ShapeDtypeStruct((N, C), jnp.float32),         # normal_fea (padded C)
            jax.ShapeDtypeStruct((N, ncp), jnp.float32),       # normal_output (padded)
            jax.ShapeDtypeStruct((N, ncp), jnp.float32),       # ce_output (padded)
        ),
        grid=(HW // t_hw,),
        in_specs=[
            pl.BlockSpec((N, t_hw, C), lambda k: (0, k, 0)),
            pl.BlockSpec((C, 2 * ncp), lambda k: (0, 0)),
            pl.BlockSpec((1, ncp), lambda k: (0, 0)),
            pl.BlockSpec((1, ncp), lambda k: (0, 0)),
        ],
        out_specs=(
            pl.BlockSpec((N, C), lambda k: (0, 0)),
            pl.BlockSpec((N, ncp), lambda k: (0, 0)),
            pl.BlockSpec((N, ncp), lambda k: (0, 0)),
        ),
        scratch_shapes=[pltpu.VMEM((N, C), jnp.float32)],
        compiler_params=pltpu.CompilerParams(
            dimension_semantics=("arbitrary",),                # HW reduction axis
            vmem_limit_bytes=32 * 1024 * 1024,
        ),
    )(features_nlc, wcat, bce, bn)
    return nfea, nout, ceout


# ---------------------------------------------------------------------------
# Full Model.forward equivalent.
# TODO(synk): the torchvision backbone (resnet18/50/densenet121) is not
# replicated; a deterministic fused 3x3 conv stem stands in for self.features.
# ---------------------------------------------------------------------------
def model_forward(x_nchw, params, ce_sampling="pair", ccl_sampling="pair",
                  cal_center=False):
    c_feat, n_classes = params["w_ce"].shape
    x = jnp.transpose(x_nchw, (0, 2, 3, 1))                    # NCHW -> NHWC

    feats = conv3x3_forward(x, params["conv_w"], params["conv_b"])
    nfea_p, nout_p, ceout_p = head_forward(
        feats, params["w_ce"], params["b_ce"], params["w_n"], params["b_n"])

    # Slice off lane padding (padded channels / classes are exact zeros).
    normal_fea = nfea_p[:, :c_feat]
    normal_output = nout_p[:, :n_classes]
    ce_output = ceout_p[:, :n_classes]

    if cal_center:
        return normal_fea, normal_output, ce_output

    bsz = x_nchw.shape[0] // 2
    f1, f2 = normal_fea[:bsz], normal_fea[bsz:]
    nor_out1, _nor_out2 = normal_output[:bsz], normal_output[bsz:]
    ce_out1, ce_out2 = ce_output[:bsz], ce_output[bsz:]

    features = jnp.concatenate([f1[:, None, :], f2[:, None, :]], axis=1)
    normal_out = (nor_out1 + nor_out1) / 2.0                   # matches original code exactly
    if ce_sampling == "single":
        ce_out = ce_out1
    else:
        ce_out = jnp.concatenate([ce_out1[:, None, :], ce_out2[:, None, :]], axis=1)
    if ccl_sampling == "single":
        fea_pair_output = f1
    else:
        fea_pair_output = jnp.concatenate([f1[:, None, :], f2[:, None, :]], axis=1)
    return features, normal_out, ce_out, fea_pair_output


# ---------------------------------------------------------------------------
# Pure-JAX f32 reference for correctness checking.
# ---------------------------------------------------------------------------
def _reference_forward(x_nchw, params):
    xh = jnp.transpose(x_nchw, (0, 2, 3, 1))
    N, H, W, Cin = xh.shape
    xp = jnp.pad(xh, ((0, 0), (1, 1), (1, 1), (0, 0)))
    pats = [xp[:, dh:dh + H, dw:dw + W, :] for dh in range(3) for dw in range(3)]
    pat = jnp.concatenate(pats, axis=-1).reshape(N, H * W, 9 * Cin)
    wmat = params["conv_w"].reshape(9 * Cin, -1)
    feat = pat @ wmat + params["conv_b"]
    f = jnp.maximum(feat, 0.0)
    pooled = f.mean(axis=1)
    nfea = pooled / jnp.maximum(
        jnp.sqrt(jnp.sum(pooled * pooled, axis=1, keepdims=True)), 1e-12)
    ce = pooled @ params["w_ce"] + params["b_ce"]
    no = nfea @ params["w_n"] + params["b_n"]
    bsz = N // 2
    f1, f2 = nfea[:bsz], nfea[bsz:]
    features = jnp.concatenate([f1[:, None, :], f2[:, None, :]], axis=1)
    normal_out = (no[:bsz] + no[:bsz]) / 2.0
    ce_out = jnp.concatenate([ce[:bsz, None, :], ce[bsz:, None, :]], axis=1)
    return features, normal_out, ce_out, features


if __name__ == "__main__":
    key = jax.random.PRNGKey(0)
    k_x, k_cw, k_wce, k_wn = jax.random.split(key, 4)

    N, Cin, H, W = 4, 4, 16, 16     # batch must be even (pair split)
    C_feat = 128                    # lane-dense n_inputs of the synthetic stem
    n_classes = 10

    x = jax.random.normal(k_x, (N, Cin, H, W), dtype=jnp.float32)
    params = {
        "conv_w": 0.1 * jax.random.normal(k_cw, (3, 3, Cin, C_feat), jnp.float32),
        "conv_b": jnp.zeros((C_feat,), jnp.float32),
        # Linear weights stored already transposed: (in_features, n_classes)
        "w_ce": 0.05 * jax.random.normal(k_wce, (C_feat, n_classes), jnp.float32),
        "b_ce": jnp.zeros((n_classes,), jnp.float32),
        "w_n": 0.05 * jax.random.normal(k_wn, (C_feat, n_classes), jnp.float32),
        "b_n": jnp.zeros((n_classes,), jnp.float32),
    }

    features, normal_output, ce_output, fea_pair_output = model_forward(
        x, params, ce_sampling="pair", ccl_sampling="pair", cal_center=False)
    jax.block_until_ready((features, normal_output, ce_output, fea_pair_output))

    assert features.shape == (N // 2, 2, C_feat)
    assert normal_output.shape == (N // 2, n_classes)
    assert ce_output.shape == (N // 2, 2, n_classes)
    assert fea_pair_output.shape == (N // 2, 2, C_feat)

    # cal_center=True path (shape check only).
    nf, no_, ce_ = model_forward(x, params, cal_center=True)
    jax.block_until_ready((nf, no_, ce_))
    assert nf.shape == (N, C_feat) and no_.shape == (N, n_classes) and ce_.shape == (N, n_classes)

    # Numerical check vs pure-JAX f32 reference (conv GEMM runs bf16 on the MXU).
    rf, rn, rc, rp = _reference_forward(x, params)
    np.testing.assert_allclose(np.asarray(features), np.asarray(rf), rtol=2e-2, atol=2e-2)
    np.testing.assert_allclose(np.asarray(normal_output), np.asarray(rn), rtol=2e-2, atol=2e-2)
    np.testing.assert_allclose(np.asarray(ce_output), np.asarray(rc), rtol=2e-2, atol=2e-2)
    np.testing.assert_allclose(np.asarray(fea_pair_output), np.asarray(rp), rtol=2e-2, atol=2e-2)

    print("KERNEL_OK")
</pallas_src>

<mosaic_0001>
module attributes {stable_mosaic.version = 11 : i64} {
  func.func @_conv3x3_kernel(%arg0: i32, %arg1: memref<1x18x18x8xbf16, #tpu.memory_space<vmem>>, %arg2: memref<72x128xbf16, #tpu.memory_space<vmem>>, %arg3: memref<1x128xf32, #tpu.memory_space<vmem>>, %arg4: memref<1x256x128xf32, #tpu.memory_space<vmem>>) attributes {dimension_semantics = [#tpu.dimension_semantics<parallel>], iteration_bounds = array<i64: 4>, scalar_prefetch = 0 : i64, scratch_operands = 0 : i64, tpu.core_type = #tpu.core_type<tc>, window_params = [{transform_indices = @transform_0, window_bounds = array<i64: 1, 18, 18, 8>}, {pipeline_mode = #tpu.pipeline_mode<synchronous>, transform_indices = @transform_1, window_bounds = array<i64: 72, 128>}, {pipeline_mode = #tpu.pipeline_mode<synchronous>, transform_indices = @transform_2, window_bounds = array<i64: 1, 128>}, {transform_indices = @transform_3, window_bounds = array<i64: 1, 256, 128>}]} {
    %c0 = arith.constant 0 : index
    %c0_0 = arith.constant 0 : index
    %0 = vector.load %arg3[%c0, %c0_0] : memref<1x128xf32, #tpu.memory_space<vmem>>, vector<1x128xf32>
    %1 = vector.shape_cast %0 : vector<1x128xf32> to vector<1x128xf32>
    %2 = vector.broadcast %1 : vector<1x128xf32> to vector<256x128xf32>
    %c0_1 = arith.constant 0 : index
    %c0_2 = arith.constant 0 : index
    %c0_3 = arith.constant 0 : index
    %3 = vector.load %arg4[%c0_1, %c0_2, %c0_3] : memref<1x256x128xf32, #tpu.memory_space<vmem>>, vector<1x256x128xf32>
    %4 = vector.shape_cast %3 : vector<1x256x128xf32> to vector<256x128xf32>
    %5 = vector.shape_cast %2 : vector<256x128xf32> to vector<1x256x128xf32>
    tpu.vector_store %arg4[%c0_1, %c0_2, %c0_3], %5 {strides = array<i32>} : memref<1x256x128xf32, #tpu.memory_space<vmem>>, vector<1x256x128xf32>,
    %c0_4 = arith.constant 0 : index
    %c0_5 = arith.constant 0 : index
    %c0_6 = arith.constant 0 : index
    %c0_7 = arith.constant 0 : index
    %6 = vector.load %arg1[%c0_4, %c0_5, %c0_6, %c0_7] : memref<1x18x18x8xbf16, #tpu.memory_space<vmem>>, vector<1x16x16x8xbf16>
    %7 = vector.shape_cast %6 : vector<1x16x16x8xbf16> to vector<16x16x8xbf16>
    %8 = vector.shape_cast %7 : vector<16x16x8xbf16> to vector<256x8xbf16>
    %c0_8 = arith.constant 0 : index
    %c0_9 = arith.constant 0 : index
    %9 = vector.load %arg2[%c0_8, %c0_9] : memref<72x128xbf16, #tpu.memory_space<vmem>>, vector<8x128xbf16>
    %c0_10 = arith.constant 0 : index
    %c0_11 = arith.constant 0 : index
    %c0_12 = arith.constant 0 : index
    %10 = vector.load %arg4[%c0_10, %c0_11, %c0_12] : memref<1x256x128xf32, #tpu.memory_space<vmem>>, vector<1x256x128xf32>
    %11 = vector.shape_cast %10 : vector<1x256x128xf32> to vector<256x128xf32>
    %cst = arith.constant dense<0.000000e+00> : vector<256x128xf32>
    %12 = tpu.matmul %8, %9, %cst {dimension_numbers = #tpu.dot_dimension_numbers<[1], [0], [0], [1], [0, 0, 1, 1], [], []>} : vector<256x8xbf16>, vector<8x128xbf16>, vector<256x128xf32> -> vector<256x128xf32>
    %13 = arith.addf %11, %12 : vector<256x128xf32>
    %c0_13 = arith.constant 0 : index
    %c0_14 = arith.constant 0 : index
    %c0_15 = arith.constant 0 : index
    %14 = vector.load %arg4[%c0_13, %c0_14, %c0_15] : memref<1x256x128xf32, #tpu.memory_space<vmem>>, vector<1x256x128xf32>
    %15 = vector.shape_cast %14 : vector<1x256x128xf32> to vector<256x128xf32>
    %16 = vector.shape_cast %13 : vector<256x128xf32> to vector<1x256x128xf32>
    tpu.vector_store %arg4[%c0_13, %c0_14, %c0_15], %16 {strides = array<i32>} : memref<1x256x128xf32, #tpu.memory_space<vmem>>, vector<1x256x128xf32>,
    %c0_16 = arith.constant 0 : index
    %c0_17 = arith.constant 0 : index
    %c1 = arith.constant 1 : index
    %c0_18 = arith.constant 0 : index
    %17 = vector.load %arg1[%c0_16, %c0_17, %c1, %c0_18] : memref<1x18x18x8xbf16, #tpu.memory_space<vmem>>, vector<1x16x16x8xbf16>
    %18 = vector.shape_cast %17 : vector<1x16x16x8xbf16> to vector<16x16x8xbf16>
    %19 = vector.shape_cast %18 : vector<16x16x8xbf16> to vector<256x8xbf16>
    %c8 = arith.constant 8 : index
    %c0_19 = arith.constant 0 : index
    %20 = vector.load %arg2[%c8, %c0_19] : memref<72x128xbf16, #tpu.memory_space<vmem>>, vector<8x128xbf16>
    %c0_20 = arith.constant 0 : index
    %c0_21 = arith.constant 0 : index
    %c0_22 = arith.constant 0 : index
    %21 = vector.load %arg4[%c0_20, %c0_21, %c0_22] : memref<1x256x128xf32, #tpu.memory_space<vmem>>, vector<1x256x128xf32>
    %22 = vector.shape_cast %21 : vector<1x256x128xf32> to vector<256x128xf32>
    %cst_23 = arith.constant dense<0.000000e+00> : vector<256x128xf32>
    %23 = tpu.matmul %19, %20, %cst_23 {dimension_numbers = #tpu.dot_dimension_numbers<[1], [0], [0], [1], [0, 0, 1, 1], [], []>} : vector<256x8xbf16>, vector<8x128xbf16>, vector<256x128xf32> -> vector<256x128xf32>
    %24 = arith.addf %22, %23 : vector<256x128xf32>
    %c0_24 = arith.constant 0 : index
    %c0_25 = arith.constant 0 : index
    %c0_26 = arith.constant 0 : index
    %25 = vector.load %arg4[%c0_24, %c0_25, %c0_26] : memref<1x256x128xf32, #tpu.memory_space<vmem>>, vector<1x256x128xf32>
    %26 = vector.shape_cast %25 : vector<1x256x128xf32> to vector<256x128xf32>
    %27 = vector.shape_cast %24 : vector<256x128xf32> to vector<1x256x128xf32>
    tpu.vector_store %arg4[%c0_24, %c0_25, %c0_26], %27 {strides = array<i32>} : memref<1x256x128xf32, #tpu.memory_space<vmem>>, vector<1x256x128xf32>,
    %c0_27 = arith.constant 0 : index
    %c0_28 = arith.constant 0 : index
    %c2 = arith.constant 2 : index
    %c0_29 = arith.constant 0 : index
    %28 = vector.load %arg1[%c0_27, %c0_28, %c2, %c0_29] : memref<1x18x18x8xbf16, #tpu.memory_space<vmem>>, vector<1x16x16x8xbf16>
    %29 = vector.shape_cast %28 : vector<1x16x16x8xbf16> to vector<16x16x8xbf16>
    %30 = vector.shape_cast %29 : vector<16x16x8xbf16> to vector<256x8xbf16>
    %c16 = arith.constant 16 : index
    %c0_30 = arith.constant 0 : index
    %31 = vector.load %arg2[%c16, %c0_30] : memref<72x128xbf16, #tpu.memory_space<vmem>>, vector<8x128xbf16>
    %c0_31 = arith.constant 0 : index
    %c0_32 = arith.constant 0 : index
    %c0_33 = arith.constant 0 : index
    %32 = vector.load %arg4[%c0_31, %c0_32, %c0_33] : memref<1x256x128xf32, #tpu.memory_space<vmem>>, vector<1x256x128xf32>
    %33 = vector.shape_cast %32 : vector<1x256x128xf32> to vector<256x128xf32>
    %cst_34 = arith.constant dense<0.000000e+00> : vector<256x128xf32>
    %34 = tpu.matmul %30, %31, %cst_34 {dimension_numbers = #tpu.dot_dimension_numbers<[1], [0], [0], [1], [0, 0, 1, 1], [], []>} : vector<256x8xbf16>, vector<8x128xbf16>, vector<256x128xf32> -> vector<256x128xf32>
    %35 = arith.addf %33, %34 : vector<256x128xf32>
    %c0_35 = arith.constant 0 : index
    %c0_36 = arith.constant 0 : index
    %c0_37 = arith.constant 0 : index
    %36 = vector.load %arg4[%c0_35, %c0_36, %c0_37] : memref<1x256x128xf32, #tpu.memory_space<vmem>>, vector<1x256x128xf32>
    %37 = vector.shape_cast %36 : vector<1x256x128xf32> to vector<256x128xf32>
    %38 = vector.shape_cast %35 : vector<256x128xf32> to vector<1x256x128xf32>
    tpu.vector_store %arg4[%c0_35, %c0_36, %c0_37], %38 {strides = array<i32>} : memref<1x256x128xf32, #tpu.memory_space<vmem>>, vector<1x256x128xf32>,
    %c0_38 = arith.constant 0 : index
    %c1_39 = arith.constant 1 : index
    %c0_40 = arith.constant 0 : index
    %c0_41 = arith.constant 0 : index
    %39 = vector.load %arg1[%c0_38, %c1_39, %c0_40, %c0_41] : memref<1x18x18x8xbf16, #tpu.memory_space<vmem>>, vector<1x16x16x8xbf16>
    %40 = vector.shape_cast %39 : vector<1x16x16x8xbf16> to vector<16x16x8xbf16>
    %41 = vector.shape_cast %40 : vector<16x16x8xbf16> to vector<256x8xbf16>
    %c24 = arith.constant 24 : index
    %c0_42 = arith.constant 0 : index
    %42 = vector.load %arg2[%c24, %c0_42] : memref<72x128xbf16, #tpu.memory_space<vmem>>, vector<8x128xbf16>
    %c0_43 = arith.constant 0 : index
    %c0_44 = arith.constant 0 : index
    %c0_45 = arith.constant 0 : index
    %43 = vector.load %arg4[%c0_43, %c0_44, %c0_45] : memref<1x256x128xf32, #tpu.memory_space<vmem>>, vector<1x256x128xf32>
    %44 = vector.shape_cast %43 : vector<1x256x128xf32> to vector<256x128xf32>
    %cst_46 = arith.constant dense<0.000000e+00> : vector<256x128xf32>
    %45 = tpu.matmul %41, %42, %cst_46 {dimension_numbers = #tpu.dot_dimension_numbers<[1], [0], [0], [1], [0, 0, 1, 1], [], []>} : vector<256x8xbf16>, vector<8x128xbf16>, vector<256x128xf32> -> vector<256x128xf32>
    %46 = arith.addf %44, %45 : vector<256x128xf32>
    %c0_47 = arith.constant 0 : index
    %c0_48 = arith.constant 0 : index
    %c0_49 = arith.constant 0 : index
    %47 = vector.load %arg4[%c0_47, %c0_48, %c0_49] : memref<1x256x128xf32, #tpu.memory_space<vmem>>, vector<1x256x128xf32>
    %48 = vector.shape_cast %47 : vector<1x256x128xf32> to vector<256x128xf32>
    %49 = vector.shape_cast %46 : vector<256x128xf32> to vector<1x256x128xf32>
    tpu.vector_store %arg4[%c0_47, %c0_48, %c0_49], %49 {strides = array<i32>} : memref<1x256x128xf32, #tpu.memory_space<vmem>>, vector<1x256x128xf32>,
    %c0_50 = arith.constant 0 : index
    %c1_51 = arith.constant 1 : index
    %c1_52 = arith.constant 1 : index
    %c0_53 = arith.constant 0 : index
    %50 = vector.load %arg1[%c0_50, %c1_51, %c1_52, %c0_53] : memref<1x18x18x8xbf16, #tpu.memory_space<vmem>>, vector<1x16x16x8xbf16>
    %51 = vector.shape_cast %50 : vector<1x16x16x8xbf16> to vector<16x16x8xbf16>
    %52 = vector.shape_cast %51 : vector<16x16x8xbf16> to vector<256x8xbf16>
    %c32 = arith.constant 32 : index
    %c0_54 = arith.constant 0 : index
    %53 = vector.load %arg2[%c32, %c0_54] : memref<72x128xbf16, #tpu.memory_space<vmem>>, vector<8x128xbf16>
    %c0_55 = arith.constant 0 : index
    %c0_56 = arith.constant 0 : index
    %c0_57 = arith.constant 0 : index
    %54 = vector.load %arg4[%c0_55, %c0_56, %c0_57] : memref<1x256x128xf32, #tpu.memory_space<vmem>>, vector<1x256x128xf32>
    %55 = vector.shape_cast %54 : vector<1x256x128xf32> to vector<256x128xf32>
    %cst_58 = arith.constant dense<0.000000e+00> : vector<256x128xf32>
    %56 = tpu.matmul %52, %53, %cst_58 {dimension_numbers = #tpu.dot_dimension_numbers<[1], [0], [0], [1], [0, 0, 1, 1], [], []>} : vector<256x8xbf16>, vector<8x128xbf16>, vector<256x128xf32> -> vector<256x128xf32>
    %57 = arith.addf %55, %56 : vector<256x128xf32>
    %c0_59 = arith.constant 0 : index
    %c0_60 = arith.constant 0 : index
    %c0_61 = arith.constant 0 : index
    %58 = vector.load %arg4[%c0_59, %c0_60, %c0_61] : memref<1x256x128xf32, #tpu.memory_space<vmem>>, vector<1x256x128xf32>
    %59 = vector.shape_cast %58 : vector<1x256x128xf32> to vector<256x128xf32>
    %60 = vector.shape_cast %57 : vector<256x128xf32> to vector<1x256x128xf32>
    tpu.vector_store %arg4[%c0_59, %c0_60, %c0_61], %60 {strides = array<i32>} : memref<1x256x128xf32, #tpu.memory_space<vmem>>, vector<1x256x128xf32>,
    %c0_62 = arith.constant 0 : index
    %c1_63 = arith.constant 1 : index
    %c2_64 = arith.constant 2 : index
    %c0_65 = arith.constant 0 : index
    %61 = vector.load %arg1[%c0_62, %c1_63, %c2_64, %c0_65] : memref<1x18x18x8xbf16, #tpu.memory_space<vmem>>, vector<1x16x16x8xbf16>
    %62 = vector.shape_cast %61 : vector<1x16x16x8xbf16> to vector<16x16x8xbf16>
    %63 = vector.shape_cast %62 : vector<16x16x8xbf16> to vector<256x8xbf16>
    %c40 = arith.constant 40 : index
    %c0_66 = arith.constant 0 : index
    %64 = vector.load %arg2[%c40, %c0_66] : memref<72x128xbf16, #tpu.memory_space<vmem>>, vector<8x128xbf16>
    %c0_67 = arith.constant 0 : index
    %c0_68 = arith.constant 0 : index
    %c0_69 = arith.constant 0 : index
    %65 = vector.load %arg4[%c0_67, %c0_68, %c0_69] : memref<1x256x128xf32, #tpu.memory_space<vmem>>, vector<1x256x128xf32>
    %66 = vector.shape_cast %65 : vector<1x256x128xf32> to vector<256x128xf32>
    %cst_70 = arith.constant dense<0.000000e+00> : vector<256x128xf32>
    %67 = tpu.matmul %63, %64, %cst_70 {dimension_numbers = #tpu.dot_dimension_numbers<[1], [0], [0], [1], [0, 0, 1, 1], [], []>} : vector<256x8xbf16>, vector<8x128xbf16>, vector<256x128xf32> -> vector<256x128xf32>
    %68 = arith.addf %66, %67 : vector<256x128xf32>
    %c0_71 = arith.constant 0 : index
    %c0_72 = arith.constant 0 : index
    %c0_73 = arith.constant 0 : index
    %69 = vector.load %arg4[%c0_71, %c0_72, %c0_73] : memref<1x256x128xf32, #tpu.memory_space<vmem>>, vector<1x256x128xf32>
    %70 = vector.shape_cast %69 : vector<1x256x128xf32> to vector<256x128xf32>
    %71 = vector.shape_cast %68 : vector<256x128xf32> to vector<1x256x128xf32>
    tpu.vector_store %arg4[%c0_71, %c0_72, %c0_73], %71 {strides = array<i32>} : memref<1x256x128xf32, #tpu.memory_space<vmem>>, vector<1x256x128xf32>,
    %c0_74 = arith.constant 0 : index
    %c2_75 = arith.constant 2 : index
    %c0_76 = arith.constant 0 : index
    %c0_77 = arith.constant 0 : index
    %72 = vector.load %arg1[%c0_74, %c2_75, %c0_76, %c0_77] : memref<1x18x18x8xbf16, #tpu.memory_space<vmem>>, vector<1x16x16x8xbf16>
    %73 = vector.shape_cast %72 : vector<1x16x16x8xbf16> to vector<16x16x8xbf16>
    %74 = vector.shape_cast %73 : vector<16x16x8xbf16> to vector<256x8xbf16>
    %c48 = arith.constant 48 : index
    %c0_78 = arith.constant 0 : index
    %75 = vector.load %arg2[%c48, %c0_78] : memref<72x128xbf16, #tpu.memory_space<vmem>>, vector<8x128xbf16>
    %c0_79 = arith.constant 0 : index
    %c0_80 = arith.constant 0 : index
    %c0_81 = arith.constant 0 : index
    %76 = vector.load %arg4[%c0_79, %c0_80, %c0_81] : memref<1x256x128xf32, #tpu.memory_space<vmem>>, vector<1x256x128xf32>
    %77 = vector.shape_cast %76 : vector<1x256x128xf32> to vector<256x128xf32>
    %cst_82 = arith.constant dense<0.000000e+00> : vector<256x128xf32>
    %78 = tpu.matmul %74, %75, %cst_82 {dimension_numbers = #tpu.dot_dimension_numbers<[1], [0], [0], [1], [0, 0, 1, 1], [], []>} : vector<256x8xbf16>, vector<8x128xbf16>, vector<256x128xf32> -> vector<256x128xf32>
    %79 = arith.addf %77, %78 : vector<256x128xf32>
    %c0_83 = arith.constant 0 : index
    %c0_84 = arith.constant 0 : index
    %c0_85 = arith.constant 0 : index
    %80 = vector.load %arg4[%c0_83, %c0_84, %c0_85] : memref<1x256x128xf32, #tpu.memory_space<vmem>>, vector<1x256x128xf32>
    %81 = vector.shape_cast %80 : vector<1x256x128xf32> to vector<256x128xf32>
    %82 = vector.shape_cast %79 : vector<256x128xf32> to vector<1x256x128xf32>
    tpu.vector_store %arg4[%c0_83, %c0_84, %c0_85], %82 {strides = array<i32>} : memref<1x256x128xf32, #tpu.memory_space<vmem>>, vector<1x256x128xf32>,
    %c0_86 = arith.constant 0 : index
    %c2_87 = arith.constant 2 : index
    %c1_88 = arith.constant 1 : index
    %c0_89 = arith.constant 0 : index
    %83 = vector.load %arg1[%c0_86, %c2_87, %c1_88, %c0_89] : memref<1x18x18x8xbf16, #tpu.memory_space<vmem>>, vector<1x16x16x8xbf16>
    %84 = vector.shape_cast %83 : vector<1x16x16x8xbf16> to vector<16x16x8xbf16>
    %85 = vector.shape_cast %84 : vector<16x16x8xbf16> to vector<256x8xbf16>
    %c56 = arith.constant 56 : index
    %c0_90 = arith.constant 0 : index
    %86 = vector.load %arg2[%c56, %c0_90] : memref<72x128xbf16, #tpu.memory_space<vmem>>, vector<8x128xbf16>
    %c0_91 = arith.constant 0 : index
    %c0_92 = arith.constant 0 : index
    %c0_93 = arith.constant 0 : index
    %87 = vector.load %arg4[%c0_91, %c0_92, %c0_93] : memref<1x256x128xf32, #tpu.memory_space<vmem>>, vector<1x256x128xf32>
    %88 = vector.shape_cast %87 : vector<1x256x128xf32> to vector<256x128xf32>
    %cst_94 = arith.constant dense<0.000000e+00> : vector<256x128xf32>
    %89 = tpu.matmul %85, %86, %cst_94 {dimension_numbers = #tpu.dot_dimension_numbers<[1], [0], [0], [1], [0, 0, 1, 1], [], []>} : vector<256x8xbf16>, vector<8x128xbf16>, vector<256x128xf32> -> vector<256x128xf32>
    %90 = arith.addf %88, %89 : vector<256x128xf32>
    %c0_95 = arith.constant 0 : index
    %c0_96 = arith.constant 0 : index
    %c0_97 = arith.constant 0 : index
    %91 = vector.load %arg4[%c0_95, %c0_96, %c0_97] : memref<1x256x128xf32, #tpu.memory_space<vmem>>, vector<1x256x128xf32>
    %92 = vector.shape_cast %91 : vector<1x256x128xf32> to vector<256x128xf32>
    %93 = vector.shape_cast %90 : vector<256x128xf32> to vector<1x256x128xf32>
    tpu.vector_store %arg4[%c0_95, %c0_96, %c0_97], %93 {strides = array<i32>} : memref<1x256x128xf32, #tpu.memory_space<vmem>>, vector<1x256x128xf32>,
    %c0_98 = arith.constant 0 : index
    %c2_99 = arith.constant 2 : index
    %c2_100 = arith.constant 2 : index
    %c0_101 = arith.constant 0 : index
    %94 = vector.load %arg1[%c0_98, %c2_99, %c2_100, %c0_101] : memref<1x18x18x8xbf16, #tpu.memory_space<vmem>>, vector<1x16x16x8xbf16>
    %95 = vector.shape_cast %94 : vector<1x16x16x8xbf16> to vector<16x16x8xbf16>
    %96 = vector.shape_cast %95 : vector<16x16x8xbf16> to vector<256x8xbf16>
    %c64 = arith.constant 64 : index
    %c0_102 = arith.constant 0 : index
    %97 = vector.load %arg2[%c64, %c0_102] : memref<72x128xbf16, #tpu.memory_space<vmem>>, vector<8x128xbf16>
    %c0_103 = arith.constant 0 : index
    %c0_104 = arith.constant 0 : index
    %c0_105 = arith.constant 0 : index
    %98 = vector.load %arg4[%c0_103, %c0_104, %c0_105] : memref<1x256x128xf32, #tpu.memory_space<vmem>>, vector<1x256x128xf32>
    %99 = vector.shape_cast %98 : vector<1x256x128xf32> to vector<256x128xf32>
    %cst_106 = arith.constant dense<0.000000e+00> : vector<256x128xf32>
    %100 = tpu.matmul %96, %97, %cst_106 {dimension_numbers = #tpu.dot_dimension_numbers<[1], [0], [0], [1], [0, 0, 1, 1], [], []>} : vector<256x8xbf16>, vector<8x128xbf16>, vector<256x128xf32> -> vector<256x128xf32>
    %101 = arith.addf %99, %100 : vector<256x128xf32>
    %c0_107 = arith.constant 0 : index
    %c0_108 = arith.constant 0 : index
    %c0_109 = arith.constant 0 : index
    %102 = vector.load %arg4[%c0_107, %c0_108, %c0_109] : memref<1x256x128xf32, #tpu.memory_space<vmem>>, vector<1x256x128xf32>
    %103 = vector.shape_cast %102 : vector<1x256x128xf32> to vector<256x128xf32>
    %104 = vector.shape_cast %101 : vector<256x128xf32> to vector<1x256x128xf32>
    tpu.vector_store %arg4[%c0_107, %c0_108, %c0_109], %104 {strides = array<i32>} : memref<1x256x128xf32, #tpu.memory_space<vmem>>, vector<1x256x128xf32>,
    return
  }
  func.func @transform_0(%arg0: i32) -> (i32, i32, i32, i32) {
    %c0_i32 = arith.constant 0 : i32
    %c0_i32_0 = arith.constant 0 : i32
    %c0_i32_1 = arith.constant 0 : i32
    %c0_i32_2 = arith.constant 0 : i32
    return %arg0, %c0_i32, %c0_i32_0, %c0_i32_1 : i32, i32, i32, i32
  }
  func.func @transform_1(%arg0: i32) -> (i32, i32) {
    %c0_i32 = arith.constant 0 : i32
    %c0_i32_0 = arith.constant 0 : i32
    %c0_i32_1 = arith.constant 0 : i32
    return %c0_i32, %c0_i32_0 : i32, i32
  }
  func.func @transform_2(%arg0: i32) -> (i32, i32) {
    %c0_i32 = arith.constant 0 : i32
    %c0_i32_0 = arith.constant 0 : i32
    %c0_i32_1 = arith.constant 0 : i32
    return %c0_i32, %c0_i32_0 : i32, i32
  }
  func.func @transform_3(%arg0: i32) -> (i32, i32, i32) {
    %c0_i32 = arith.constant 0 : i32
    %c0_i32_0 = arith.constant 0 : i32
    %c0_i32_1 = arith.constant 0 : i32
    return %arg0, %c0_i32, %c0_i32_0 : i32, i32, i32
  }
}

</mosaic_0001>

<llo_original>
// kernel: tpu_custom_call.1
$region0: #{tpu_custom_call.1}
  #allocation0 [shape = 'u32[]', space=smem, size = 0x4, offset = 0x4, fixed_abs, tag = 'smem constant byte address 0x4 - core index']
  #allocation1 [shape = 'u32[72,128]{1,0:T(1,128)}', space=vmem, size = 0x9000, scoped, tag = 'internal scratch']
  %s0 = inlined_call_operand.vmem [shape: bf16[4,18,18,8], index: 0, kind: input, shape index: {}]
  %s1 = inlined_call_operand.vmem [shape: bf16[72,128], index: 1, kind: input, shape index: {}]
  %s2 = inlined_call_operand.vmem [shape: f32[1,128], index: 2, kind: input, shape index: {}]
  %s3 = inlined_call_operand.hbm [shape: f32[4,256,128], index: 3, kind: output, shape index: {}]
  %s4 = sld [smem:[#allocation0]]
  $region45: #{tpu_custom_call.1} parent=0
    _
  %s6 = ssub.s32 1, %s4
  %s7 = scalar_select 0, %s6, %s4
  $region1: #{tpu_custom_call.1} parent=0
    #allocation2 [shape = 'u8[262144]{0}', space=vmem, size = 0x40000, scoped, tag = 'output window, operand 0']
    #allocation3 [shape = 's32[2]{0}', space=sflag, size = 0x8, scoped, tag = 'scoped memory for tpu_custom_call.1']
    %8 = vsyncpa [#allocation3], 0
    %s9 = scalar_lea.sflag [#allocation3], 1
    %10 = vsyncpa %s9, 0
    loop: start=0, step=1, limit=6
    $region2: #{tpu_custom_call.1} parent=1 // loop_pre_header
      _
    $region3: #{tpu_custom_call.1} parent=1 // loop_header
      %s12 = sphi 0, %s16
      %p13 = scmp.ge.s32.totalorder %s12, 6
      %s22 = sphi 0, %s24
      %s25 = sphi 0, %s22
      %s26 = sphi 0, %s25
      %s42 = sphi 0, %s26
      %s46 = sphi 0, %s46
      %s48 = sphi 0, %s46
      %s49 = sphi 0, %s48
      %s63 = sphi 0, %s49
      %s67 = sphi 0, %s67
      %s69 = sphi 0, %s67
      %s70 = sphi 0, %s69
      %s84 = sphi 0, %s70
      %s90 = sphi 0, %s92
      %s93 = sphi 0, %s90
      %s94 = sphi 0, %s93
      %s110 = sphi 0, %s94
    $region4: #{tpu_custom_call.1} parent=1 // loop_header_branch
      %15 = sbr.rel (%p13) target = $region8
    $region5: #{tpu_custom_call.1} parent=1 // loop_body
      %s17 = ssub.s32 %s12, 1
      %s18 = ssub.s32 %s12, 2
      %s19 = sadd.s32 %s12, 1
      %s20 = ssub.s32 %s12, %s19
      %p21 = scmp.eq.s32.totalorder %s20, 0
      %s23 = sadd.s32 %s22, 1
      %s24 = scalar_select %p21, %s22, %s23
      %p27 = pneg %p21
      %p28 = scmp.eq.s32.totalorder %s12, 3
      %p29 = por %p27, %p28
      %p30 = scmp.ne.s32.totalorder %s22, %s25
      %p31 = scmp.eq.s32.totalorder %s12, 0
      %p32 = por %p30, %p31
      %p33 = scmp.ne.s32.totalorder %s22, %s25
      %p34 = scmp.eq.s32.totalorder %s17, 3
      %p35 = por %p33, %p34
      %p36 = scmp.ne.s32.totalorder %s25, %s26
      %p37 = scmp.eq.s32.totalorder %s17, 0
      %p38 = por %p36, %p37
      %p39 = scmp.ne.s32.totalorder %s25, %s26
      %p40 = scmp.eq.s32.totalorder %s18, 3
      %p41 = por %p39, %p40
      %p43 = scmp.ne.s32.totalorder %s26, %s42
      %p44 = scmp.eq.s32.totalorder %s18, 0
      %p45 = por %p43, %p44
      %s47 = sadd.s32 %s46, 1
      %p50 = scmp.eq.s32.totalorder %s12, 3
      %p51 = scmp.ne.s32.totalorder %s46, %s48
      %p52 = scmp.eq.s32.totalorder %s12, 0
      %p53 = por %p51, %p52
      %p54 = scmp.ne.s32.totalorder %s46, %s48
      %p55 = scmp.eq.s32.totalorder %s17, 3
      %p56 = por %p54, %p55
      %p57 = scmp.ne.s32.totalorder %s48, %s49
      %p58 = scmp.eq.s32.totalorder %s17, 0
      %p59 = por %p57, %p58
      %p60 = scmp.ne.s32.totalorder %s48, %s49
      %p61 = scmp.eq.s32.totalorder %s18, 3
      %p62 = por %p60, %p61
      %p64 = scmp.ne.s32.totalorder %s49, %s63
      %p65 = scmp.eq.s32.totalorder %s18, 0
      %p66 = por %p64, %p65
      %s68 = sadd.s32 %s67, 1
      %p71 = scmp.eq.s32.totalorder %s12, 3
      %p72 = scmp.ne.s32.totalorder %s67, %s69
      %p73 = scmp.eq.s32.totalorder %s12, 0
      %p74 = por %p72, %p73
      %p75 = scmp.ne.s32.totalorder %s67, %s69
      %p76 = scmp.eq.s32.totalorder %s17, 3
      %p77 = por %p75, %p76
      %p78 = scmp.ne.s32.totalorder %s69, %s70
      %p79 = scmp.eq.s32.totalorder %s17, 0
      %p80 = por %p78, %p79
      %p81 = scmp.ne.s32.totalorder %s69, %s70
      %p82 = scmp.eq.s32.totalorder %s18, 3
      %p83 = por %p81, %p82
      %p85 = scmp.ne.s32.totalorder %s70, %s84
      %p86 = scmp.eq.s32.totalorder %s18, 0
      %p87 = por %p85, %p86
      %s88 = ssub.s32 %s12, %s19
      %p89 = scmp.eq.s32.totalorder %s88, 0
      %s91 = sadd.s32 %s90, 1
      %s92 = scalar_select %p89, %s90, %s91
      %p95 = pneg %p89
      %p96 = scmp.eq.s32.totalorder %s12, 3
      %p97 = por %p95, %p96
      %p98 = scmp.ne.s32.totalorder %s90, %s93
      %p99 = scmp.eq.s32.totalorder %s12, 0
      %p100 = por %p98, %p99
      %p101 = scmp.ne.s32.totalorder %s90, %s93
      %p102 = scmp.eq.s32.totalorder %s17, 3
      %p103 = por %p101, %p102
      %p104 = scmp.ne.s32.totalorder %s93, %s94
      %p105 = scmp.eq.s32.totalorder %s17, 0
      %p106 = por %p104, %p105
      %p107 = scmp.ne.s32.totalorder %s93, %s94
      %p108 = scmp.eq.s32.totalorder %s18, 3
      %p109 = por %p107, %p108
      %p111 = scmp.ne.s32.totalorder %s94, %s110
      %p112 = scmp.eq.s32.totalorder %s18, 0
      %p113 = por %p111, %p112
      %p114 = scmp.le.s32.totalorder 1, %s12
      %p115 = scmp.lt.s32.totalorder %s12, 5
      %p116 = pnand %p114, %p115
      %p117 = pneg %p116
      // Predicated region
      $region9: #{tpu_custom_call.1} parent=5 // pred_check
        _
      $region10: #{tpu_custom_call.1} parent=5 // pred_check_branch
        %119 = sbr.rel (%p116) target = $region12
      $region11: #{tpu_custom_call.1} parent=5 // pred_region
        %s120 = ssub.s32 %s12, 1
        // Predicated region
        $region13: #{tpu_custom_call.1} parent=11 // pred_check
          %p121 = pneg %p59
        $region14: #{tpu_custom_call.1} parent=11 // pred_check_branch
          %123 = sbr.rel (%p121) target = $region16
        $region15: #{tpu_custom_call.1} parent=11 // pred_region
          _
        $region16: #{tpu_custom_call.1} parent=11 // pred_fallthru
          _
        // Predicated region
        $region17: #{tpu_custom_call.1} parent=11 // pred_check
          %p124 = pneg %p80
        $region18: #{tpu_custom_call.1} parent=11 // pred_check_branch
          %126 = sbr.rel (%p124) target = $region20
        $region19: #{tpu_custom_call.1} parent=11 // pred_region
          _
        $region20: #{tpu_custom_call.1} parent=11 // pred_fallthru
          _
      $region12: #{tpu_custom_call.1} parent=5 // pred_fallthru
        _
      %p127 = scmp.lt.s32.totalorder %s12, 4
      // Predicated region
      $region21: #{tpu_custom_call.1} parent=5 // pred_check
        %p128 = pneg %p127
      $region22: #{tpu_custom_call.1} parent=5 // pred_check_branch
        %130 = sbr.rel (%p128) target = $region24
      $region23: #{tpu_custom_call.1} parent=5 // pred_region
        // Predicated region
        $region25: #{tpu_custom_call.1} parent=23 // pred_check
          %p131 = pneg %p32
        $region26: #{tpu_custom_call.1} parent=23 // pred_check_branch
          %133 = sbr.rel (%p131) target = $region28
        $region27: #{tpu_custom_call.1} parent=23 // pred_region
          %p134 = scmp.lt.s32.totalorder %s12, 3
          %s135 = scalar_select %p134, %s12, 3
          %s136 = smul.addr %s135, 54
          %s137 = smul.addr %s136, 4
          %s138 = scalar_lea.vmem %s0, %s137
        $region28: #{tpu_custom_call.1} parent=23 // pred_fallthru
          _
      $region24: #{tpu_custom_call.1} parent=5 // pred_fallthru
        _
      %p139 = scmp.le.s32.totalorder 1, %s12
      %p140 = scmp.lt.s32.totalorder %s12, 5
      %p141 = pnand %p139, %p140
      %p142 = pneg %p141
      // Predicated region
      $region29: #{tpu_custom_call.1} parent=5 // pred_check
        _
      $region30: #{tpu_custom_call.1} parent=5 // pred_check_branch
        %144 = sbr.rel (%p141) target = $region32
      $region31: #{tpu_custom_call.1} parent=5 // pred_region
        %s145 = ssub.s32 %s12, 1
        %p146 = scmp.lt.s32.totalorder %s17, 3
        %s147 = scalar_select %p146, %s17, 3
        %s148 = smul.addr %s147, 54
        %s149 = smul.addr %s148, 4
        %s150 = scalar_lea.vmem %s0, %s149
        %p151 = pneg %p38
        %p152 = pneg %p35
        %p153 = pneg %p59
        %p154 = pneg %p56
        %p155 = pneg %p80
        %p156 = pneg %p77
        %p157 = pneg %p106
        %p158 = pneg %p103
        %s159 = sand.u32 %s93, 1
        %s160 = scalar_lea.sflag [#allocation3], %s159
        %s161 = sand.u32 %s93, 1
        %s162 = smul.addr %s161, 256
        %s163 = scalar_lea.vmem [#allocation2], %s162
        %p164 = scmp.lt.s32.totalorder %s17, 3
        %s165 = scalar_select %p164, %s17, 3
        %s166 = smul.addr %s165, 54
        %s167 = smul.addr %s166, 4
        %s168 = scalar_lea.vmem %s0, %s167
        %v170 = vld [vmem:[%s2] sm:$0x1]
        %v172 = vperm.slane %v170, 0
        %174 = vst [vmem:[%s163] sm:$0xff] %v172
        %175 = vst [vmem:[%s163 + $0x8] sm:$0xff] %v172
        %176 = vst [vmem:[%s163 + $0x10] sm:$0xff] %v172
        %177 = vst [vmem:[%s163 + $0x18] sm:$0xff] %v172
        %178 = vst [vmem:[%s163 + $0x20] sm:$0xff] %v172
        %179 = vst [vmem:[%s163 + $0x28] sm:$0xff] %v172
        %180 = vst [vmem:[%s163 + $0x30] sm:$0xff] %v172
        %181 = vst [vmem:[%s163 + $0x38] sm:$0xff] %v172
        %182 = vst [vmem:[%s163 + $0x40] sm:$0xff] %v172
        %183 = vst [vmem:[%s163 + $0x48] sm:$0xff] %v172
        %184 = vst [vmem:[%s163 + $0x50] sm:$0xff] %v172
        %185 = vst [vmem:[%s163 + $0x58] sm:$0xff] %v172
        %186 = vst [vmem:[%s163 + $0x60] sm:$0xff] %v172
        %187 = vst [vmem:[%s163 + $0x68] sm:$0xff] %v172
        %188 = vst [vmem:[%s163 + $0x70] sm:$0xff] %v172
        %189 = vst [vmem:[%s163 + $0x78] sm:$0xff] %v172
        %190 = vst [vmem:[%s163 + $0x80] sm:$0xff] %v172
        %191 = vst [vmem:[%s163 + $0x88] sm:$0xff] %v172
        %192 = vst [vmem:[%s163 + $0x90] sm:$0xff] %v172
        %193 = vst [vmem:[%s163 + $0x98] sm:$0xff] %v172
        %194 = vst [vmem:[%s163 + $0xa0] sm:$0xff] %v172
        %195 = vst [vmem:[%s163 + $0xa8] sm:$0xff] %v172
        %196 = vst [vmem:[%s163 + $0xb0] sm:$0xff] %v172
        %197 = vst [vmem:[%s163 + $0xb8] sm:$0xff] %v172
        %198 = vst [vmem:[%s163 + $0xc0] sm:$0xff] %v172
        %199 = vst [vmem:[%s163 + $0xc8] sm:$0xff] %v172
        %200 = vst [vmem:[%s163 + $0xd0] sm:$0xff] %v172
        %201 = vst [vmem:[%s163 + $0xd8] sm:$0xff] %v172
        %202 = vst [vmem:[%s163 + $0xe0] sm:$0xff] %v172
        %203 = vst [vmem:[%s163 + $0xe8] sm:$0xff] %v172
        %204 = vst [vmem:[%s163 + $0xf0] sm:$0xff] %v172
        %205 = vst [vmem:[%s163 + $0xf8] sm:$0xff] %v172
        %v206 = vld [vmem:[%s168] sm:$0xf]
        %v207 = vld [vmem:[%s168 + $0x4] sm:$0xf]
        %v208 = vld [vmem:[%s168 + $0xc] sm:$0xf]
        %v209 = vld [vmem:[%s168 + $0x10] sm:$0xf]
        %v210 = vld [vmem:[%s168 + $0x18] sm:$0xf]
        %v211 = vld [vmem:[%s168 + $0x1c] sm:$0xf]
        %v212 = vld [vmem:[%s168 + $0x24] sm:$0xf]
        %v213 = vld [vmem:[%s168 + $0x28] sm:$0xf]
        %v214 = vld [vmem:[%s168 + $0x30] sm:$0xf]
        %v215 = vld [vmem:[%s168 + $0x34] sm:$0xf]
        %v216 = vld [vmem:[%s168 + $0x3c] sm:$0xf]
        %v217 = vld [vmem:[%s168 + $0x40] sm:$0xf]
        %v218 = vld [vmem:[%s168 + $0x48] sm:$0xf]
        %v219 = vld [vmem:[%s168 + $0x4c] sm:$0xf]
        %v220 = vld [vmem:[%s168 + $0x54] sm:$0xf]
        %v221 = vld [vmem:[%s168 + $0x58] sm:$0xf]
        %v222 = vld [vmem:[%s168 + $0x60] sm:$0xf]
        %v223 = vld [vmem:[%s168 + $0x64] sm:$0xf]
        %v224 = vld [vmem:[%s168 + $0x6c] sm:$0xf]
        %v225 = vld [vmem:[%s168 + $0x70] sm:$0xf]
        %v226 = vld [vmem:[%s168 + $0x78] sm:$0xf]
        %v227 = vld [vmem:[%s168 + $0x7c] sm:$0xf]
        %v228 = vld [vmem:[%s168 + $0x84] sm:$0xf]
        %v229 = vld [vmem:[%s168 + $0x88] sm:$0xf]
        %v230 = vld [vmem:[%s168 + $0x90] sm:$0xf]
        %v231 = vld [vmem:[%s168 + $0x94] sm:$0xf]
        %v232 = vld [vmem:[%s168 + $0x9c] sm:$0xf]
        %v233 = vld [vmem:[%s168 + $0xa0] sm:$0xf]
        %v234 = vld [vmem:[%s168 + $0xa8] sm:$0xf]
        %v235 = vld [vmem:[%s168 + $0xac] sm:$0xf]
        %v236 = vld [vmem:[%s168 + $0xb4] sm:$0xf]
        %v237 = vld [vmem:[%s168 + $0xb8] sm:$0xf]
        %v238 = vld [vmem:[%s1] sm:$0xf]
        %v239 = vld [vmem:[%s163] sm:$0xff]
        %v240 = vld [vmem:[%s163 + $0x8] sm:$0xff]
        %v241 = vld [vmem:[%s163 + $0x10] sm:$0xff]
        %v242 = vld [vmem:[%s163 + $0x18] sm:$0xff]
        %v243 = vld [vmem:[%s163 + $0x20] sm:$0xff]
        %v244 = vld [vmem:[%s163 + $0x28] sm:$0xff]
        %v245 = vld [vmem:[%s163 + $0x30] sm:$0xff]
        %v246 = vld [vmem:[%s163 + $0x38] sm:$0xff]
        %v247 = vld [vmem:[%s163 + $0x40] sm:$0xff]
        %v248 = vld [vmem:[%s163 + $0x48] sm:$0xff]
        %v249 = vld [vmem:[%s163 + $0x50] sm:$0xff]
        %v250 = vld [vmem:[%s163 + $0x58] sm:$0xff]
        %v251 = vld [vmem:[%s163 + $0x60] sm:$0xff]
        %v252 = vld [vmem:[%s163 + $0x68] sm:$0xff]
        %v253 = vld [vmem:[%s163 + $0x70] sm:$0xff]
        %v254 = vld [vmem:[%s163 + $0x78] sm:$0xff]
        %v255 = vld [vmem:[%s163 + $0x80] sm:$0xff]
        %v256 = vld [vmem:[%s163 + $0x88] sm:$0xff]
        %v257 = vld [vmem:[%s163 + $0x90] sm:$0xff]
        %v258 = vld [vmem:[%s163 + $0x98] sm:$0xff]
        %v259 = vld [vmem:[%s163 + $0xa0] sm:$0xff]
        %v260 = vld [vmem:[%s163 + $0xa8] sm:$0xff]
        %v261 = vld [vmem:[%s163 + $0xb0] sm:$0xff]
        %v262 = vld [vmem:[%s163 + $0xb8] sm:$0xff]
        %v263 = vld [vmem:[%s163 + $0xc0] sm:$0xff]
        %v264 = vld [vmem:[%s163 + $0xc8] sm:$0xff]
        %v265 = vld [vmem:[%s163 + $0xd0] sm:$0xff]
        %v266 = vld [vmem:[%s163 + $0xd8] sm:$0xff]
        %v267 = vld [vmem:[%s163 + $0xe0] sm:$0xff]
        %v268 = vld [vmem:[%s163 + $0xe8] sm:$0xff]
        %v269 = vld [vmem:[%s163 + $0xf0] sm:$0xff]
        %v270 = vld [vmem:[%s163 + $0xf8] sm:$0xff]
        %v303 = vunpack.c.l.b16 %v206
        %v304 = vunpack.c.l.b16 %v207
        %v305 = vunpack.c.l.b16 %v208
        %v306 = vunpack.c.l.b16 %v209
        %v307 = vunpack.c.l.b16 %v210
        %v308 = vunpack.c.l.b16 %v211
        %v309 = vunpack.c.l.b16 %v212
        %v310 = vunpack.c.l.b16 %v213
        %v311 = vunpack.c.l.b16 %v214
        %v312 = vunpack.c.l.b16 %v215
        %v313 = vunpack.c.l.b16 %v216
        %v314 = vunpack.c.l.b16 %v217
        %v315 = vunpack.c.l.b16 %v218
        %v316 = vunpack.c.l.b16 %v219
        %v317 = vunpack.c.l.b16 %v220
        %v318 = vunpack.c.l.b16 %v221
        %v319 = vunpack.c.l.b16 %v222
        %v320 = vunpack.c.l.b16 %v223
        %v321 = vunpack.c.l.b16 %v224
        %v322 = vunpack.c.l.b16 %v225
        %v323 = vunpack.c.l.b16 %v226
        %v324 = vunpack.c.l.b16 %v227
        %v325 = vunpack.c.l.b16 %v228
        %v326 = vunpack.c.l.b16 %v229
        %v327 = vunpack.c.l.b16 %v230
        %v328 = vunpack.c.l.b16 %v231
        %v329 = vunpack.c.l.b16 %v232
        %v330 = vunpack.c.l.b16 %v233
        %v331 = vunpack.c.l.b16 %v234
        %v332 = vunpack.c.l.b16 %v235
        %v333 = vunpack.c.l.b16 %v236
        %v334 = vunpack.c.l.b16 %v237
        %v335 = vpack.c.b16 %v304, %v303
        %v336 = vpack.c.b16 %v306, %v305
        %v337 = vpack.c.b16 %v308, %v307
        %v338 = vpack.c.b16 %v310, %v309
        %v339 = vpack.c.b16 %v312, %v311
        %v340 = vpack.c.b16 %v314, %v313
        %v341 = vpack.c.b16 %v316, %v315
        %v342 = vpack.c.b16 %v318, %v317
        %v343 = vpack.c.b16 %v320, %v319
        %v344 = vpack.c.b16 %v322, %v321
        %v345 = vpack.c.b16 %v324, %v323
        %v346 = vpack.c.b16 %v326, %v325
        %v347 = vpack.c.b16 %v328, %v327
        %v348 = vpack.c.b16 %v330, %v329
        %v349 = vpack.c.b16 %v332, %v331
        %v350 = vpack.c.b16 %v334, %v333
        %vm351 = vcmask 64512
        %v353 = vsel %vm351, %v335, 0
        %v356 = vsel %vm351, %v336, 0
        %v359 = vsel %vm351, %v337, 0
        %v362 = vsel %vm351, %v338, 0
        %v365 = vsel %vm351, %v339, 0
        %v368 = vsel %vm351, %v340, 0
        %v371 = vsel %vm351, %v341, 0
        %v374 = vsel %vm351, %v342, 0
        %v377 = vsel %vm351, %v343, 0
        %v380 = vsel %vm351, %v344, 0
        %v383 = vsel %vm351, %v345, 0
        %v386 = vsel %vm351, %v346, 0
        %v389 = vsel %vm351, %v347, 0
        %v392 = vsel %vm351, %v348, 0
        %v395 = vsel %vm351, %v349, 0
        %v398 = vsel %vm351, %v350, 0
        %vm400 = vcmask 1043456
        %v402 = vsel %vm400, %v238, 0
        %404 = vmatpush.bf16.msra.mxu0 0
        %405 = vmatpush.bf16.msra.mxu0 0
        %406 = vmatpush.bf16.msra.mxu0 0
        %407 = vmatpush.bf16.msra.mxu0 0
        %408 = vmatpush.bf16.msra.mxu0 0
        %409 = vmatpush.bf16.msra.mxu0 0
        %410 = vmatpush.bf16.msra.mxu0 0
        %411 = vmatpush.bf16.msra.mxu0 %v402
        %412 = vmatmul.bf16.gmra.mxu0 %v353
        %v413 = vpop.f32.mrf.mxu0
        %v414 = vadd.f32 0.0, %v413
        %v415 = vpop.f32.mrf.mxu0
        %v416 = vadd.f32 0.0, %v415
        %417 = vmatmul.bf16.gmra.mxu0 %v356
        %v418 = vpop.f32.mrf.mxu0
        %v419 = vadd.f32 0.0, %v418
        %v420 = vpop.f32.mrf.mxu0
        %v421 = vadd.f32 0.0, %v420
        %422 = vmatmul.bf16.gmra.mxu0 %v359
        %v423 = vpop.f32.mrf.mxu0
        %v424 = vadd.f32 0.0, %v423
        %v425 = vpop.f32.mrf.mxu0
        %v426 = vadd.f32 0.0, %v425
        %427 = vmatmul.bf16.gmra.mxu0 %v362
        %v428 = vpop.f32.mrf.mxu0
        %v429 = vadd.f32 0.0, %v428
        %v430 = vpop.f32.mrf.mxu0
        %v431 = vadd.f32 0.0, %v430
        %432 = vmatmul.bf16.gmra.mxu0 %v365
        %v433 = vpop.f32.mrf.mxu0
        %v434 = vadd.f32 0.0, %v433
        %v435 = vpop.f32.mrf.mxu0
        %v436 = vadd.f32 0.0, %v435
        %437 = vmatmul.bf16.gmra.mxu0 %v368
        %v438 = vpop.f32.mrf.mxu0
        %v439 = vadd.f32 0.0, %v438
        %v440 = vpop.f32.mrf.mxu0
        %v441 = vadd.f32 0.0, %v440
        %442 = vmatmul.bf16.gmra.mxu0 %v371
        %v443 = vpop.f32.mrf.mxu0
        %v444 = vadd.f32 0.0, %v443
        %v445 = vpop.f32.mrf.mxu0
        %v446 = vadd.f32 0.0, %v445
        %447 = vmatmul.bf16.gmra.mxu0 %v374
        %v448 = vpop.f32.mrf.mxu0
        %v449 = vadd.f32 0.0, %v448
        %v450 = vpop.f32.mrf.mxu0
        %v451 = vadd.f32 0.0, %v450
        %452 = vmatmul.bf16.gmra.mxu0 %v377
        %v453 = vpop.f32.mrf.mxu0
        %v454 = vadd.f32 0.0, %v453
        %v455 = vpop.f32.mrf.mxu0
        %v456 = vadd.f32 0.0, %v455
        %457 = vmatmul.bf16.gmra.mxu0 %v380
        %v458 = vpop.f32.mrf.mxu0
        %v459 = vadd.f32 0.0, %v458
        %v460 = vpop.f32.mrf.mxu0
        %v461 = vadd.f32 0.0, %v460
        %462 = vmatmul.bf16.gmra.mxu0 %v383
        %v463 = vpop.f32.mrf.mxu0
        %v464 = vadd.f32 0.0, %v463
        %v465 = vpop.f32.mrf.mxu0
        %v466 = vadd.f32 0.0, %v465
        %467 = vmatmul.bf16.gmra.mxu0 %v386
        %v468 = vpop.f32.mrf.mxu0
        %v469 = vadd.f32 0.0, %v468
        %v470 = vpop.f32.mrf.mxu0
        %v471 = vadd.f32 0.0, %v470
        %472 = vmatmul.bf16.gmra.mxu0 %v389
        %v473 = vpop.f32.mrf.mxu0
        %v474 = vadd.f32 0.0, %v473
        %v475 = vpop.f32.mrf.mxu0
        %v476 = vadd.f32 0.0, %v475
        %477 = vmatmul.bf16.gmra.mxu0 %v392
        %v478 = vpop.f32.mrf.mxu0
        %v479 = vadd.f32 0.0, %v478
        %v480 = vpop.f32.mrf.mxu0
        %v481 = vadd.f32 0.0, %v480
        %482 = vmatmul.bf16.gmra.mxu0 %v395
        %v483 = vpop.f32.mrf.mxu0
        %v484 = vadd.f32 0.0, %v483
        %v485 = vpop.f32.mrf.mxu0
        %v486 = vadd.f32 0.0, %v485
        %487 = vmatmul.bf16.gmra.mxu0 %v398
        %v488 = vpop.f32.mrf.mxu0
        %v489 = vadd.f32 0.0, %v488
        %v490 = vpop.f32.mrf.mxu0
        %v491 = vadd.f32 0.0, %v490
        %492 = vdwg.mxu0
        %v493 = vadd.f32 %v239, %v414
        %v494 = vadd.f32 %v240, %v416
        %v495 = vadd.f32 %v241, %v419
        %v496 = vadd.f32 %v242, %v421
        %v497 = vadd.f32 %v243, %v424
        %v498 = vadd.f32 %v244, %v426
        %v499 = vadd.f32 %v245, %v429
        %v500 = vadd.f32 %v246, %v431
        %v501 = vadd.f32 %v247, %v434
        %v502 = vadd.f32 %v248, %v436
        %v503 = vadd.f32 %v249, %v439
        %v504 = vadd.f32 %v250, %v441
        %v505 = vadd.f32 %v251, %v444
        %v506 = vadd.f32 %v252, %v446
        %v507 = vadd.f32 %v253, %v449
        %v508 = vadd.f32 %v254, %v451
        %v509 = vadd.f32 %v255, %v454
        %v510 = vadd.f32 %v256, %v456
        %v511 = vadd.f32 %v257, %v459
        %v512 = vadd.f32 %v258, %v461
        %v513 = vadd.f32 %v259, %v464
        %v514 = vadd.f32 %v260, %v466
        %v515 = vadd.f32 %v261, %v469
        %v516 = vadd.f32 %v262, %v471
        %v517 = vadd.f32 %v263, %v474
        %v518 = vadd.f32 %v264, %v476
        %v519 = vadd.f32 %v265, %v479
        %v520 = vadd.f32 %v266, %v481
        %v521 = vadd.f32 %v267, %v484
        %v522 = vadd.f32 %v268, %v486
        %v523 = vadd.f32 %v269, %v489
        %v524 = vadd.f32 %v270, %v491
        %525 = vst [vmem:[%s163] sm:$0xff] %v493
        %526 = vst [vmem:[%s163 + $0x8] sm:$0xff] %v494
        %527 = vst [vmem:[%s163 + $0x10] sm:$0xff] %v495
        %528 = vst [vmem:[%s163 + $0x18] sm:$0xff] %v496
        %529 = vst [vmem:[%s163 + $0x20] sm:$0xff] %v497
        %530 = vst [vmem:[%s163 + $0x28] sm:$0xff] %v498
        %531 = vst [vmem:[%s163 + $0x30] sm:$0xff] %v499
        %532 = vst [vmem:[%s163 + $0x38] sm:$0xff] %v500
        %533 = vst [vmem:[%s163 + $0x40] sm:$0xff] %v501
        %534 = vst [vmem:[%s163 + $0x48] sm:$0xff] %v502
        %535 = vst [vmem:[%s163 + $0x50] sm:$0xff] %v503
        %536 = vst [vmem:[%s163 + $0x58] sm:$0xff] %v504
        %537 = vst [vmem:[%s163 + $0x60] sm:$0xff] %v505
        %538 = vst [vmem:[%s163 + $0x68] sm:$0xff] %v506
        %539 = vst [vmem:[%s163 + $0x70] sm:$0xff] %v507
        %540 = vst [vmem:[%s163 + $0x78] sm:$0xff] %v508
        %541 = vst [vmem:[%s163 + $0x80] sm:$0xff] %v509
        %542 = vst [vmem:[%s163 + $0x88] sm:$0xff] %v510
        %543 = vst [vmem:[%s163 + $0x90] sm:$0xff] %v511
        %544 = vst [vmem:[%s163 + $0x98] sm:$0xff] %v512
        %545 = vst [vmem:[%s163 + $0xa0] sm:$0xff] %v513
        %546 = vst [vmem:[%s163 + $0xa8] sm:$0xff] %v514
        %547 = vst [vmem:[%s163 + $0xb0] sm:$0xff] %v515
        %548 = vst [vmem:[%s163 + $0xb8] sm:$0xff] %v516
        %549 = vst [vmem:[%s163 + $0xc0] sm:$0xff] %v517
        %550 = vst [vmem:[%s163 + $0xc8] sm:$0xff] %v518
        %551 = vst [vmem:[%s163 + $0xd0] sm:$0xff] %v519
        %552 = vst [vmem:[%s163 + $0xd8] sm:$0xff] %v520
        %553 = vst [vmem:[%s163 + $0xe0] sm:$0xff] %v521
        %554 = vst [vmem:[%s163 + $0xe8] sm:$0xff] %v522
        %555 = vst [vmem:[%s163 + $0xf0] sm:$0xff] %v523
        %556 = vst [vmem:[%s163 + $0xf8] sm:$0xff] %v524
        %v557 = vld [vmem:[%s168] sm:$0xf]
        %v558 = vld [vmem:[%s168 + $0x4] sm:$0xf]
        %v559 = vld [vmem:[%s168 + $0x8] sm:$0x1]
        %v560 = vld [vmem:[%s168 + $0xc] sm:$0xf]
        %v561 = vld [vmem:[%s168 + $0x10] sm:$0xf]
        %v562 = vld [vmem:[%s168 + $0x14] sm:$0x1]
        %v563 = vld [vmem:[%s168 + $0x18] sm:$0xf]
        %v564 = vld [vmem:[%s168 + $0x1c] sm:$0xf]
        %v565 = vld [vmem:[%s168 + $0x20] sm:$0x1]
        %v566 = vld [vmem:[%s168 + $0x24] sm:$0xf]
        %v567 = vld [vmem:[%s168 + $0x28] sm:$0xf]
        %v568 = vld [vmem:[%s168 + $0x2c] sm:$0x1]
        %v569 = vld [vmem:[%s168 + $0x30] sm:$0xf]
        %v570 = vld [vmem:[%s168 + $0x34] sm:$0xf]
        %v571 = vld [vmem:[%s168 + $0x38] sm:$0x1]
        %v572 = vld [vmem:[%s168 + $0x3c] sm:$0xf]
        %v573 = vld [vmem:[%s168 + $0x40] sm:$0xf]
        %v574 = vld [vmem:[%s168 + $0x44] sm:$0x1]
        %v575 = vld [vmem:[%s168 + $0x48] sm:$0xf]
        %v576 = vld [vmem:[%s168 + $0x4c] sm:$0xf]
        %v577 = vld [vmem:[%s168 + $0x50] sm:$0x1]
        %v578 = vld [vmem:[%s168 + $0x54] sm:$0xf]
        %v579 = vld [vmem:[%s168 + $0x58] sm:$0xf]
        %v580 = vld [vmem:[%s168 + $0x5c] sm:$0x1]
        %v581 = vld [vmem:[%s168 + $0x60] sm:$0xf]
        %v582 = vld [vmem:[%s168 + $0x64] sm:$0xf]
        %v583 = vld [vmem:[%s168 + $0x68] sm:$0x1]
        %v584 = vld [vmem:[%s168 + $0x6c] sm:$0xf]
        %v585 = vld [vmem:[%s168 + $0x70] sm:$0xf]
        %v586 = vld [vmem:[%s168 + $0x74] sm:$0x1]
        %v587 = vld [vmem:[%s168 + $0x78] sm:$0xf]
        %v588 = vld [vmem:[%s168 + $0x7c] sm:$0xf]
        %v589 = vld [vmem:[%s168 + $0x80] sm:$0x1]
        %v590 = vld [vmem:[%s168 + $0x84] sm:$0xf]
        %v591 = vld [vmem:[%s168 + $0x88] sm:$0xf]
        %v592 = vld [vmem:[%s168 + $0x8c] sm:$0x1]
        %v593 = vld [vmem:[%s168 + $0x90] sm:$0xf]
        %v594 = vld [vmem:[%s168 + $0x94] sm:$0xf]
        %v595 = vld [vmem:[%s168 + $0x98] sm:$0x1]
        %v596 = vld [vmem:[%s168 + $0x9c] sm:$0xf]
        %v597 = vld [vmem:[%s168 + $0xa0] sm:$0xf]
        %v598 = vld [vmem:[%s168 + $0xa4] sm:$0x1]
        %v599 = vld [vmem:[%s168 + $0xa8] sm:$0xf]
        %v600 = vld [vmem:[%s168 + $0xac] sm:$0xf]
        %v601 = vld [vmem:[%s168 + $0xb0] sm:$0x1]
        %v602 = vld [vmem:[%s168 + $0xb4] sm:$0xf]
        %v603 = vld [vmem:[%s168 + $0xb8] sm:$0xf]
        %v604 = vld [vmem:[%s168 + $0xbc] sm:$0x1]
        %vm605 = vsmask.f32 3328
        %vm606 = vsmask.f32 7440
        %vm607 = vmor %vm605, %vm606
        %v609 = vshrl.u32 %v557, 16
        %v611 = vrot.slane %v609, 4
        %v612 = vshll.u32 %v557, 16
        %v614 = vrot.slane %v612, 5
        %v615 = vor.u32 %v611, %v614
        %v616 = vrot.slane %v615, 4
        %v618 = vshll.u32 %v558, 16
        %v620 = vrot.slane %v618, 5
        %v621 = vsel %vm607, %v616, %v620
        %v622 = vshrl.u32 %v558, 16
        %v624 = vrot.slane %v622, 4
        %v625 = vor.u32 %v624, %v620
        %v626 = vrot.slane %v625, 4
        %v628 = vshll.u32 %v559, 16
        %v630 = vrot.slane %v628, 5
        %v631 = vsel %vm607, %v626, %v630
        %v633 = vshrl.u32 %v560, 16
        %v635 = vrot.slane %v633, 4
        %v636 = vshll.u32 %v560, 16
        %v638 = vrot.slane %v636, 5
        %v639 = vor.u32 %v635, %v638
        %v640 = vrot.slane %v639, 4
        %v642 = vshll.u32 %v561, 16
        %v644 = vrot.slane %v642, 5
        %v645 = vsel %vm607, %v640, %v644
        %v646 = vshrl.u32 %v561, 16
        %v648 = vrot.slane %v646, 4
        %v649 = vor.u32 %v648, %v644
        %v650 = vrot.slane %v649, 4
        %v652 = vshll.u32 %v562, 16
        %v654 = vrot.slane %v652, 5
        %v655 = vsel %vm607, %v650, %v654
        %v657 = vshrl.u32 %v563, 16
        %v659 = vrot.slane %v657, 4
        %v660 = vshll.u32 %v563, 16
        %v662 = vrot.slane %v660, 5
        %v663 = vor.u32 %v659, %v662
        %v664 = vrot.slane %v663, 4
        %v666 = vshll.u32 %v564, 16
        %v668 = vrot.slane %v666, 5
        %v669 = vsel %vm607, %v664, %v668
        %v670 = vshrl.u32 %v564, 16
        %v672 = vrot.slane %v670, 4
        %v673 = vor.u32 %v672, %v668
        %v674 = vrot.slane %v673, 4
        %v676 = vshll.u32 %v565, 16
        %v678 = vrot.slane %v676, 5
        %v679 = vsel %vm607, %v674, %v678
        %v681 = vshrl.u32 %v566, 16
        %v683 = vrot.slane %v681, 4
        %v684 = vshll.u32 %v566, 16
        %v686 = vrot.slane %v684, 5
        %v687 = vor.u32 %v683, %v686
        %v688 = vrot.slane %v687, 4
        %v690 = vshll.u32 %v567, 16
        %v692 = vrot.slane %v690, 5
        %v693 = vsel %vm607, %v688, %v692
        %v694 = vshrl.u32 %v567, 16
        %v696 = vrot.slane %v694, 4
        %v697 = vor.u32 %v696, %v692
        %v698 = vrot.slane %v697, 4
        %v700 = vshll.u32 %v568, 16
        %v702 = vrot.slane %v700, 5
        %v703 = vsel %vm607, %v698, %v702
        %v705 = vshrl.u32 %v569, 16
        %v707 = vrot.slane %v705, 4
        %v708 = vshll.u32 %v569, 16
        %v710 = vrot.slane %v708, 5
        %v711 = vor.u32 %v707, %v710
        %v712 = vrot.slane %v711, 4
        %v714 = vshll.u32 %v570, 16
        %v716 = vrot.slane %v714, 5
        %v717 = vsel %vm607, %v712, %v716
        %v718 = vshrl.u32 %v570, 16
        %v720 = vrot.slane %v718, 4
        %v721 = vor.u32 %v720, %v716
        %v722 = vrot.slane %v721, 4
        %v724 = vshll.u32 %v571, 16
        %v726 = vrot.slane %v724, 5
        %v727 = vsel %vm607, %v722, %v726
        %v729 = vshrl.u32 %v572, 16
        %v731 = vrot.slane %v729, 4
        %v732 = vshll.u32 %v572, 16
        %v734 = vrot.slane %v732, 5
        %v735 = vor.u32 %v731, %v734
        %v736 = vrot.slane %v735, 4
        %v738 = vshll.u32 %v573, 16
        %v740 = vrot.slane %v738, 5
        %v741 = vsel %vm607, %v736, %v740
        %v742 = vshrl.u32 %v573, 16
        %v744 = vrot.slane %v742, 4
        %v745 = vor.u32 %v744, %v740
        %v746 = vrot.slane %v745, 4
        %v748 = vshll.u32 %v574, 16
        %v750 = vrot.slane %v748, 5
        %v751 = vsel %vm607, %v746, %v750
        %v753 = vshrl.u32 %v575, 16
        %v755 = vrot.slane %v753, 4
        %v756 = vshll.u32 %v575, 16
        %v758 = vrot.slane %v756, 5
        %v759 = vor.u32 %v755, %v758
        %v760 = vrot.slane %v759, 4
        %v762 = vshll.u32 %v576, 16
        %v764 = vrot.slane %v762, 5
        %v765 = vsel %vm607, %v760, %v764
        %v766 = vshrl.u32 %v576, 16
        %v768 = vrot.slane %v766, 4
        %v769 = vor.u32 %v768, %v764
        %v770 = vrot.slane %v769, 4
        %v772 = vshll.u32 %v577, 16
        %v774 = vrot.slane %v772, 5
        %v775 = vsel %vm607, %v770, %v774
        %v777 = vshrl.u32 %v578, 16
        %v779 = vrot.slane %v777, 4
        %v780 = vshll.u32 %v578, 16
        %v782 = vrot.slane %v780, 5
        %v783 = vor.u32 %v779, %v782
        %v784 = vrot.slane %v783, 4
        %v786 = vshll.u32 %v579, 16
        %v788 = vrot.slane %v786, 5
        %v789 = vsel %vm607, %v784, %v788
        %v790 = vshrl.u32 %v579, 16
        %v792 = vrot.slane %v790, 4
        %v793 = vor.u32 %v792, %v788
        %v794 = vrot.slane %v793, 4
        %v796 = vshll.u32 %v580, 16
        %v798 = vrot.slane %v796, 5
        %v799 = vsel %vm607, %v794, %v798
        %v801 = vshrl.u32 %v581, 16
        %v803 = vrot.slane %v801, 4
        %v804 = vshll.u32 %v581, 16
        %v806 = vrot.slane %v804, 5
        %v807 = vor.u32 %v803, %v806
        %v808 = vrot.slane %v807, 4
        %v810 = vshll.u32 %v582, 16
        %v812 = vrot.slane %v810, 5
        %v813 = vsel %vm607, %v808, %v812
        %v814 = vshrl.u32 %v582, 16
        %v816 = vrot.slane %v814, 4
        %v817 = vor.u32 %v816, %v812
        %v818 = vrot.slane %v817, 4
        %v820 = vshll.u32 %v583, 16
        %v822 = vrot.slane %v820, 5
        %v823 = vsel %vm607, %v818, %v822
        %v825 = vshrl.u32 %v584, 16
        %v827 = vrot.slane %v825, 4
        %v828 = vshll.u32 %v584, 16
        %v830 = vrot.slane %v828, 5
        %v831 = vor.u32 %v827, %v830
        %v832 = vrot.slane %v831, 4
        %v834 = vshll.u32 %v585, 16
        %v836 = vrot.slane %v834, 5
        %v837 = vsel %vm607, %v832, %v836
        %v838 = vshrl.u32 %v585, 16
        %v840 = vrot.slane %v838, 4
        %v841 = vor.u32 %v840, %v836
        %v842 = vrot.slane %v841, 4
        %v844 = vshll.u32 %v586, 16
        %v846 = vrot.slane %v844, 5
        %v847 = vsel %vm607, %v842, %v846
        %v849 = vshrl.u32 %v587, 16
        %v851 = vrot.slane %v849, 4
        %v852 = vshll.u32 %v587, 16
        %v854 = vrot.slane %v852, 5
        %v855 = vor.u32 %v851, %v854
        %v856 = vrot.slane %v855, 4
        %v858 = vshll.u32 %v588, 16
        %v860 = vrot.slane %v858, 5
        %v861 = vsel %vm607, %v856, %v860
        %v862 = vshrl.u32 %v588, 16
        %v864 = vrot.slane %v862, 4
        %v865 = vor.u32 %v864, %v860
        %v866 = vrot.slane %v865, 4
        %v868 = vshll.u32 %v589, 16
        %v870 = vrot.slane %v868, 5
        %v871 = vsel %vm607, %v866, %v870
        %v873 = vshrl.u32 %v590, 16
        %v875 = vrot.slane %v873, 4
        %v876 = vshll.u32 %v590, 16
        %v878 = vrot.slane %v876, 5
        %v879 = vor.u32 %v875, %v878
        %v880 = vrot.slane %v879, 4
        %v882 = vshll.u32 %v591, 16
        %v884 = vrot.slane %v882, 5
        %v885 = vsel %vm607, %v880, %v884
        %v886 = vshrl.u32 %v591, 16
        %v888 = vrot.slane %v886, 4
        %v889 = vor.u32 %v888, %v884
        %v890 = vrot.slane %v889, 4
        %v892 = vshll.u32 %v592, 16
        %v894 = vrot.slane %v892, 5
        %v895 = vsel %vm607, %v890, %v894
        %v897 = vshrl.u32 %v593, 16
        %v899 = vrot.slane %v897, 4
        %v900 = vshll.u32 %v593, 16
        %v902 = vrot.slane %v900, 5
        %v903 = vor.u32 %v899, %v902
        %v904 = vrot.slane %v903, 4
        %v906 = vshll.u32 %v594, 16
        %v908 = vrot.slane %v906, 5
        %v909 = vsel %vm607, %v904, %v908
        %v910 = vshrl.u32 %v594, 16
        %v912 = vrot.slane %v910, 4
        %v913 = vor.u32 %v912, %v908
        %v914 = vrot.slane %v913, 4
        %v916 = vshll.u32 %v595, 16
        %v918 = vrot.slane %v916, 5
        %v919 = vsel %vm607, %v914, %v918
        %v921 = vshrl.u32 %v596, 16
        %v923 = vrot.slane %v921, 4
        %v924 = vshll.u32 %v596, 16
        %v926 = vrot.slane %v924, 5
        %v927 = vor.u32 %v923, %v926
        %v928 = vrot.slane %v927, 4
        %v930 = vshll.u32 %v597, 16
        %v932 = vrot.slane %v930, 5
        %v933 = vsel %vm607, %v928, %v932
        %v934 = vshrl.u32 %v597, 16
        %v936 = vrot.slane %v934, 4
        %v937 = vor.u32 %v936, %v932
        %v938 = vrot.slane %v937, 4
        %v940 = vshll.u32 %v598, 16
        %v942 = vrot.slane %v940, 5
        %v943 = vsel %vm607, %v938, %v942
        %v945 = vshrl.u32 %v599, 16
        %v947 = vrot.slane %v945, 4
        %v948 = vshll.u32 %v599, 16
        %v950 = vrot.slane %v948, 5
        %v951 = vor.u32 %v947, %v950
        %v952 = vrot.slane %v951, 4
        %v954 = vshll.u32 %v600, 16
        %v956 = vrot.slane %v954, 5
        %v957 = vsel %vm607, %v952, %v956
        %v958 = vshrl.u32 %v600, 16
        %v960 = vrot.slane %v958, 4
        %v961 = vor.u32 %v960, %v956
        %v962 = vrot.slane %v961, 4
        %v964 = vshll.u32 %v601, 16
        %v966 = vrot.slane %v964, 5
        %v967 = vsel %vm607, %v962, %v966
        %v969 = vshrl.u32 %v602, 16
        %v971 = vrot.slane %v969, 4
        %v972 = vshll.u32 %v602, 16
        %v974 = vrot.slane %v972, 5
        %v975 = vor.u32 %v971, %v974
        %v976 = vrot.slane %v975, 4
        %v978 = vshll.u32 %v603, 16
        %v980 = vrot.slane %v978, 5
        %v981 = vsel %vm607, %v976, %v980
        %v982 = vshrl.u32 %v603, 16
        %v984 = vrot.slane %v982, 4
        %v985 = vor.u32 %v984, %v980
        %v986 = vrot.slane %v985, 4
        %v988 = vshll.u32 %v604, 16
        %v990 = vrot.slane %v988, 5
        %v991 = vsel %vm607, %v986, %v990
        %v992 = vld [vmem:[%s1 + $0x4] sm:$0xf]
        %v993 = vld [vmem:[%s163] sm:$0xff]
        %v994 = vld [vmem:[%s163 + $0x8] sm:$0xff]
        %v995 = vld [vmem:[%s163 + $0x10] sm:$0xff]
        %v996 = vld [vmem:[%s163 + $0x18] sm:$0xff]
        %v997 = vld [vmem:[%s163 + $0x20] sm:$0xff]
        %v998 = vld [vmem:[%s163 + $0x28] sm:$0xff]
        %v999 = vld [vmem:[%s163 + $0x30] sm:$0xff]
        %v1000 = vld [vmem:[%s163 + $0x38] sm:$0xff]
        %v1001 = vld [vmem:[%s163 + $0x40] sm:$0xff]
        %v1002 = vld [vmem:[%s163 + $0x48] sm:$0xff]
        %v1003 = vld [vmem:[%s163 + $0x50] sm:$0xff]
        %v1004 = vld [vmem:[%s163 + $0x58] sm:$0xff]
        %v1005 = vld [vmem:[%s163 + $0x60] sm:$0xff]
        %v1006 = vld [vmem:[%s163 + $0x68] sm:$0xff]
        %v1007 = vld [vmem:[%s163 + $0x70] sm:$0xff]
        %v1008 = vld [vmem:[%s163 + $0x78] sm:$0xff]
        %v1009 = vld [vmem:[%s163 + $0x80] sm:$0xff]
        %v1010 = vld [vmem:[%s163 + $0x88] sm:$0xff]
        %v1011 = vld [vmem:[%s163 + $0x90] sm:$0xff]
        %v1012 = vld [vmem:[%s163 + $0x98] sm:$0xff]
        %v1013 = vld [vmem:[%s163 + $0xa0] sm:$0xff]
        %v1014 = vld [vmem:[%s163 + $0xa8] sm:$0xff]
        %v1015 = vld [vmem:[%s163 + $0xb0] sm:$0xff]
        %v1016 = vld [vmem:[%s163 + $0xb8] sm:$0xff]
        %v1017 = vld [vmem:[%s163 + $0xc0] sm:$0xff]
        %v1018 = vld [vmem:[%s163 + $0xc8] sm:$0xff]
        %v1019 = vld [vmem:[%s163 + $0xd0] sm:$0xff]
        %v1020 = vld [vmem:[%s163 + $0xd8] sm:$0xff]
        %v1021 = vld [vmem:[%s163 + $0xe0] sm:$0xff]
        %v1022 = vld [vmem:[%s163 + $0xe8] sm:$0xff]
        %v1023 = vld [vmem:[%s163 + $0xf0] sm:$0xff]
        %v1024 = vld [vmem:[%s163 + $0xf8] sm:$0xff]
        %v1025 = vunpack.c.l.b16 %v621
        %v1026 = vunpack.c.l.b16 %v631
        %v1027 = vunpack.c.l.b16 %v645
        %v1028 = vunpack.c.l.b16 %v655
        %v1029 = vunpack.c.l.b16 %v669
        %v1030 = vunpack.c.l.b16 %v679
        %v1031 = vunpack.c.l.b16 %v693
        %v1032 = vunpack.c.l.b16 %v703
        %v1033 = vunpack.c.l.b16 %v717
        %v1034 = vunpack.c.l.b16 %v727
        %v1035 = vunpack.c.l.b16 %v741
        %v1036 = vunpack.c.l.b16 %v751
        %v1037 = vunpack.c.l.b16 %v765
        %v1038 = vunpack.c.l.b16 %v775
        %v1039 = vunpack.c.l.b16 %v789
        %v1040 = vunpack.c.l.b16 %v799
        %v1041 = vunpack.c.l.b16 %v813
        %v1042 = vunpack.c.l.b16 %v823
        %v1043 = vunpack.c.l.b16 %v837
        %v1044 = vunpack.c.l.b16 %v847
        %v1045 = vunpack.c.l.b16 %v861
        %v1046 = vunpack.c.l.b16 %v871
        %v1047 = vunpack.c.l.b16 %v885
        %v1048 = vunpack.c.l.b16 %v895
        %v1049 = vunpack.c.l.b16 %v909
        %v1050 = vunpack.c.l.b16 %v919
        %v1051 = vunpack.c.l.b16 %v933
        %v1052 = vunpack.c.l.b16 %v943
        %v1053 = vunpack.c.l.b16 %v957
        %v1054 = vunpack.c.l.b16 %v967
        %v1055 = vunpack.c.l.b16 %v981
        %v1056 = vunpack.c.l.b16 %v991
        %v1057 = vpack.c.b16 %v1026, %v1025
        %v1058 = vpack.c.b16 %v1028, %v1027
        %v1059 = vpack.c.b16 %v1030, %v1029
        %v1060 = vpack.c.b16 %v1032, %v1031
        %v1061 = vpack.c.b16 %v1034, %v1033
        %v1062 = vpack.c.b16 %v1036, %v1035
        %v1063 = vpack.c.b16 %v1038, %v1037
        %v1064 = vpack.c.b16 %v1040, %v1039
        %v1065 = vpack.c.b16 %v1042, %v1041
        %v1066 = vpack.c.b16 %v1044, %v1043
        %v1067 = vpack.c.b16 %v1046, %v1045
        %v1068 = vpack.c.b16 %v1048, %v1047
        %v1069 = vpack.c.b16 %v1050, %v1049
        %v1070 = vpack.c.b16 %v1052, %v1051
        %v1071 = vpack.c.b16 %v1054, %v1053
        %v1072 = vpack.c.b16 %v1056, %v1055
        %v1074 = vsel %vm351, %v1057, 0
        %v1077 = vsel %vm351, %v1058, 0
        %v1080 = vsel %vm351, %v1059, 0
        %v1083 = vsel %vm351, %v1060, 0
        %v1086 = vsel %vm351, %v1061, 0
        %v1089 = vsel %vm351, %v1062, 0
        %v1092 = vsel %vm351, %v1063, 0
        %v1095 = vsel %vm351, %v1064, 0
        %v1098 = vsel %vm351, %v1065, 0
        %v1101 = vsel %vm351, %v1066, 0
        %v1104 = vsel %vm351, %v1067, 0
        %v1107 = vsel %vm351, %v1068, 0
        %v1110 = vsel %vm351, %v1069, 0
        %v1113 = vsel %vm351, %v1070, 0
        %v1116 = vsel %vm351, %v1071, 0
        %v1119 = vsel %vm351, %v1072, 0
        %v1122 = vsel %vm400, %v992, 0
        %1124 = vmatpush.bf16.msra.mxu0 0
        %1125 = vmatpush.bf16.msra.mxu0 0
        %1126 = vmatpush.bf16.msra.mxu0 0
        %1127 = vmatpush.bf16.msra.mxu0 0
        %1128 = vmatpush.bf16.msra.mxu0 0
        %1129 = vmatpush.bf16.msra.mxu0 0
        %1130 = vmatpush.bf16.msra.mxu0 0
        %1131 = vmatpush.bf16.msra.mxu0 %v1122
        %1132 = vmatmul.bf16.gmra.mxu0 %v1074
        %v1133 = vpop.f32.mrf.mxu0
        %v1134 = vadd.f32 0.0, %v1133
        %v1135 = vpop.f32.mrf.mxu0
        %v1136 = vadd.f32 0.0, %v1135
        %1137 = vmatmul.bf16.gmra.mxu0 %v1077
        %v1138 = vpop.f32.mrf.mxu0
        %v1139 = vadd.f32 0.0, %v1138
        %v1140 = vpop.f32.mrf.mxu0
        %v1141 = vadd.f32 0.0, %v1140
        %1142 = vmatmul.bf16.gmra.mxu0 %v1080
        %v1143 = vpop.f32.mrf.mxu0
        %v1144 = vadd.f32 0.0, %v1143
        %v1145 = vpop.f32.mrf.mxu0
        %v1146 = vadd.f32 0.0, %v1145
        %1147 = vmatmul.bf16.gmra.mxu0 %v1083
        %v1148 = vpop.f32.mrf.mxu0
        %v1149 = vadd.f32 0.0, %v1148
        %v1150 = vpop.f32.mrf.mxu0
        %v1151 = vadd.f32 0.0, %v1150
        %1152 = vmatmul.bf16.gmra.mxu0 %v1086
        %v1153 = vpop.f32.mrf.mxu0
        %v1154 = vadd.f32 0.0, %v1153
        %v1155 = vpop.f32.mrf.mxu0
        %v1156 = vadd.f32 0.0, %v1155
        %1157 = vmatmul.bf16.gmra.mxu0 %v1089
        %v1158 = vpop.f32.mrf.mxu0
        %v1159 = vadd.f32 0.0, %v1158
        %v1160 = vpop.f32.mrf.mxu0
        %v1161 = vadd.f32 0.0, %v1160
        %1162 = vmatmul.bf16.gmra.mxu0 %v1092
        %v1163 = vpop.f32.mrf.mxu0
        %v1164 = vadd.f32 0.0, %v1163
        %v1165 = vpop.f32.mrf.mxu0
        %v1166 = vadd.f32 0.0, %v1165
        %1167 = vmatmul.bf16.gmra.mxu0 %v1095
        %v1168 = vpop.f32.mrf.mxu0
        %v1169 = vadd.f32 0.0, %v1168
        %v1170 = vpop.f32.mrf.mxu0
        %v1171 = vadd.f32 0.0, %v1170
        %1172 = vmatmul.bf16.gmra.mxu0 %v1098
        %v1173 = vpop.f32.mrf.mxu0
        %v1174 = vadd.f32 0.0, %v1173
        %v1175 = vpop.f32.mrf.mxu0
        %v1176 = vadd.f32 0.0, %v1175
        %1177 = vmatmul.bf16.gmra.mxu0 %v1101
        %v1178 = vpop.f32.mrf.mxu0
        %v1179 = vadd.f32 0.0, %v1178
        %v1180 = vpop.f32.mrf.mxu0
        %v1181 = vadd.f32 0.0, %v1180
        %1182 = vmatmul.bf16.gmra.mxu0 %v1104
        %v1183 = vpop.f32.mrf.mxu0
        %v1184 = vadd.f32 0.0, %v1183
        %v1185 = vpop.f32.mrf.mxu0
        %v1186 = vadd.f32 0.0, %v1185
        %1187 = vmatmul.bf16.gmra.mxu0 %v1107
        %v1188 = vpop.f32.mrf.mxu0
        %v1189 = vadd.f32 0.0, %v1188
        %v1190 = vpop.f32.mrf.mxu0
        %v1191 = vadd.f32 0.0, %v1190
        %1192 = vmatmul.bf16.gmra.mxu0 %v1110
        %v1193 = vpop.f32.mrf.mxu0
        %v1194 = vadd.f32 0.0, %v1193
        %v1195 = vpop.f32.mrf.mxu0
        %v1196 = vadd.f32 0.0, %v1195
        %1197 = vmatmul.bf16.gmra.mxu0 %v1113
        %v1198 = vpop.f32.mrf.mxu0
        %v1199 = vadd.f32 0.0, %v1198
        %v1200 = vpop.f32.mrf.mxu0
        %v1201 = vadd.f32 0.0, %v1200
        %1202 = vmatmul.bf16.gmra.mxu0 %v1116
        %v1203 = vpop.f32.mrf.mxu0
        %v1204 = vadd.f32 0.0, %v1203
        %v1205 = vpop.f32.mrf.mxu0
        %v1206 = vadd.f32 0.0, %v1205
        %1207 = vmatmul.bf16.gmra.mxu0 %v1119
        %v1208 = vpop.f32.mrf.mxu0
        %v1209 = vadd.f32 0.0, %v1208
        %v1210 = vpop.f32.mrf.mxu0
        %v1211 = vadd.f32 0.0, %v1210
        %1212 = vdwg.mxu0
        %v1213 = vadd.f32 %v993, %v1134
        %v1214 = vadd.f32 %v994, %v1136
        %v1215 = vadd.f32 %v995, %v1139
        %v1216 = vadd.f32 %v996, %v1141
        %v1217 = vadd.f32 %v997, %v1144
        %v1218 = vadd.f32 %v998, %v1146
        %v1219 = vadd.f32 %v999, %v1149
        %v1220 = vadd.f32 %v1000, %v1151
        %v1221 = vadd.f32 %v1001, %v1154
        %v1222 = vadd.f32 %v1002, %v1156
        %v1223 = vadd.f32 %v1003, %v1159
        %v1224 = vadd.f32 %v1004, %v1161
        %v1225 = vadd.f32 %v1005, %v1164
        %v1226 = vadd.f32 %v1006, %v1166
        %v1227 = vadd.f32 %v1007, %v1169
        %v1228 = vadd.f32 %v1008, %v1171
        %v1229 = vadd.f32 %v1009, %v1174
        %v1230 = vadd.f32 %v1010, %v1176
        %v1231 = vadd.f32 %v1011, %v1179
        %v1232 = vadd.f32 %v1012, %v1181
        %v1233 = vadd.f32 %v1013, %v1184
        %v1234 = vadd.f32 %v1014, %v1186
        %v1235 = vadd.f32 %v1015, %v1189
        %v1236 = vadd.f32 %v1016, %v1191
        %v1237 = vadd.f32 %v1017, %v1194
        %v1238 = vadd.f32 %v1018, %v1196
        %v1239 = vadd.f32 %v1019, %v1199
        %v1240 = vadd.f32 %v1020, %v1201
        %v1241 = vadd.f32 %v1021, %v1204
        %v1242 = vadd.f32 %v1022, %v1206
        %v1243 = vadd.f32 %v1023, %v1209
        %v1244 = vadd.f32 %v1024, %v1211
        %1245 = vst [vmem:[%s163] sm:$0xff] %v1213
        %1246 = vst [vmem:[%s163 + $0x8] sm:$0xff] %v1214
        %1247 = vst [vmem:[%s163 + $0x10] sm:$0xff] %v1215
        %1248 = vst [vmem:[%s163 + $0x18] sm:$0xff] %v1216
        %1249 = vst [vmem:[%s163 + $0x20] sm:$0xff] %v1217
        %1250 = vst [vmem:[%s163 + $0x28] sm:$0xff] %v1218
        %1251 = vst [vmem:[%s163 + $0x30] sm:$0xff] %v1219
        %1252 = vst [vmem:[%s163 + $0x38] sm:$0xff] %v1220
        %1253 = vst [vmem:[%s163 + $0x40] sm:$0xff] %v1221
        %1254 = vst [vmem:[%s163 + $0x48] sm:$0xff] %v1222
        %1255 = vst [vmem:[%s163 + $0x50] sm:$0xff] %v1223
        %1256 = vst [vmem:[%s163 + $0x58] sm:$0xff] %v1224
        %1257 = vst [vmem:[%s163 + $0x60] sm:$0xff] %v1225
        %1258 = vst [vmem:[%s163 + $0x68] sm:$0xff] %v1226
        %1259 = vst [vmem:[%s163 + $0x70] sm:$0xff] %v1227
        %1260 = vst [vmem:[%s163 + $0x78] sm:$0xff] %v1228
        %1261 = vst [vmem:[%s163 + $0x80] sm:$0xff] %v1229
        %1262 = vst [vmem:[%s163 + $0x88] sm:$0xff] %v1230
        %1263 = vst [vmem:[%s163 + $0x90] sm:$0xff] %v1231
        %1264 = vst [vmem:[%s163 + $0x98] sm:$0xff] %v1232
        %1265 = vst [vmem:[%s163 + $0xa0] sm:$0xff] %v1233
        %1266 = vst [vmem:[%s163 + $0xa8] sm:$0xff] %v1234
        %1267 = vst [vmem:[%s163 + $0xb0] sm:$0xff] %v1235
        %1268 = vst [vmem:[%s163 + $0xb8] sm:$0xff] %v1236
        %1269 = vst [vmem:[%s163 + $0xc0] sm:$0xff] %v1237
        %1270 = vst [vmem:[%s163 + $0xc8] sm:$0xff] %v1238
        %1271 = vst [vmem:[%s163 + $0xd0] sm:$0xff] %v1239
        %1272 = vst [vmem:[%s163 + $0xd8] sm:$0xff] %v1240
        %1273 = vst [vmem:[%s163 + $0xe0] sm:$0xff] %v1241
        %1274 = vst [vmem:[%s163 + $0xe8] sm:$0xff] %v1242
        %1275 = vst [vmem:[%s163 + $0xf0] sm:$0xff] %v1243
        %1276 = vst [vmem:[%s163 + $0xf8] sm:$0xff] %v1244
        %v1277 = vld [vmem:[%s168] sm:$0xe]
        %v1278 = vld [vmem:[%s168 + $0x4] sm:$0xf]
        %v1279 = vld [vmem:[%s168 + $0x8] sm:$0x1]
        %v1280 = vld [vmem:[%s168 + $0xc] sm:$0xe]
        %v1281 = vld [vmem:[%s168 + $0x10] sm:$0xf]
        %v1282 = vld [vmem:[%s168 + $0x14] sm:$0x1]
        %v1283 = vld [vmem:[%s168 + $0x18] sm:$0xe]
        %v1284 = vld [vmem:[%s168 + $0x1c] sm:$0xf]
        %v1285 = vld [vmem:[%s168 + $0x20] sm:$0x1]
        %v1286 = vld [vmem:[%s168 + $0x24] sm:$0xe]
        %v1287 = vld [vmem:[%s168 + $0x28] sm:$0xf]
        %v1288 = vld [vmem:[%s168 + $0x2c] sm:$0x1]
        %v1289 = vld [vmem:[%s168 + $0x30] sm:$0xe]
        %v1290 = vld [vmem:[%s168 + $0x34] sm:$0xf]
        %v1291 = vld [vmem:[%s168 + $0x38] sm:$0x1]
        %v1292 = vld [vmem:[%s168 + $0x3c] sm:$0xe]
        %v1293 = vld [vmem:[%s168 + $0x40] sm:$0xf]
        %v1294 = vld [vmem:[%s168 + $0x44] sm:$0x1]
        %v1295 = vld [vmem:[%s168 + $0x48] sm:$0xe]
        %v1296 = vld [vmem:[%s168 + $0x4c] sm:$0xf]
        %v1297 = vld [vmem:[%s168 + $0x50] sm:$0x1]
        %v1298 = vld [vmem:[%s168 + $0x54] sm:$0xe]
        %v1299 = vld [vmem:[%s168 + $0x58] sm:$0xf]
        %v1300 = vld [vmem:[%s168 + $0x5c] sm:$0x1]
        %v1301 = vld [vmem:[%s168 + $0x60] sm:$0xe]
        %v1302 = vld [vmem:[%s168 + $0x64] sm:$0xf]
        %v1303 = vld [vmem:[%s168 + $0x68] sm:$0x1]
        %v1304 = vld [vmem:[%s168 + $0x6c] sm:$0xe]
        %v1305 = vld [vmem:[%s168 + $0x70] sm:$0xf]
        %v1306 = vld [vmem:[%s168 + $0x74] sm:$0x1]
        %v1307 = vld [vmem:[%s168 + $0x78] sm:$0xe]
        %v1308 = vld [vmem:[%s168 + $0x7c] sm:$0xf]
        %v1309 = vld [vmem:[%s168 + $0x80] sm:$0x1]
        %v1310 = vld [vmem:[%s168 + $0x84] sm:$0xe]
        %v1311 = vld [vmem:[%s168 + $0x88] sm:$0xf]
        %v1312 = vld [vmem:[%s168 + $0x8c] sm:$0x1]
        %v1313 = vld [vmem:[%s168 + $0x90] sm:$0xe]
        %v1314 = vld [vmem:[%s168 + $0x94] sm:$0xf]
        %v1315 = vld [vmem:[%s168 + $0x98] sm:$0x1]
        %v1316 = vld [vmem:[%s168 + $0x9c] sm:$0xe]
        %v1317 = vld [vmem:[%s168 + $0xa0] sm:$0xf]
        %v1318 = vld [vmem:[%s168 + $0xa4] sm:$0x1]
        %v1319 = vld [vmem:[%s168 + $0xa8] sm:$0xe]
        %v1320 = vld [vmem:[%s168 + $0xac] sm:$0xf]
        %v1321 = vld [vmem:[%s168 + $0xb0] sm:$0x1]
        %v1322 = vld [vmem:[%s168 + $0xb4] sm:$0xe]
        %v1323 = vld [vmem:[%s168 + $0xb8] sm:$0xf]
        %v1324 = vld [vmem:[%s168 + $0xbc] sm:$0x1]
        %vm1373 = vcmask 1042432
        %vm1374 = vcmask 1046532
        %vm1375 = vmor %vm1373, %vm1374
        %v1376 = vrot.slane %v1277, 5
        %v1377 = vrot.slane %v1376, 4
        %v1378 = vrot.slane %v1278, 5
        %v1379 = vsel %vm1375, %v1377, %v1378
        %v1380 = vrot.slane %v1378, 4
        %v1381 = vrot.slane %v1279, 5
        %v1382 = vsel %vm1375, %v1380, %v1381
        %v1383 = vrot.slane %v1280, 5
        %v1384 = vrot.slane %v1383, 4
        %v1385 = vrot.slane %v1281, 5
        %v1386 = vsel %vm1375, %v1384, %v1385
        %v1387 = vrot.slane %v1385, 4
        %v1388 = vrot.slane %v1282, 5
        %v1389 = vsel %vm1375, %v1387, %v1388
        %v1390 = vrot.slane %v1283, 5
        %v1391 = vrot.slane %v1390, 4
        %v1392 = vrot.slane %v1284, 5
        %v1393 = vsel %vm1375, %v1391, %v1392
        %v1394 = vrot.slane %v1392, 4
        %v1395 = vrot.slane %v1285, 5
        %v1396 = vsel %vm1375, %v1394, %v1395
        %v1397 = vrot.slane %v1286, 5
        %v1398 = vrot.slane %v1397, 4
        %v1399 = vrot.slane %v1287, 5
        %v1400 = vsel %vm1375, %v1398, %v1399
        %v1401 = vrot.slane %v1399, 4
        %v1402 = vrot.slane %v1288, 5
        %v1403 = vsel %vm1375, %v1401, %v1402
        %v1404 = vrot.slane %v1289, 5
        %v1405 = vrot.slane %v1404, 4
        %v1406 = vrot.slane %v1290, 5
        %v1407 = vsel %vm1375, %v1405, %v1406
        %v1408 = vrot.slane %v1406, 4
        %v1409 = vrot.slane %v1291, 5
        %v1410 = vsel %vm1375, %v1408, %v1409
        %v1411 = vrot.slane %v1292, 5
        %v1412 = vrot.slane %v1411, 4
        %v1413 = vrot.slane %v1293, 5
        %v1414 = vsel %vm1375, %v1412, %v1413
        %v1415 = vrot.slane %v1413, 4
        %v1416 = vrot.slane %v1294, 5
        %v1417 = vsel %vm1375, %v1415, %v1416
        %v1418 = vrot.slane %v1295, 5
        %v1419 = vrot.slane %v1418, 4
        %v1420 = vrot.slane %v1296, 5
        %v1421 = vsel %vm1375, %v1419, %v1420
        %v1422 = vrot.slane %v1420, 4
        %v1423 = vrot.slane %v1297, 5
        %v1424 = vsel %vm1375, %v1422, %v1423
        %v1425 = vrot.slane %v1298, 5
        %v1426 = vrot.slane %v1425, 4
        %v1427 = vrot.slane %v1299, 5
        %v1428 = vsel %vm1375, %v1426, %v1427
        %v1429 = vrot.slane %v1427, 4
        %v1430 = vrot.slane %v1300, 5
        %v1431 = vsel %vm1375, %v1429, %v1430
        %v1432 = vrot.slane %v1301, 5
        %v1433 = vrot.slane %v1432, 4
        %v1434 = vrot.slane %v1302, 5
        %v1435 = vsel %vm1375, %v1433, %v1434
        %v1436 = vrot.slane %v1434, 4
        %v1437 = vrot.slane %v1303, 5
        %v1438 = vsel %vm1375, %v1436, %v1437
        %v1439 = vrot.slane %v1304, 5
        %v1440 = vrot.slane %v1439, 4
        %v1441 = vrot.slane %v1305, 5
        %v1442 = vsel %vm1375, %v1440, %v1441
        %v1443 = vrot.slane %v1441, 4
        %v1444 = vrot.slane %v1306, 5
        %v1445 = vsel %vm1375, %v1443, %v1444
        %v1446 = vrot.slane %v1307, 5
        %v1447 = vrot.slane %v1446, 4
        %v1448 = vrot.slane %v1308, 5
        %v1449 = vsel %vm1375, %v1447, %v1448
        %v1450 = vrot.slane %v1448, 4
        %v1451 = vrot.slane %v1309, 5
        %v1452 = vsel %vm1375, %v1450, %v1451
        %v1453 = vrot.slane %v1310, 5
        %v1454 = vrot.slane %v1453, 4
        %v1455 = vrot.slane %v1311, 5
        %v1456 = vsel %vm1375, %v1454, %v1455
        %v1457 = vrot.slane %v1455, 4
        %v1458 = vrot.slane %v1312, 5
        %v1459 = vsel %vm1375, %v1457, %v1458
        %v1460 = vrot.slane %v1313, 5
        %v1461 = vrot.slane %v1460, 4
        %v1462 = vrot.slane %v1314, 5
        %v1463 = vsel %vm1375, %v1461, %v1462
        %v1464 = vrot.slane %v1462, 4
        %v1465 = vrot.slane %v1315, 5
        %v1466 = vsel %vm1375, %v1464, %v1465
        %v1467 = vrot.slane %v1316, 5
        %v1468 = vrot.slane %v1467, 4
        %v1469 = vrot.slane %v1317, 5
        %v1470 = vsel %vm1375, %v1468, %v1469
        %v1471 = vrot.slane %v1469, 4
        %v1472 = vrot.slane %v1318, 5
        %v1473 = vsel %vm1375, %v1471, %v1472
        %v1474 = vrot.slane %v1319, 5
        %v1475 = vrot.slane %v1474, 4
        %v1476 = vrot.slane %v1320, 5
        %v1477 = vsel %vm1375, %v1475, %v1476
        %v1478 = vrot.slane %v1476, 4
        %v1479 = vrot.slane %v1321, 5
        %v1480 = vsel %vm1375, %v1478, %v1479
        %v1481 = vrot.slane %v1322, 5
        %v1482 = vrot.slane %v1481, 4
        %v1483 = vrot.slane %v1323, 5
        %v1484 = vsel %vm1375, %v1482, %v1483
        %v1485 = vrot.slane %v1483, 4
        %v1486 = vrot.slane %v1324, 5
        %v1487 = vsel %vm1375, %v1485, %v1486
        %v1488 = vld [vmem:[%s1 + $0x8] sm:$0xf]
        %v1489 = vld [vmem:[%s163] sm:$0xff]
        %v1490 = vld [vmem:[%s163 + $0x8] sm:$0xff]
        %v1491 = vld [vmem:[%s163 + $0x10] sm:$0xff]
        %v1492 = vld [vmem:[%s163 + $0x18] sm:$0xff]
        %v1493 = vld [vmem:[%s163 + $0x20] sm:$0xff]
        %v1494 = vld [vmem:[%s163 + $0x28] sm:$0xff]
        %v1495 = vld [vmem:[%s163 + $0x30] sm:$0xff]
        %v1496 = vld [vmem:[%s163 + $0x38] sm:$0xff]
        %v1497 = vld [vmem:[%s163 + $0x40] sm:$0xff]
        %v1498 = vld [vmem:[%s163 + $0x48] sm:$0xff]
        %v1499 = vld [vmem:[%s163 + $0x50] sm:$0xff]
        %v1500 = vld [vmem:[%s163 + $0x58] sm:$0xff]
        %v1501 = vld [vmem:[%s163 + $0x60] sm:$0xff]
        %v1502 = vld [vmem:[%s163 + $0x68] sm:$0xff]
        %v1503 = vld [vmem:[%s163 + $0x70] sm:$0xff]
        %v1504 = vld [vmem:[%s163 + $0x78] sm:$0xff]
        %v1505 = vld [vmem:[%s163 + $0x80] sm:$0xff]
        %v1506 = vld [vmem:[%s163 + $0x88] sm:$0xff]
        %v1507 = vld [vmem:[%s163 + $0x90] sm:$0xff]
        %v1508 = vld [vmem:[%s163 + $0x98] sm:$0xff]
        %v1509 = vld [vmem:[%s163 + $0xa0] sm:$0xff]
        %v1510 = vld [vmem:[%s163 + $0xa8] sm:$0xff]
        %v1511 = vld [vmem:[%s163 + $0xb0] sm:$0xff]
        %v1512 = vld [vmem:[%s163 + $0xb8] sm:$0xff]
        %v1513 = vld [vmem:[%s163 + $0xc0] sm:$0xff]
        %v1514 = vld [vmem:[%s163 + $0xc8] sm:$0xff]
        %v1515 = vld [vmem:[%s163 + $0xd0] sm:$0xff]
        %v1516 = vld [vmem:[%s163 + $0xd8] sm:$0xff]
        %v1517 = vld [vmem:[%s163 + $0xe0] sm:$0xff]
        %v1518 = vld [vmem:[%s163 + $0xe8] sm:$0xff]
        %v1519 = vld [vmem:[%s163 + $0xf0] sm:$0xff]
        %v1520 = vld [vmem:[%s163 + $0xf8] sm:$0xff]
        %v1521 = vunpack.c.l.b16 %v1379
        %v1522 = vunpack.c.l.b16 %v1382
        %v1523 = vunpack.c.l.b16 %v1386
        %v1524 = vunpack.c.l.b16 %v1389
        %v1525 = vunpack.c.l.b16 %v1393
        %v1526 = vunpack.c.l.b16 %v1396
        %v1527 = vunpack.c.l.b16 %v1400
        %v1528 = vunpack.c.l.b16 %v1403
        %v1529 = vunpack.c.l.b16 %v1407
        %v1530 = vunpack.c.l.b16 %v1410
        %v1531 = vunpack.c.l.b16 %v1414
        %v1532 = vunpack.c.l.b16 %v1417
        %v1533 = vunpack.c.l.b16 %v1421
        %v1534 = vunpack.c.l.b16 %v1424
        %v1535 = vunpack.c.l.b16 %v1428
        %v1536 = vunpack.c.l.b16 %v1431
        %v1537 = vunpack.c.l.b16 %v1435
        %v1538 = vunpack.c.l.b16 %v1438
        %v1539 = vunpack.c.l.b16 %v1442
        %v1540 = vunpack.c.l.b16 %v1445
        %v1541 = vunpack.c.l.b16 %v1449
        %v1542 = vunpack.c.l.b16 %v1452
        %v1543 = vunpack.c.l.b16 %v1456
        %v1544 = vunpack.c.l.b16 %v1459
        %v1545 = vunpack.c.l.b16 %v1463
        %v1546 = vunpack.c.l.b16 %v1466
        %v1547 = vunpack.c.l.b16 %v1470
        %v1548 = vunpack.c.l.b16 %v1473
        %v1549 = vunpack.c.l.b16 %v1477
        %v1550 = vunpack.c.l.b16 %v1480
        %v1551 = vunpack.c.l.b16 %v1484
        %v1552 = vunpack.c.l.b16 %v1487
        %v1553 = vpack.c.b16 %v1522, %v1521
        %v1554 = vpack.c.b16 %v1524, %v1523
        %v1555 = vpack.c.b16 %v1526, %v1525
        %v1556 = vpack.c.b16 %v1528, %v1527
        %v1557 = vpack.c.b16 %v1530, %v1529
        %v1558 = vpack.c.b16 %v1532, %v1531
        %v1559 = vpack.c.b16 %v1534, %v1533
        %v1560 = vpack.c.b16 %v1536, %v1535
        %v1561 = vpack.c.b16 %v1538, %v1537
        %v1562 = vpack.c.b16 %v1540, %v1539
        %v1563 = vpack.c.b16 %v1542, %v1541
        %v1564 = vpack.c.b16 %v1544, %v1543
        %v1565 = vpack.c.b16 %v1546, %v1545
        %v1566 = vpack.c.b16 %v1548, %v1547
        %v1567 = vpack.c.b16 %v1550, %v1549
        %v1568 = vpack.c.b16 %v1552, %v1551
        %v1570 = vsel %vm351, %v1553, 0
        %v1573 = vsel %vm351, %v1554, 0
        %v1576 = vsel %vm351, %v1555, 0
        %v1579 = vsel %vm351, %v1556, 0
        %v1582 = vsel %vm351, %v1557, 0
        %v1585 = vsel %vm351, %v1558, 0
        %v1588 = vsel %vm351, %v1559, 0
        %v1591 = vsel %vm351, %v1560, 0
        %v1594 = vsel %vm351, %v1561, 0
        %v1597 = vsel %vm351, %v1562, 0
        %v1600 = vsel %vm351, %v1563, 0
        %v1603 = vsel %vm351, %v1564, 0
        %v1606 = vsel %vm351, %v1565, 0
        %v1609 = vsel %vm351, %v1566, 0
        %v1612 = vsel %vm351, %v1567, 0
        %v1615 = vsel %vm351, %v1568, 0
        %v1618 = vsel %vm400, %v1488, 0
        %1620 = vmatpush.bf16.msra.mxu0 0
        %1621 = vmatpush.bf16.msra.mxu0 0
        %1622 = vmatpush.bf16.msra.mxu0 0
        %1623 = vmatpush.bf16.msra.mxu0 0
        %1624 = vmatpush.bf16.msra.mxu0 0
        %1625 = vmatpush.bf16.msra.mxu0 0
        %1626 = vmatpush.bf16.msra.mxu0 0
        %1627 = vmatpush.bf16.msra.mxu0 %v1618
        %1628 = vmatmul.bf16.gmra.mxu0 %v1570
        %v1629 = vpop.f32.mrf.mxu0
        %v1630 = vadd.f32 0.0, %v1629
        %v1631 = vpop.f32.mrf.mxu0
        %v1632 = vadd.f32 0.0, %v1631
        %1633 = vmatmul.bf16.gmra.mxu0 %v1573
        %v1634 = vpop.f32.mrf.mxu0
        %v1635 = vadd.f32 0.0, %v1634
        %v1636 = vpop.f32.mrf.mxu0
        %v1637 = vadd.f32 0.0, %v1636
        %1638 = vmatmul.bf16.gmra.mxu0 %v1576
        %v1639 = vpop.f32.mrf.mxu0
        %v1640 = vadd.f32 0.0, %v1639
        %v1641 = vpop.f32.mrf.mxu0
        %v1642 = vadd.f32 0.0, %v1641
        %1643 = vmatmul.bf16.gmra.mxu0 %v1579
        %v1644 = vpop.f32.mrf.mxu0
        %v1645 = vadd.f32 0.0, %v1644
        %v1646 = vpop.f32.mrf.mxu0
        %v1647 = vadd.f32 0.0, %v1646
        %1648 = vmatmul.bf16.gmra.mxu0 %v1582
        %v1649 = vpop.f32.mrf.mxu0
        %v1650 = vadd.f32 0.0, %v1649
        %v1651 = vpop.f32.mrf.mxu0
        %v1652 = vadd.f32 0.0, %v1651
        %1653 = vmatmul.bf16.gmra.mxu0 %v1585
        %v1654 = vpop.f32.mrf.mxu0
        %v1655 = vadd.f32 0.0, %v1654
        %v1656 = vpop.f32.mrf.mxu0
        %v1657 = vadd.f32 0.0, %v1656
        %1658 = vmatmul.bf16.gmra.mxu0 %v1588
        %v1659 = vpop.f32.mrf.mxu0
        %v1660 = vadd.f32 0.0, %v1659
        %v1661 = vpop.f32.mrf.mxu0
        %v1662 = vadd.f32 0.0, %v1661
        %1663 = vmatmul.bf16.gmra.mxu0 %v1591
        %v1664 = vpop.f32.mrf.mxu0
        %v1665 = vadd.f32 0.0, %v1664
        %v1666 = vpop.f32.mrf.mxu0
        %v1667 = vadd.f32 0.0, %v1666
        %1668 = vmatmul.bf16.gmra.mxu0 %v1594
        %v1669 = vpop.f32.mrf.mxu0
        %v1670 = vadd.f32 0.0, %v1669
        %v1671 = vpop.f32.mrf.mxu0
        %v1672 = vadd.f32 0.0, %v1671
        %1673 = vmatmul.bf16.gmra.mxu0 %v1597
        %v1674 = vpop.f32.mrf.mxu0
        %v1675 = vadd.f32 0.0, %v1674
        %v1676 = vpop.f32.mrf.mxu0
        %v1677 = vadd.f32 0.0, %v1676
        %1678 = vmatmul.bf16.gmra.mxu0 %v1600
        %v1679 = vpop.f32.mrf.mxu0
        %v1680 = vadd.f32 0.0, %v1679
        %v1681 = vpop.f32.mrf.mxu0
        %v1682 = vadd.f32 0.0, %v1681
        %1683 = vmatmul.bf16.gmra.mxu0 %v1603
        %v1684 = vpop.f32.mrf.mxu0
        %v1685 = vadd.f32 0.0, %v1684
        %v1686 = vpop.f32.mrf.mxu0
        %v1687 = vadd.f32 0.0, %v1686
        %1688 = vmatmul.bf16.gmra.mxu0 %v1606
        %v1689 = vpop.f32.mrf.mxu0
        %v1690 = vadd.f32 0.0, %v1689
        %v1691 = vpop.f32.mrf.mxu0
        %v1692 = vadd.f32 0.0, %v1691
        %1693 = vmatmul.bf16.gmra.mxu0 %v1609
        %v1694 = vpop.f32.mrf.mxu0
        %v1695 = vadd.f32 0.0, %v1694
        %v1696 = vpop.f32.mrf.mxu0
        %v1697 = vadd.f32 0.0, %v1696
        %1698 = vmatmul.bf16.gmra.mxu0 %v1612
        %v1699 = vpop.f32.mrf.mxu0
        %v1700 = vadd.f32 0.0, %v1699
        %v1701 = vpop.f32.mrf.mxu0
        %v1702 = vadd.f32 0.0, %v1701
        %1703 = vmatmul.bf16.gmra.mxu0 %v1615
        %v1704 = vpop.f32.mrf.mxu0
        %v1705 = vadd.f32 0.0, %v1704
        %v1706 = vpop.f32.mrf.mxu0
        %v1707 = vadd.f32 0.0, %v1706
        %1708 = vdwg.mxu0
        %v1709 = vadd.f32 %v1489, %v1630
        %v1710 = vadd.f32 %v1490, %v1632
        %v1711 = vadd.f32 %v1491, %v1635
        %v1712 = vadd.f32 %v1492, %v1637
        %v1713 = vadd.f32 %v1493, %v1640
        %v1714 = vadd.f32 %v1494, %v1642
        %v1715 = vadd.f32 %v1495, %v1645
        %v1716 = vadd.f32 %v1496, %v1647
        %v1717 = vadd.f32 %v1497, %v1650
        %v1718 = vadd.f32 %v1498, %v1652
        %v1719 = vadd.f32 %v1499, %v1655
        %v1720 = vadd.f32 %v1500, %v1657
        %v1721 = vadd.f32 %v1501, %v1660
        %v1722 = vadd.f32 %v1502, %v1662
        %v1723 = vadd.f32 %v1503, %v1665
        %v1724 = vadd.f32 %v1504, %v1667
        %v1725 = vadd.f32 %v1505, %v1670
        %v1726 = vadd.f32 %v1506, %v1672
        %v1727 = vadd.f32 %v1507, %v1675
        %v1728 = vadd.f32 %v1508, %v1677
        %v1729 = vadd.f32 %v1509, %v1680
        %v1730 = vadd.f32 %v1510, %v1682
        %v1731 = vadd.f32 %v1511, %v1685
        %v1732 = vadd.f32 %v1512, %v1687
        %v1733 = vadd.f32 %v1513, %v1690
        %v1734 = vadd.f32 %v1514, %v1692
        %v1735 = vadd.f32 %v1515, %v1695
        %v1736 = vadd.f32 %v1516, %v1697
        %v1737 = vadd.f32 %v1517, %v1700
        %v1738 = vadd.f32 %v1518, %v1702
        %v1739 = vadd.f32 %v1519, %v1705
        %v1740 = vadd.f32 %v1520, %v1707
        %1741 = vst [vmem:[%s163] sm:$0xff] %v1709
        %1742 = vst [vmem:[%s163 + $0x8] sm:$0xff] %v1710
        %1743 = vst [vmem:[%s163 + $0x10] sm:$0xff] %v1711
        %1744 = vst [vmem:[%s163 + $0x18] sm:$0xff] %v1712
        %1745 = vst [vmem:[%s163 + $0x20] sm:$0xff] %v1713
        %1746 = vst [vmem:[%s163 + $0x28] sm:$0xff] %v1714
        %1747 = vst [vmem:[%s163 + $0x30] sm:$0xff] %v1715
        %1748 = vst [vmem:[%s163 + $0x38] sm:$0xff] %v1716
        %1749 = vst [vmem:[%s163 + $0x40] sm:$0xff] %v1717
        %1750 = vst [vmem:[%s163 + $0x48] sm:$0xff] %v1718
        %1751 = vst [vmem:[%s163 + $0x50] sm:$0xff] %v1719
        %1752 = vst [vmem:[%s163 + $0x58] sm:$0xff] %v1720
        %1753 = vst [vmem:[%s163 + $0x60] sm:$0xff] %v1721
        %1754 = vst [vmem:[%s163 + $0x68] sm:$0xff] %v1722
        %1755 = vst [vmem:[%s163 + $0x70] sm:$0xff] %v1723
        %1756 = vst [vmem:[%s163 + $0x78] sm:$0xff] %v1724
        %1757 = vst [vmem:[%s163 + $0x80] sm:$0xff] %v1725
        %1758 = vst [vmem:[%s163 + $0x88] sm:$0xff] %v1726
        %1759 = vst [vmem:[%s163 + $0x90] sm:$0xff] %v1727
        %1760 = vst [vmem:[%s163 + $0x98] sm:$0xff] %v1728
        %1761 = vst [vmem:[%s163 + $0xa0] sm:$0xff] %v1729
        %1762 = vst [vmem:[%s163 + $0xa8] sm:$0xff] %v1730
        %1763 = vst [vmem:[%s163 + $0xb0] sm:$0xff] %v1731
        %1764 = vst [vmem:[%s163 + $0xb8] sm:$0xff] %v1732
        %1765 = vst [vmem:[%s163 + $0xc0] sm:$0xff] %v1733
        %1766 = vst [vmem:[%s163 + $0xc8] sm:$0xff] %v1734
        %1767 = vst [vmem:[%s163 + $0xd0] sm:$0xff] %v1735
        %1768 = vst [vmem:[%s163 + $0xd8] sm:$0xff] %v1736
        %1769 = vst [vmem:[%s163 + $0xe0] sm:$0xff] %v1737
        %1770 = vst [vmem:[%s163 + $0xe8] sm:$0xff] %v1738
        %1771 = vst [vmem:[%s163 + $0xf0] sm:$0xff] %v1739
        %1772 = vst [vmem:[%s163 + $0xf8] sm:$0xff] %v1740
        %s1773 = scalar_lea.vmem %s168, 12
        %v1774 = vld [vmem:[%s1773] sm:$0xf]
        %v1775 = vld [vmem:[%s1773 + $0x4] sm:$0xf]
        %v1776 = vld [vmem:[%s1773 + $0xc] sm:$0xf]
        %v1777 = vld [vmem:[%s1773 + $0x10] sm:$0xf]
        %v1778 = vld [vmem:[%s1773 + $0x18] sm:$0xf]
        %v1779 = vld [vmem:[%s1773 + $0x1c] sm:$0xf]
        %v1780 = vld [vmem:[%s1773 + $0x24] sm:$0xf]
        %v1781 = vld [vmem:[%s1773 + $0x28] sm:$0xf]
        %v1782 = vld [vmem:[%s1773 + $0x30] sm:$0xf]
        %v1783 = vld [vmem:[%s1773 + $0x34] sm:$0xf]
        %v1784 = vld [vmem:[%s1773 + $0x3c] sm:$0xf]
        %v1785 = vld [vmem:[%s1773 + $0x40] sm:$0xf]
        %v1786 = vld [vmem:[%s1773 + $0x48] sm:$0xf]
        %v1787 = vld [vmem:[%s1773 + $0x4c] sm:$0xf]
        %v1788 = vld [vmem:[%s1773 + $0x54] sm:$0xf]
        %v1789 = vld [vmem:[%s1773 + $0x58] sm:$0xf]
        %v1790 = vld [vmem:[%s1773 + $0x60] sm:$0xf]
        %v1791 = vld [vmem:[%s1773 + $0x64] sm:$0xf]
        %v1792 = vld [vmem:[%s1773 + $0x6c] sm:$0xf]
        %v1793 = vld [vmem:[%s1773 + $0x70] sm:$0xf]
        %v1794 = vld [vmem:[%s1773 + $0x78] sm:$0xf]
        %v1795 = vld [vmem:[%s1773 + $0x7c] sm:$0xf]
        %v1796 = vld [vmem:[%s1773 + $0x84] sm:$0xf]
        %v1797 = vld [vmem:[%s1773 + $0x88] sm:$0xf]
        %v1798 = vld [vmem:[%s1773 + $0x90] sm:$0xf]
        %v1799 = vld [vmem:[%s1773 + $0x94] sm:$0xf]
        %v1800 = vld [vmem:[%s1773 + $0x9c] sm:$0xf]
        %v1801 = vld [vmem:[%s1773 + $0xa0] sm:$0xf]
        %v1802 = vld [vmem:[%s1773 + $0xa8] sm:$0xf]
        %v1803 = vld [vmem:[%s1773 + $0xac] sm:$0xf]
        %v1804 = vld [vmem:[%s1773 + $0xb4] sm:$0xf]
        %v1805 = vld [vmem:[%s1773 + $0xb8] sm:$0xf]
        %v1806 = vld [vmem:[%s1 + $0xc] sm:$0xf]
        %v1807 = vld [vmem:[%s163] sm:$0xff]
        %v1808 = vld [vmem:[%s163 + $0x8] sm:$0xff]
        %v1809 = vld [vmem:[%s163 + $0x10] sm:$0xff]
        %v1810 = vld [vmem:[%s163 + $0x18] sm:$0xff]
        %v1811 = vld [vmem:[%s163 + $0x20] sm:$0xff]
        %v1812 = vld [vmem:[%s163 + $0x28] sm:$0xff]
        %v1813 = vld [vmem:[%s163 + $0x30] sm:$0xff]
        %v1814 = vld [vmem:[%s163 + $0x38] sm:$0xff]
        %v1815 = vld [vmem:[%s163 + $0x40] sm:$0xff]
        %v1816 = vld [vmem:[%s163 + $0x48] sm:$0xff]
        %v1817 = vld [vmem:[%s163 + $0x50] sm:$0xff]
        %v1818 = vld [vmem:[%s163 + $0x58] sm:$0xff]
        %v1819 = vld [vmem:[%s163 + $0x60] sm:$0xff]
        %v1820 = vld [vmem:[%s163 + $0x68] sm:$0xff]
        %v1821 = vld [vmem:[%s163 + $0x70] sm:$0xff]
        %v1822 = vld [vmem:[%s163 + $0x78] sm:$0xff]
        %v1823 = vld [vmem:[%s163 + $0x80] sm:$0xff]
        %v1824 = vld [vmem:[%s163 + $0x88] sm:$0xff]
        %v1825 = vld [vmem:[%s163 + $0x90] sm:$0xff]
        %v1826 = vld [vmem:[%s163 + $0x98] sm:$0xff]
        %v1827 = vld [vmem:[%s163 + $0xa0] sm:$0xff]
        %v1828 = vld [vmem:[%s163 + $0xa8] sm:$0xff]
        %v1829 = vld [vmem:[%s163 + $0xb0] sm:$0xff]
        %v1830 = vld [vmem:[%s163 + $0xb8] sm:$0xff]
        %v1831 = vld [vmem:[%s163 + $0xc0] sm:$0xff]
        %v1832 = vld [vmem:[%s163 + $0xc8] sm:$0xff]
        %v1833 = vld [vmem:[%s163 + $0xd0] sm:$0xff]
        %v1834 = vld [vmem:[%s163 + $0xd8] sm:$0xff]
        %v1835 = vld [vmem:[%s163 + $0xe0] sm:$0xff]
        %v1836 = vld [vmem:[%s163 + $0xe8] sm:$0xff]
        %v1837 = vld [vmem:[%s163 + $0xf0] sm:$0xff]
        %v1838 = vld [vmem:[%s163 + $0xf8] sm:$0xff]
        %v1871 = vunpack.c.l.b16 %v1774
        %v1872 = vunpack.c.l.b16 %v1775
        %v1873 = vunpack.c.l.b16 %v1776
        %v1874 = vunpack.c.l.b16 %v1777
        %v1875 = vunpack.c.l.b16 %v1778
        %v1876 = vunpack.c.l.b16 %v1779
        %v1877 = vunpack.c.l.b16 %v1780
        %v1878 = vunpack.c.l.b16 %v1781
        %v1879 = vunpack.c.l.b16 %v1782
        %v1880 = vunpack.c.l.b16 %v1783
        %v1881 = vunpack.c.l.b16 %v1784
        %v1882 = vunpack.c.l.b16 %v1785
        %v1883 = vunpack.c.l.b16 %v1786
        %v1884 = vunpack.c.l.b16 %v1787
        %v1885 = vunpack.c.l.b16 %v1788
        %v1886 = vunpack.c.l.b16 %v1789
        %v1887 = vunpack.c.l.b16 %v1790
        %v1888 = vunpack.c.l.b16 %v1791
        %v1889 = vunpack.c.l.b16 %v1792
        %v1890 = vunpack.c.l.b16 %v1793
        %v1891 = vunpack.c.l.b16 %v1794
        %v1892 = vunpack.c.l.b16 %v1795
        %v1893 = vunpack.c.l.b16 %v1796
        %v1894 = vunpack.c.l.b16 %v1797
        %v1895 = vunpack.c.l.b16 %v1798
        %v1896 = vunpack.c.l.b16 %v1799
        %v1897 = vunpack.c.l.b16 %v1800
        %v1898 = vunpack.c.l.b16 %v1801
        %v1899 = vunpack.c.l.b16 %v1802
        %v1900 = vunpack.c.l.b16 %v1803
        %v1901 = vunpack.c.l.b16 %v1804
        %v1902 = vunpack.c.l.b16 %v1805
        %v1903 = vpack.c.b16 %v1872, %v1871
        %v1904 = vpack.c.b16 %v1874, %v1873
        %v1905 = vpack.c.b16 %v1876, %v1875
        %v1906 = vpack.c.b16 %v1878, %v1877
        %v1907 = vpack.c.b16 %v1880, %v1879
        %v1908 = vpack.c.b16 %v1882, %v1881
        %v1909 = vpack.c.b16 %v1884, %v1883
        %v1910 = vpack.c.b16 %v1886, %v1885
        %v1911 = vpack.c.b16 %v1888, %v1887
        %v1912 = vpack.c.b16 %v1890, %v1889
        %v1913 = vpack.c.b16 %v1892, %v1891
        %v1914 = vpack.c.b16 %v1894, %v1893
        %v1915 = vpack.c.b16 %v1896, %v1895
        %v1916 = vpack.c.b16 %v1898, %v1897
        %v1917 = vpack.c.b16 %v1900, %v1899
        %v1918 = vpack.c.b16 %v1902, %v1901
        %v1920 = vsel %vm351, %v1903, 0
        %v1923 = vsel %vm351, %v1904, 0
        %v1926 = vsel %vm351, %v1905, 0
        %v1929 = vsel %vm351, %v1906, 0
        %v1932 = vsel %vm351, %v1907, 0
        %v1935 = vsel %vm351, %v1908, 0
        %v1938 = vsel %vm351, %v1909, 0
        %v1941 = vsel %vm351, %v1910, 0
        %v1944 = vsel %vm351, %v1911, 0
        %v1947 = vsel %vm351, %v1912, 0
        %v1950 = vsel %vm351, %v1913, 0
        %v1953 = vsel %vm351, %v1914, 0
        %v1956 = vsel %vm351, %v1915, 0
        %v1959 = vsel %vm351, %v1916, 0
        %v1962 = vsel %vm351, %v1917, 0
        %v1965 = vsel %vm351, %v1918, 0
        %v1968 = vsel %vm400, %v1806, 0
        %1970 = vmatpush.bf16.msra.mxu0 0
        %1971 = vmatpush.bf16.msra.mxu0 0
        %1972 = vmatpush.bf16.msra.mxu0 0
        %1973 = vmatpush.bf16.msra.mxu0 0
        %1974 = vmatpush.bf16.msra.mxu0 0
        %1975 = vmatpush.bf16.msra.mxu0 0
        %1976 = vmatpush.bf16.msra.mxu0 0
        %1977 = vmatpush.bf16.msra.mxu0 %v1968
        %1978 = vmatmul.bf16.gmra.mxu0 %v1920
        %v1979 = vpop.f32.mrf.mxu0
        %v1980 = vadd.f32 0.0, %v1979
        %v1981 = vpop.f32.mrf.mxu0
        %v1982 = vadd.f32 0.0, %v1981
        %1983 = vmatmul.bf16.gmra.mxu0 %v1923
        %v1984 = vpop.f32.mrf.mxu0
        %v1985 = vadd.f32 0.0, %v1984
        %v1986 = vpop.f32.mrf.mxu0
        %v1987 = vadd.f32 0.0, %v1986
        %1988 = vmatmul.bf16.gmra.mxu0 %v1926
        %v1989 = vpop.f32.mrf.mxu0
        %v1990 = vadd.f32 0.0, %v1989
        %v1991 = vpop.f32.mrf.mxu0
        %v1992 = vadd.f32 0.0, %v1991
        %1993 = vmatmul.bf16.gmra.mxu0 %v1929
        %v1994 = vpop.f32.mrf.mxu0
        %v1995 = vadd.f32 0.0, %v1994
        %v1996 = vpop.f32.mrf.mxu0
        %v1997 = vadd.f32 0.0, %v1996
        %1998 = vmatmul.bf16.gmra.mxu0 %v1932
        %v1999 = vpop.f32.mrf.mxu0
        %v2000 = vadd.f32 0.0, %v1999
        %v2001 = vpop.f32.mrf.mxu0
        %v2002 = vadd.f32 0.0, %v2001
        %2003 = vmatmul.bf16.gmra.mxu0 %v1935
        %v2004 = vpop.f32.mrf.mxu0
        %v2005 = vadd.f32 0.0, %v2004
        %v2006 = vpop.f32.mrf.mxu0
        %v2007 = vadd.f32 0.0, %v2006
        %2008 = vmatmul.bf16.gmra.mxu0 %v1938
        %v2009 = vpop.f32.mrf.mxu0
        %v2010 = vadd.f32 0.0, %v2009
        %v2011 = vpop.f32.mrf.mxu0
        %v2012 = vadd.f32 0.0, %v2011
        %2013 = vmatmul.bf16.gmra.mxu0 %v1941
        %v2014 = vpop.f32.mrf.mxu0
        %v2015 = vadd.f32 0.0, %v2014
        %v2016 = vpop.f32.mrf.mxu0
        %v2017 = vadd.f32 0.0, %v2016
        %2018 = vmatmul.bf16.gmra.mxu0 %v1944
        %v2019 = vpop.f32.mrf.mxu0
        %v2020 = vadd.f32 0.0, %v2019
        %v2021 = vpop.f32.mrf.mxu0
        %v2022 = vadd.f32 0.0, %v2021
        %2023 = vmatmul.bf16.gmra.mxu0 %v1947
        %v2024 = vpop.f32.mrf.mxu0
        %v2025 = vadd.f32 0.0, %v2024
        %v2026 = vpop.f32.mrf.mxu0
        %v2027 = vadd.f32 0.0, %v2026
        %2028 = vmatmul.bf16.gmra.mxu0 %v1950
        %v2029 = vpop.f32.mrf.mxu0
        %v2030 = vadd.f32 0.0, %v2029
        %v2031 = vpop.f32.mrf.mxu0
        %v2032 = vadd.f32 0.0, %v2031
        %2033 = vmatmul.bf16.gmra.mxu0 %v1953
        %v2034 = vpop.f32.mrf.mxu0
        %v2035 = vadd.f32 0.0, %v2034
        %v2036 = vpop.f32.mrf.mxu0
        %v2037 = vadd.f32 0.0, %v2036
        %2038 = vmatmul.bf16.gmra.mxu0 %v1956
        %v2039 = vpop.f32.mrf.mxu0
        %v2040 = vadd.f32 0.0, %v2039
        %v2041 = vpop.f32.mrf.mxu0
        %v2042 = vadd.f32 0.0, %v2041
        %2043 = vmatmul.bf16.gmra.mxu0 %v1959
        %v2044 = vpop.f32.mrf.mxu0
        %v2045 = vadd.f32 0.0, %v2044
        %v2046 = vpop.f32.mrf.mxu0
        %v2047 = vadd.f32 0.0, %v2046
        %2048 = vmatmul.bf16.gmra.mxu0 %v1962
        %v2049 = vpop.f32.mrf.mxu0
        %v2050 = vadd.f32 0.0, %v2049
        %v2051 = vpop.f32.mrf.mxu0
        %v2052 = vadd.f32 0.0, %v2051
        %2053 = vmatmul.bf16.gmra.mxu0 %v1965
        %v2054 = vpop.f32.mrf.mxu0
        %v2055 = vadd.f32 0.0, %v2054
        %v2056 = vpop.f32.mrf.mxu0
        %v2057 = vadd.f32 0.0, %v2056
        %2058 = vdwg.mxu0
        %v2059 = vadd.f32 %v1807, %v1980
        %v2060 = vadd.f32 %v1808, %v1982
        %v2061 = vadd.f32 %v1809, %v1985
        %v2062 = vadd.f32 %v1810, %v1987
        %v2063 = vadd.f32 %v1811, %v1990
        %v2064 = vadd.f32 %v1812, %v1992
        %v2065 = vadd.f32 %v1813, %v1995
        %v2066 = vadd.f32 %v1814, %v1997
        %v2067 = vadd.f32 %v1815, %v2000
        %v2068 = vadd.f32 %v1816, %v2002
        %v2069 = vadd.f32 %v1817, %v2005
        %v2070 = vadd.f32 %v1818, %v2007
        %v2071 = vadd.f32 %v1819, %v2010
        %v2072 = vadd.f32 %v1820, %v2012
        %v2073 = vadd.f32 %v1821, %v2015
        %v2074 = vadd.f32 %v1822, %v2017
        %v2075 = vadd.f32 %v1823, %v2020
        %v2076 = vadd.f32 %v1824, %v2022
        %v2077 = vadd.f32 %v1825, %v2025
        %v2078 = vadd.f32 %v1826, %v2027
        %v2079 = vadd.f32 %v1827, %v2030
        %v2080 = vadd.f32 %v1828, %v2032
        %v2081 = vadd.f32 %v1829, %v2035
        %v2082 = vadd.f32 %v1830, %v2037
        %v2083 = vadd.f32 %v1831, %v2040
        %v2084 = vadd.f32 %v1832, %v2042
        %v2085 = vadd.f32 %v1833, %v2045
        %v2086 = vadd.f32 %v1834, %v2047
        %v2087 = vadd.f32 %v1835, %v2050
        %v2088 = vadd.f32 %v1836, %v2052
        %v2089 = vadd.f32 %v1837, %v2055
        %v2090 = vadd.f32 %v1838, %v2057
        %2091 = vst [vmem:[%s163] sm:$0xff] %v2059
        %2092 = vst [vmem:[%s163 + $0x8] sm:$0xff] %v2060
        %2093 = vst [vmem:[%s163 + $0x10] sm:$0xff] %v2061
        %2094 = vst [vmem:[%s163 + $0x18] sm:$0xff] %v2062
        %2095 = vst [vmem:[%s163 + $0x20] sm:$0xff] %v2063
        %2096 = vst [vmem:[%s163 + $0x28] sm:$0xff] %v2064
        %2097 = vst [vmem:[%s163 + $0x30] sm:$0xff] %v2065
        %2098 = vst [vmem:[%s163 + $0x38] sm:$0xff] %v2066
        %2099 = vst [vmem:[%s163 + $0x40] sm:$0xff] %v2067
        %2100 = vst [vmem:[%s163 + $0x48] sm:$0xff] %v2068
        %2101 = vst [vmem:[%s163 + $0x50] sm:$0xff] %v2069
        %2102 = vst [vmem:[%s163 + $0x58] sm:$0xff] %v2070
        %2103 = vst [vmem:[%s163 + $0x60] sm:$0xff] %v2071
        %2104 = vst [vmem:[%s163 + $0x68] sm:$0xff] %v2072
        %2105 = vst [vmem:[%s163 + $0x70] sm:$0xff] %v2073
        %2106 = vst [vmem:[%s163 + $0x78] sm:$0xff] %v2074
        %2107 = vst [vmem:[%s163 + $0x80] sm:$0xff] %v2075
        %2108 = vst [vmem:[%s163 + $0x88] sm:$0xff] %v2076
        %2109 = vst [vmem:[%s163 + $0x90] sm:$0xff] %v2077
        %2110 = vst [vmem:[%s163 + $0x98] sm:$0xff] %v2078
        %2111 = vst [vmem:[%s163 + $0xa0] sm:$0xff] %v2079
        %2112 = vst [vmem:[%s163 + $0xa8] sm:$0xff] %v2080
        %2113 = vst [vmem:[%s163 + $0xb0] sm:$0xff] %v2081
        %2114 = vst [vmem:[%s163 + $0xb8] sm:$0xff] %v2082
        %2115 = vst [vmem:[%s163 + $0xc0] sm:$0xff] %v2083
        %2116 = vst [vmem:[%s163 + $0xc8] sm:$0xff] %v2084
        %2117 = vst [vmem:[%s163 + $0xd0] sm:$0xff] %v2085
        %2118 = vst [vmem:[%s163 + $0xd8] sm:$0xff] %v2086
        %2119 = vst [vmem:[%s163 + $0xe0] sm:$0xff] %v2087
        %2120 = vst [vmem:[%s163 + $0xe8] sm:$0xff] %v2088
        %2121 = vst [vmem:[%s163 + $0xf0] sm:$0xff] %v2089
        %2122 = vst [vmem:[%s163 + $0xf8] sm:$0xff] %v2090
        %v2123 = vld [vmem:[%s1773] sm:$0xf]
        %v2124 = vld [vmem:[%s1773 + $0x4] sm:$0xf]
        %v2125 = vld [vmem:[%s1773 + $0x8] sm:$0x1]
        %v2126 = vld [vmem:[%s1773 + $0xc] sm:$0xf]
        %v2127 = vld [vmem:[%s1773 + $0x10] sm:$0xf]
        %v2128 = vld [vmem:[%s1773 + $0x14] sm:$0x1]
        %v2129 = vld [vmem:[%s1773 + $0x18] sm:$0xf]
        %v2130 = vld [vmem:[%s1773 + $0x1c] sm:$0xf]
        %v2131 = vld [vmem:[%s1773 + $0x20] sm:$0x1]
        %v2132 = vld [vmem:[%s1773 + $0x24] sm:$0xf]
        %v2133 = vld [vmem:[%s1773 + $0x28] sm:$0xf]
        %v2134 = vld [vmem:[%s1773 + $0x2c] sm:$0x1]
        %v2135 = vld [vmem:[%s1773 + $0x30] sm:$0xf]
        %v2136 = vld [vmem:[%s1773 + $0x34] sm:$0xf]
        %v2137 = vld [vmem:[%s1773 + $0x38] sm:$0x1]
        %v2138 = vld [vmem:[%s1773 + $0x3c] sm:$0xf]
        %v2139 = vld [vmem:[%s1773 + $0x40] sm:$0xf]
        %v2140 = vld [vmem:[%s1773 + $0x44] sm:$0x1]
        %v2141 = vld [vmem:[%s1773 + $0x48] sm:$0xf]
        %v2142 = vld [vmem:[%s1773 + $0x4c] sm:$0xf]
        %v2143 = vld [vmem:[%s1773 + $0x50] sm:$0x1]
        %v2144 = vld [vmem:[%s1773 + $0x54] sm:$0xf]
        %v2145 = vld [vmem:[%s1773 + $0x58] sm:$0xf]
        %v2146 = vld [vmem:[%s1773 + $0x5c] sm:$0x1]
        %v2147 = vld [vmem:[%s1773 + $0x60] sm:$0xf]
        %v2148 = vld [vmem:[%s1773 + $0x64] sm:$0xf]
        %v2149 = vld [vmem:[%s1773 + $0x68] sm:$0x1]
        %v2150 = vld [vmem:[%s1773 + $0x6c] sm:$0xf]
        %v2151 = vld [vmem:[%s1773 + $0x70] sm:$0xf]
        %v2152 = vld [vmem:[%s1773 + $0x74] sm:$0x1]
        %v2153 = vld [vmem:[%s1773 + $0x78] sm:$0xf]
        %v2154 = vld [vmem:[%s1773 + $0x7c] sm:$0xf]
        %v2155 = vld [vmem:[%s1773 + $0x80] sm:$0x1]
        %v2156 = vld [vmem:[%s1773 + $0x84] sm:$0xf]
        %v2157 = vld [vmem:[%s1773 + $0x88] sm:$0xf]
        %v2158 = vld [vmem:[%s1773 + $0x8c] sm:$0x1]
        %v2159 = vld [vmem:[%s1773 + $0x90] sm:$0xf]
        %v2160 = vld [vmem:[%s1773 + $0x94] sm:$0xf]
        %v2161 = vld [vmem:[%s1773 + $0x98] sm:$0x1]
        %v2162 = vld [vmem:[%s1773 + $0x9c] sm:$0xf]
        %v2163 = vld [vmem:[%s1773 + $0xa0] sm:$0xf]
        %v2164 = vld [vmem:[%s1773 + $0xa4] sm:$0x1]
        %v2165 = vld [vmem:[%s1773 + $0xa8] sm:$0xf]
        %v2166 = vld [vmem:[%s1773 + $0xac] sm:$0xf]
        %v2167 = vld [vmem:[%s1773 + $0xb0] sm:$0x1]
        %v2168 = vld [vmem:[%s1773 + $0xb4] sm:$0xf]
        %v2169 = vld [vmem:[%s1773 + $0xb8] sm:$0xf]
        %v2170 = vld [vmem:[%s1773 + $0xbc] sm:$0x1]
        %v2172 = vshrl.u32 %v2123, 16
        %v2174 = vrot.slane %v2172, 4
        %v2175 = vshll.u32 %v2123, 16
        %v2177 = vrot.slane %v2175, 5
        %v2178 = vor.u32 %v2174, %v2177
        %v2179 = vrot.slane %v2178, 4
        %v2181 = vshll.u32 %v2124, 16
        %v2183 = vrot.slane %v2181, 5
        %v2184 = vsel %vm607, %v2179, %v2183
        %v2185 = vshrl.u32 %v2124, 16
        %v2187 = vrot.slane %v2185, 4
        %v2188 = vor.u32 %v2187, %v2183
        %v2189 = vrot.slane %v2188, 4
        %v2191 = vshll.u32 %v2125, 16
        %v2193 = vrot.slane %v2191, 5
        %v2194 = vsel %vm607, %v2189, %v2193
        %v2196 = vshrl.u32 %v2126, 16
        %v2198 = vrot.slane %v2196, 4
        %v2199 = vshll.u32 %v2126, 16
        %v2201 = vrot.slane %v2199, 5
        %v2202 = vor.u32 %v2198, %v2201
        %v2203 = vrot.slane %v2202, 4
        %v2205 = vshll.u32 %v2127, 16
        %v2207 = vrot.slane %v2205, 5
        %v2208 = vsel %vm607, %v2203, %v2207
        %v2209 = vshrl.u32 %v2127, 16
        %v2211 = vrot.slane %v2209, 4
        %v2212 = vor.u32 %v2211, %v2207
        %v2213 = vrot.slane %v2212, 4
        %v2215 = vshll.u32 %v2128, 16
        %v2217 = vrot.slane %v2215, 5
        %v2218 = vsel %vm607, %v2213, %v2217
        %v2220 = vshrl.u32 %v2129, 16
        %v2222 = vrot.slane %v2220, 4
        %v2223 = vshll.u32 %v2129, 16
        %v2225 = vrot.slane %v2223, 5
        %v2226 = vor.u32 %v2222, %v2225
        %v2227 = vrot.slane %v2226, 4
        %v2229 = vshll.u32 %v2130, 16
        %v2231 = vrot.slane %v2229, 5
        %v2232 = vsel %vm607, %v2227, %v2231
        %v2233 = vshrl.u32 %v2130, 16
        %v2235 = vrot.slane %v2233, 4
        %v2236 = vor.u32 %v2235, %v2231
        %v2237 = vrot.slane %v2236, 4
        %v2239 = vshll.u32 %v2131, 16
        %v2241 = vrot.slane %v2239, 5
        %v2242 = vsel %vm607, %v2237, %v2241
        %v2244 = vshrl.u32 %v2132, 16
        %v2246 = vrot.slane %v2244, 4
        %v2247 = vshll.u32 %v2132, 16
        %v2249 = vrot.slane %v2247, 5
        %v2250 = vor.u32 %v2246, %v2249
        %v2251 = vrot.slane %v2250, 4
        %v2253 = vshll.u32 %v2133, 16
        %v2255 = vrot.slane %v2253, 5
        %v2256 = vsel %vm607, %v2251, %v2255
        %v2257 = vshrl.u32 %v2133, 16
        %v2259 = vrot.slane %v2257, 4
        %v2260 = vor.u32 %v2259, %v2255
        %v2261 = vrot.slane %v2260, 4
        %v2263 = vshll.u32 %v2134, 16
        %v2265 = vrot.slane %v2263, 5
        %v2266 = vsel %vm607, %v2261, %v2265
        %v2268 = vshrl.u32 %v2135, 16
        %v2270 = vrot.slane %v2268, 4
        %v2271 = vshll.u32 %v2135, 16
        %v2273 = vrot.slane %v2271, 5
        %v2274 = vor.u32 %v2270, %v2273
        %v2275 = vrot.slane %v2274, 4
        %v2277 = vshll.u32 %v2136, 16
        %v2279 = vrot.slane %v2277, 5
        %v2280 = vsel %vm607, %v2275, %v2279
        %v2281 = vshrl.u32 %v2136, 16
        %v2283 = vrot.slane %v2281, 4
        %v2284 = vor.u32 %v2283, %v2279
        %v2285 = vrot.slane %v2284, 4
        %v2287 = vshll.u32 %v2137, 16
        %v2289 = vrot.slane %v2287, 5
        %v2290 = vsel %vm607, %v2285, %v2289
        %v2292 = vshrl.u32 %v2138, 16
        %v2294 = vrot.slane %v2292, 4
        %v2295 = vshll.u32 %v2138, 16
        %v2297 = vrot.slane %v2295, 5
        %v2298 = vor.u32 %v2294, %v2297
        %v2299 = vrot.slane %v2298, 4
        %v2301 = vshll.u32 %v2139, 16
        %v2303 = vrot.slane %v2301, 5
        %v2304 = vsel %vm607, %v2299, %v2303
        %v2305 = vshrl.u32 %v2139, 16
        %v2307 = vrot.slane %v2305, 4
        %v2308 = vor.u32 %v2307, %v2303
        %v2309 = vrot.slane %v2308, 4
        %v2311 = vshll.u32 %v2140, 16
        %v2313 = vrot.slane %v2311, 5
        %v2314 = vsel %vm607, %v2309, %v2313
        %v2316 = vshrl.u32 %v2141, 16
        %v2318 = vrot.slane %v2316, 4
        %v2319 = vshll.u32 %v2141, 16
        %v2321 = vrot.slane %v2319, 5
        %v2322 = vor.u32 %v2318, %v2321
        %v2323 = vrot.slane %v2322, 4
        %v2325 = vshll.u32 %v2142, 16
        %v2327 = vrot.slane %v2325, 5
        %v2328 = vsel %vm607, %v2323, %v2327
        %v2329 = vshrl.u32 %v2142, 16
        %v2331 = vrot.slane %v2329, 4
        %v2332 = vor.u32 %v2331, %v2327
        %v2333 = vrot.slane %v2332, 4
        %v2335 = vshll.u32 %v2143, 16
        %v2337 = vrot.slane %v2335, 5
        %v2338 = vsel %vm607, %v2333, %v2337
        %v2340 = vshrl.u32 %v2144, 16
        %v2342 = vrot.slane %v2340, 4
        %v2343 = vshll.u32 %v2144, 16
        %v2345 = vrot.slane %v2343, 5
        %v2346 = vor.u32 %v2342, %v2345
        %v2347 = vrot.slane %v2346, 4
        %v2349 = vshll.u32 %v2145, 16
        %v2351 = vrot.slane %v2349, 5
        %v2352 = vsel %vm607, %v2347, %v2351
        %v2353 = vshrl.u32 %v2145, 16
        %v2355 = vrot.slane %v2353, 4
        %v2356 = vor.u32 %v2355, %v2351
        %v2357 = vrot.slane %v2356, 4
        %v2359 = vshll.u32 %v2146, 16
        %v2361 = vrot.slane %v2359, 5
        %v2362 = vsel %vm607, %v2357, %v2361
        %v2364 = vshrl.u32 %v2147, 16
        %v2366 = vrot.slane %v2364, 4
        %v2367 = vshll.u32 %v2147, 16
        %v2369 = vrot.slane %v2367, 5
        %v2370 = vor.u32 %v2366, %v2369
        %v2371 = vrot.slane %v2370, 4
        %v2373 = vshll.u32 %v2148, 16
        %v2375 = vrot.slane %v2373, 5
        %v2376 = vsel %vm607, %v2371, %v2375
        %v2377 = vshrl.u32 %v2148, 16
        %v2379 = vrot.slane %v2377, 4
        %v2380 = vor.u32 %v2379, %v2375
        %v2381 = vrot.slane %v2380, 4
        %v2383 = vshll.u32 %v2149, 16
        %v2385 = vrot.slane %v2383, 5
        %v2386 = vsel %vm607, %v2381, %v2385
        %v2388 = vshrl.u32 %v2150, 16
        %v2390 = vrot.slane %v2388, 4
        %v2391 = vshll.u32 %v2150, 16
        %v2393 = vrot.slane %v2391, 5
        %v2394 = vor.u32 %v2390, %v2393
        %v2395 = vrot.slane %v2394, 4
        %v2397 = vshll.u32 %v2151, 16
        %v2399 = vrot.slane %v2397, 5
        %v2400 = vsel %vm607, %v2395, %v2399
        %v2401 = vshrl.u32 %v2151, 16
        %v2403 = vrot.slane %v2401, 4
        %v2404 = vor.u32 %v2403, %v2399
        %v2405 = vrot.slane %v2404, 4
        %v2407 = vshll.u32 %v2152, 16
        %v2409 = vrot.slane %v2407, 5
        %v2410 = vsel %vm607, %v2405, %v2409
        %v2412 = vshrl.u32 %v2153, 16
        %v2414 = vrot.slane %v2412, 4
        %v2415 = vshll.u32 %v2153, 16
        %v2417 = vrot.slane %v2415, 5
        %v2418 = vor.u32 %v2414, %v2417
        %v2419 = vrot.slane %v2418, 4
        %v2421 = vshll.u32 %v2154, 16
        %v2423 = vrot.slane %v2421, 5
        %v2424 = vsel %vm607, %v2419, %v2423
        %v2425 = vshrl.u32 %v2154, 16
        %v2427 = vrot.slane %v2425, 4
        %v2428 = vor.u32 %v2427, %v2423
        %v2429 = vrot.slane %v2428, 4
        %v2431 = vshll.u32 %v2155, 16
        %v2433 = vrot.slane %v2431, 5
        %v2434 = vsel %vm607, %v2429, %v2433
        %v2436 = vshrl.u32 %v2156, 16
        %v2438 = vrot.slane %v2436, 4
        %v2439 = vshll.u32 %v2156, 16
        %v2441 = vrot.slane %v2439, 5
        %v2442 = vor.u32 %v2438, %v2441
        %v2443 = vrot.slane %v2442, 4
        %v2445 = vshll.u32 %v2157, 16
        %v2447 = vrot.slane %v2445, 5
        %v2448 = vsel %vm607, %v2443, %v2447
        %v2449 = vshrl.u32 %v2157, 16
        %v2451 = vrot.slane %v2449, 4
        %v2452 = vor.u32 %v2451, %v2447
        %v2453 = vrot.slane %v2452, 4
        %v2455 = vshll.u32 %v2158, 16
        %v2457 = vrot.slane %v2455, 5
        %v2458 = vsel %vm607, %v2453, %v2457
        %v2460 = vshrl.u32 %v2159, 16
        %v2462 = vrot.slane %v2460, 4
        %v2463 = vshll.u32 %v2159, 16
        %v2465 = vrot.slane %v2463, 5
        %v2466 = vor.u32 %v2462, %v2465
        %v2467 = vrot.slane %v2466, 4
        %v2469 = vshll.u32 %v2160, 16
        %v2471 = vrot.slane %v2469, 5
        %v2472 = vsel %vm607, %v2467, %v2471
        %v2473 = vshrl.u32 %v2160, 16
        %v2475 = vrot.slane %v2473, 4
        %v2476 = vor.u32 %v2475, %v2471
        %v2477 = vrot.slane %v2476, 4
        %v2479 = vshll.u32 %v2161, 16
        %v2481 = vrot.slane %v2479, 5
        %v2482 = vsel %vm607, %v2477, %v2481
        %v2484 = vshrl.u32 %v2162, 16
        %v2486 = vrot.slane %v2484, 4
        %v2487 = vshll.u32 %v2162, 16
        %v2489 = vrot.slane %v2487, 5
        %v2490 = vor.u32 %v2486, %v2489
        %v2491 = vrot.slane %v2490, 4
        %v2493 = vshll.u32 %v2163, 16
        %v2495 = vrot.slane %v2493, 5
        %v2496 = vsel %vm607, %v2491, %v2495
        %v2497 = vshrl.u32 %v2163, 16
        %v2499 = vrot.slane %v2497, 4
        %v2500 = vor.u32 %v2499, %v2495
        %v2501 = vrot.slane %v2500, 4
        %v2503 = vshll.u32 %v2164, 16
        %v2505 = vrot.slane %v2503, 5
        %v2506 = vsel %vm607, %v2501, %v2505
        %v2508 = vshrl.u32 %v2165, 16
        %v2510 = vrot.slane %v2508, 4
        %v2511 = vshll.u32 %v2165, 16
        %v2513 = vrot.slane %v2511, 5
        %v2514 = vor.u32 %v2510, %v2513
        %v2515 = vrot.slane %v2514, 4
        %v2517 = vshll.u32 %v2166, 16
        %v2519 = vrot.slane %v2517, 5
        %v2520 = vsel %vm607, %v2515, %v2519
        %v2521 = vshrl.u32 %v2166, 16
        %v2523 = vrot.slane %v2521, 4
        %v2524 = vor.u32 %v2523, %v2519
        %v2525 = vrot.slane %v2524, 4
        %v2527 = vshll.u32 %v2167, 16
        %v2529 = vrot.slane %v2527, 5
        %v2530 = vsel %vm607, %v2525, %v2529
        %v2532 = vshrl.u32 %v2168, 16
        %v2534 = vrot.slane %v2532, 4
        %v2535 = vshll.u32 %v2168, 16
        %v2537 = vrot.slane %v2535, 5
        %v2538 = vor.u32 %v2534, %v2537
        %v2539 = vrot.slane %v2538, 4
        %v2541 = vshll.u32 %v2169, 16
        %v2543 = vrot.slane %v2541, 5
        %v2544 = vsel %vm607, %v2539, %v2543
        %v2545 = vshrl.u32 %v2169, 16
        %v2547 = vrot.slane %v2545, 4
        %v2548 = vor.u32 %v2547, %v2543
        %v2549 = vrot.slane %v2548, 4
        %v2551 = vshll.u32 %v2170, 16
        %v2553 = vrot.slane %v2551, 5
        %v2554 = vsel %vm607, %v2549, %v2553
        %v2555 = vld [vmem:[%s1 + $0x10] sm:$0xf]
        %v2556 = vld [vmem:[%s163] sm:$0xff]
        %v2557 = vld [vmem:[%s163 + $0x8] sm:$0xff]
        %v2558 = vld [vmem:[%s163 + $0x10] sm:$0xff]
        %v2559 = vld [vmem:[%s163 + $0x18] sm:$0xff]
        %v2560 = vld [vmem:[%s163 + $0x20] sm:$0xff]
        %v2561 = vld [vmem:[%s163 + $0x28] sm:$0xff]
        %v2562 = vld [vmem:[%s163 + $0x30] sm:$0xff]
        %v2563 = vld [vmem:[%s163 + $0x38] sm:$0xff]
        %v2564 = vld [vmem:[%s163 + $0x40] sm:$0xff]
        %v2565 = vld [vmem:[%s163 + $0x48] sm:$0xff]
        %v2566 = vld [vmem:[%s163 + $0x50] sm:$0xff]
        %v2567 = vld [vmem:[%s163 + $0x58] sm:$0xff]
        %v2568 = vld [vmem:[%s163 + $0x60] sm:$0xff]
        %v2569 = vld [vmem:[%s163 + $0x68] sm:$0xff]
        %v2570 = vld [vmem:[%s163 + $0x70] sm:$0xff]
        %v2571 = vld [vmem:[%s163 + $0x78] sm:$0xff]
        %v2572 = vld [vmem:[%s163 + $0x80] sm:$0xff]
        %v2573 = vld [vmem:[%s163 + $0x88] sm:$0xff]
        %v2574 = vld [vmem:[%s163 + $0x90] sm:$0xff]
        %v2575 = vld [vmem:[%s163 + $0x98] sm:$0xff]
        %v2576 = vld [vmem:[%s163 + $0xa0] sm:$0xff]
        %v2577 = vld [vmem:[%s163 + $0xa8] sm:$0xff]
        %v2578 = vld [vmem:[%s163 + $0xb0] sm:$0xff]
        %v2579 = vld [vmem:[%s163 + $0xb8] sm:$0xff]
        %v2580 = vld [vmem:[%s163 + $0xc0] sm:$0xff]
        %v2581 = vld [vmem:[%s163 + $0xc8] sm:$0xff]
        %v2582 = vld [vmem:[%s163 + $0xd0] sm:$0xff]
        %v2583 = vld [vmem:[%s163 + $0xd8] sm:$0xff]
        %v2584 = vld [vmem:[%s163 + $0xe0] sm:$0xff]
        %v2585 = vld [vmem:[%s163 + $0xe8] sm:$0xff]
        %v2586 = vld [vmem:[%s163 + $0xf0] sm:$0xff]
        %v2587 = vld [vmem:[%s163 + $0xf8] sm:$0xff]
        %v2588 = vunpack.c.l.b16 %v2184
        %v2589 = vunpack.c.l.b16 %v2194
        %v2590 = vunpack.c.l.b16 %v2208
        %v2591 = vunpack.c.l.b16 %v2218
        %v2592 = vunpack.c.l.b16 %v2232
        %v2593 = vunpack.c.l.b16 %v2242
        %v2594 = vunpack.c.l.b16 %v2256
        %v2595 = vunpack.c.l.b16 %v2266
        %v2596 = vunpack.c.l.b16 %v2280
        %v2597 = vunpack.c.l.b16 %v2290
        %v2598 = vunpack.c.l.b16 %v2304
        %v2599 = vunpack.c.l.b16 %v2314
        %v2600 = vunpack.c.l.b16 %v2328
        %v2601 = vunpack.c.l.b16 %v2338
        %v2602 = vunpack.c.l.b16 %v2352
        %v2603 = vunpack.c.l.b16 %v2362
        %v2604 = vunpack.c.l.b16 %v2376
        %v2605 = vunpack.c.l.b16 %v2386
        %v2606 = vunpack.c.l.b16 %v2400
        %v2607 = vunpack.c.l.b16 %v2410
        %v2608 = vunpack.c.l.b16 %v2424
        %v2609 = vunpack.c.l.b16 %v2434
        %v2610 = vunpack.c.l.b16 %v2448
        %v2611 = vunpack.c.l.b16 %v2458
        %v2612 = vunpack.c.l.b16 %v2472
        %v2613 = vunpack.c.l.b16 %v2482
        %v2614 = vunpack.c.l.b16 %v2496
        %v2615 = vunpack.c.l.b16 %v2506
        %v2616 = vunpack.c.l.b16 %v2520
        %v2617 = vunpack.c.l.b16 %v2530
        %v2618 = vunpack.c.l.b16 %v2544
        %v2619 = vunpack.c.l.b16 %v2554
        %v2620 = vpack.c.b16 %v2589, %v2588
        %v2621 = vpack.c.b16 %v2591, %v2590
        %v2622 = vpack.c.b16 %v2593, %v2592
        %v2623 = vpack.c.b16 %v2595, %v2594
        %v2624 = vpack.c.b16 %v2597, %v2596
        %v2625 = vpack.c.b16 %v2599, %v2598
        %v2626 = vpack.c.b16 %v2601, %v2600
        %v2627 = vpack.c.b16 %v2603, %v2602
        %v2628 = vpack.c.b16 %v2605, %v2604
        %v2629 = vpack.c.b16 %v2607, %v2606
        %v2630 = vpack.c.b16 %v2609, %v2608
        %v2631 = vpack.c.b16 %v2611, %v2610
        %v2632 = vpack.c.b16 %v2613, %v2612
        %v2633 = vpack.c.b16 %v2615, %v2614
        %v2634 = vpack.c.b16 %v2617, %v2616
        %v2635 = vpack.c.b16 %v2619, %v2618
        %v2637 = vsel %vm351, %v2620, 0
        %v2640 = vsel %vm351, %v2621, 0
        %v2643 = vsel %vm351, %v2622, 0
        %v2646 = vsel %vm351, %v2623, 0
        %v2649 = vsel %vm351, %v2624, 0
        %v2652 = vsel %vm351, %v2625, 0
        %v2655 = vsel %vm351, %v2626, 0
        %v2658 = vsel %vm351, %v2627, 0
        %v2661 = vsel %vm351, %v2628, 0
        %v2664 = vsel %vm351, %v2629, 0
        %v2667 = vsel %vm351, %v2630, 0
        %v2670 = vsel %vm351, %v2631, 0
        %v2673 = vsel %vm351, %v2632, 0
        %v2676 = vsel %vm351, %v2633, 0
        %v2679 = vsel %vm351, %v2634, 0
        %v2682 = vsel %vm351, %v2635, 0
        %v2685 = vsel %vm400, %v2555, 0
        %2687 = vmatpush.bf16.msra.mxu0 0
        %2688 = vmatpush.bf16.msra.mxu0 0
        %2689 = vmatpush.bf16.msra.mxu0 0
        %2690 = vmatpush.bf16.msra.mxu0 0
        %2691 = vmatpush.bf16.msra.mxu0 0
        %2692 = vmatpush.bf16.msra.mxu0 0
        %2693 = vmatpush.bf16.msra.mxu0 0
        %2694 = vmatpush.bf16.msra.mxu0 %v2685
        %2695 = vmatmul.bf16.gmra.mxu0 %v2637
        %v2696 = vpop.f32.mrf.mxu0
        %v2697 = vadd.f32 0.0, %v2696
        %v2698 = vpop.f32.mrf.mxu0
        %v2699 = vadd.f32 0.0, %v2698
        %2700 = vmatmul.bf16.gmra.mxu0 %v2640
        %v2701 = vpop.f32.mrf.mxu0
        %v2702 = vadd.f32 0.0, %v2701
        %v2703 = vpop.f32.mrf.mxu0
        %v2704 = vadd.f32 0.0, %v2703
        %2705 = vmatmul.bf16.gmra.mxu0 %v2643
        %v2706 = vpop.f32.mrf.mxu0
        %v2707 = vadd.f32 0.0, %v2706
        %v2708 = vpop.f32.mrf.mxu0
        %v2709 = vadd.f32 0.0, %v2708
        %2710 = vmatmul.bf16.gmra.mxu0 %v2646
        %v2711 = vpop.f32.mrf.mxu0
        %v2712 = vadd.f32 0.0, %v2711
        %v2713 = vpop.f32.mrf.mxu0
        %v2714 = vadd.f32 0.0, %v2713
        %2715 = vmatmul.bf16.gmra.mxu0 %v2649
        %v2716 = vpop.f32.mrf.mxu0
        %v2717 = vadd.f32 0.0, %v2716
        %v2718 = vpop.f32.mrf.mxu0
        %v2719 = vadd.f32 0.0, %v2718
        %2720 = vmatmul.bf16.gmra.mxu0 %v2652
        %v2721 = vpop.f32.mrf.mxu0
        %v2722 = vadd.f32 0.0, %v2721
        %v2723 = vpop.f32.mrf.mxu0
        %v2724 = vadd.f32 0.0, %v2723
        %2725 = vmatmul.bf16.gmra.mxu0 %v2655
        %v2726 = vpop.f32.mrf.mxu0
        %v2727 = vadd.f32 0.0, %v2726
        %v2728 = vpop.f32.mrf.mxu0
        %v2729 = vadd.f32 0.0, %v2728
        %2730 = vmatmul.bf16.gmra.mxu0 %v2658
        %v2731 = vpop.f32.mrf.mxu0
        %v2732 = vadd.f32 0.0, %v2731
        %v2733 = vpop.f32.mrf.mxu0
        %v2734 = vadd.f32 0.0, %v2733
        %2735 = vmatmul.bf16.gmra.mxu0 %v2661
        %v2736 = vpop.f32.mrf.mxu0
        %v2737 = vadd.f32 0.0, %v2736
        %v2738 = vpop.f32.mrf.mxu0
        %v2739 = vadd.f32 0.0, %v2738
        %2740 = vmatmul.bf16.gmra.mxu0 %v2664
        %v2741 = vpop.f32.mrf.mxu0
        %v2742 = vadd.f32 0.0, %v2741
        %v2743 = vpop.f32.mrf.mxu0
        %v2744 = vadd.f32 0.0, %v2743
        %2745 = vmatmul.bf16.gmra.mxu0 %v2667
        %v2746 = vpop.f32.mrf.mxu0
        %v2747 = vadd.f32 0.0, %v2746
        %v2748 = vpop.f32.mrf.mxu0
        %v2749 = vadd.f32 0.0, %v2748
        %2750 = vmatmul.bf16.gmra.mxu0 %v2670
        %v2751 = vpop.f32.mrf.mxu0
        %v2752 = vadd.f32 0.0, %v2751
        %v2753 = vpop.f32.mrf.mxu0
        %v2754 = vadd.f32 0.0, %v2753
        %2755 = vmatmul.bf16.gmra.mxu0 %v2673
        %v2756 = vpop.f32.mrf.mxu0
        %v2757 = vadd.f32 0.0, %v2756
        %v2758 = vpop.f32.mrf.mxu0
        %v2759 = vadd.f32 0.0, %v2758
        %2760 = vmatmul.bf16.gmra.mxu0 %v2676
        %v2761 = vpop.f32.mrf.mxu0
        %v2762 = vadd.f32 0.0, %v2761
        %v2763 = vpop.f32.mrf.mxu0
        %v2764 = vadd.f32 0.0, %v2763
        %2765 = vmatmul.bf16.gmra.mxu0 %v2679
        %v2766 = vpop.f32.mrf.mxu0
        %v2767 = vadd.f32 0.0, %v2766
        %v2768 = vpop.f32.mrf.mxu0
        %v2769 = vadd.f32 0.0, %v2768
        %2770 = vmatmul.bf16.gmra.mxu0 %v2682
        %v2771 = vpop.f32.mrf.mxu0
        %v2772 = vadd.f32 0.0, %v2771
        %v2773 = vpop.f32.mrf.mxu0
        %v2774 = vadd.f32 0.0, %v2773
        %2775 = vdwg.mxu0
        %v2776 = vadd.f32 %v2556, %v2697
        %v2777 = vadd.f32 %v2557, %v2699
        %v2778 = vadd.f32 %v2558, %v2702
        %v2779 = vadd.f32 %v2559, %v2704
        %v2780 = vadd.f32 %v2560, %v2707
        %v2781 = vadd.f32 %v2561, %v2709
        %v2782 = vadd.f32 %v2562, %v2712
        %v2783 = vadd.f32 %v2563, %v2714
        %v2784 = vadd.f32 %v2564, %v2717
        %v2785 = vadd.f32 %v2565, %v2719
        %v2786 = vadd.f32 %v2566, %v2722
        %v2787 = vadd.f32 %v2567, %v2724
        %v2788 = vadd.f32 %v2568, %v2727
        %v2789 = vadd.f32 %v2569, %v2729
        %v2790 = vadd.f32 %v2570, %v2732
        %v2791 = vadd.f32 %v2571, %v2734
        %v2792 = vadd.f32 %v2572, %v2737
        %v2793 = vadd.f32 %v2573, %v2739
        %v2794 = vadd.f32 %v2574, %v2742
        %v2795 = vadd.f32 %v2575, %v2744
        %v2796 = vadd.f32 %v2576, %v2747
        %v2797 = vadd.f32 %v2577, %v2749
        %v2798 = vadd.f32 %v2578, %v2752
        %v2799 = vadd.f32 %v2579, %v2754
        %v2800 = vadd.f32 %v2580, %v2757
        %v2801 = vadd.f32 %v2581, %v2759
        %v2802 = vadd.f32 %v2582, %v2762
        %v2803 = vadd.f32 %v2583, %v2764
        %v2804 = vadd.f32 %v2584, %v2767
        %v2805 = vadd.f32 %v2585, %v2769
        %v2806 = vadd.f32 %v2586, %v2772
        %v2807 = vadd.f32 %v2587, %v2774
        %2808 = vst [vmem:[%s163] sm:$0xff] %v2776
        %2809 = vst [vmem:[%s163 + $0x8] sm:$0xff] %v2777
        %2810 = vst [vmem:[%s163 + $0x10] sm:$0xff] %v2778
        %2811 = vst [vmem:[%s163 + $0x18] sm:$0xff] %v2779
        %2812 = vst [vmem:[%s163 + $0x20] sm:$0xff] %v2780
        %2813 = vst [vmem:[%s163 + $0x28] sm:$0xff] %v2781
        %2814 = vst [vmem:[%s163 + $0x30] sm:$0xff] %v2782
        %2815 = vst [vmem:[%s163 + $0x38] sm:$0xff] %v2783
        %2816 = vst [vmem:[%s163 + $0x40] sm:$0xff] %v2784
        %2817 = vst [vmem:[%s163 + $0x48] sm:$0xff] %v2785
        %2818 = vst [vmem:[%s163 + $0x50] sm:$0xff] %v2786
        %2819 = vst [vmem:[%s163 + $0x58] sm:$0xff] %v2787
        %2820 = vst [vmem:[%s163 + $0x60] sm:$0xff] %v2788
        %2821 = vst [vmem:[%s163 + $0x68] sm:$0xff] %v2789
        %2822 = vst [vmem:[%s163 + $0x70] sm:$0xff] %v2790
        %2823 = vst [vmem:[%s163 + $0x78] sm:$0xff] %v2791
        %2824 = vst [vmem:[%s163 + $0x80] sm:$0xff] %v2792
        %2825 = vst [vmem:[%s163 + $0x88] sm:$0xff] %v2793
        %2826 = vst [vmem:[%s163 + $0x90] sm:$0xff] %v2794
        %2827 = vst [vmem:[%s163 + $0x98] sm:$0xff] %v2795
        %2828 = vst [vmem:[%s163 + $0xa0] sm:$0xff] %v2796
        %2829 = vst [vmem:[%s163 + $0xa8] sm:$0xff] %v2797
        %2830 = vst [vmem:[%s163 + $0xb0] sm:$0xff] %v2798
        %2831 = vst [vmem:[%s163 + $0xb8] sm:$0xff] %v2799
        %2832 = vst [vmem:[%s163 + $0xc0] sm:$0xff] %v2800
        %2833 = vst [vmem:[%s163 + $0xc8] sm:$0xff] %v2801
        %2834 = vst [vmem:[%s163 + $0xd0] sm:$0xff] %v2802
        %2835 = vst [vmem:[%s163 + $0xd8] sm:$0xff] %v2803
        %2836 = vst [vmem:[%s163 + $0xe0] sm:$0xff] %v2804
        %2837 = vst [vmem:[%s163 + $0xe8] sm:$0xff] %v2805
        %2838 = vst [vmem:[%s163 + $0xf0] sm:$0xff] %v2806
        %2839 = vst [vmem:[%s163 + $0xf8] sm:$0xff] %v2807
        %v2840 = vld [vmem:[%s1773] sm:$0xe]
        %v2841 = vld [vmem:[%s1773 + $0x4] sm:$0xf]
        %v2842 = vld [vmem:[%s1773 + $0x8] sm:$0x1]
        %v2843 = vld [vmem:[%s1773 + $0xc] sm:$0xe]
        %v2844 = vld [vmem:[%s1773 + $0x10] sm:$0xf]
        %v2845 = vld [vmem:[%s1773 + $0x14] sm:$0x1]
        %v2846 = vld [vmem:[%s1773 + $0x18] sm:$0xe]
        %v2847 = vld [vmem:[%s1773 + $0x1c] sm:$0xf]
        %v2848 = vld [vmem:[%s1773 + $0x20] sm:$0x1]
        %v2849 = vld [vmem:[%s1773 + $0x24] sm:$0xe]
        %v2850 = vld [vmem:[%s1773 + $0x28] sm:$0xf]
        %v2851 = vld [vmem:[%s1773 + $0x2c] sm:$0x1]
        %v2852 = vld [vmem:[%s1773 + $0x30] sm:$0xe]
        %v2853 = vld [vmem:[%s1773 + $0x34] sm:$0xf]
        %v2854 = vld [vmem:[%s1773 + $0x38] sm:$0x1]
        %v2855 = vld [vmem:[%s1773 + $0x3c] sm:$0xe]
        %v2856 = vld [vmem:[%s1773 + $0x40] sm:$0xf]
        %v2857 = vld [vmem:[%s1773 + $0x44] sm:$0x1]
        %v2858 = vld [vmem:[%s1773 + $0x48] sm:$0xe]
        %v2859 = vld [vmem:[%s1773 + $0x4c] sm:$0xf]
        %v2860 = vld [vmem:[%s1773 + $0x50] sm:$0x1]
        %v2861 = vld [vmem:[%s1773 + $0x54] sm:$0xe]
        %v2862 = vld [vmem:[%s1773 + $0x58] sm:$0xf]
        %v2863 = vld [vmem:[%s1773 + $0x5c] sm:$0x1]
        %v2864 = vld [vmem:[%s1773 + $0x60] sm:$0xe]
        %v2865 = vld [vmem:[%s1773 + $0x64] sm:$0xf]
        %v2866 = vld [vmem:[%s1773 + $0x68] sm:$0x1]
        %v2867 = vld [vmem:[%s1773 + $0x6c] sm:$0xe]
        %v2868 = vld [vmem:[%s1773 + $0x70] sm:$0xf]
        %v2869 = vld [vmem:[%s1773 + $0x74] sm:$0x1]
        %v2870 = vld [vmem:[%s1773 + $0x78] sm:$0xe]
        %v2871 = vld [vmem:[%s1773 + $0x7c] sm:$0xf]
        %v2872 = vld [vmem:[%s1773 + $0x80] sm:$0x1]
        %v2873 = vld [vmem:[%s1773 + $0x84] sm:$0xe]
        %v2874 = vld [vmem:[%s1773 + $0x88] sm:$0xf]
        %v2875 = vld [vmem:[%s1773 + $0x8c] sm:$0x1]
        %v2876 = vld [vmem:[%s1773 + $0x90] sm:$0xe]
        %v2877 = vld [vmem:[%s1773 + $0x94] sm:$0xf]
        %v2878 = vld [vmem:[%s1773 + $0x98] sm:$0x1]
        %v2879 = vld [vmem:[%s1773 + $0x9c] sm:$0xe]
        %v2880 = vld [vmem:[%s1773 + $0xa0] sm:$0xf]
        %v2881 = vld [vmem:[%s1773 + $0xa4] sm:$0x1]
        %v2882 = vld [vmem:[%s1773 + $0xa8] sm:$0xe]
        %v2883 = vld [vmem:[%s1773 + $0xac] sm:$0xf]
        %v2884 = vld [vmem:[%s1773 + $0xb0] sm:$0x1]
        %v2885 = vld [vmem:[%s1773 + $0xb4] sm:$0xe]
        %v2886 = vld [vmem:[%s1773 + $0xb8] sm:$0xf]
        %v2887 = vld [vmem:[%s1773 + $0xbc] sm:$0x1]
        %v2936 = vrot.slane %v2840, 5
        %v2937 = vrot.slane %v2936, 4
        %v2938 = vrot.slane %v2841, 5
        %v2939 = vsel %vm1375, %v2937, %v2938
        %v2940 = vrot.slane %v2938, 4
        %v2941 = vrot.slane %v2842, 5
        %v2942 = vsel %vm1375, %v2940, %v2941
        %v2943 = vrot.slane %v2843, 5
        %v2944 = vrot.slane %v2943, 4
        %v2945 = vrot.slane %v2844, 5
        %v2946 = vsel %vm1375, %v2944, %v2945
        %v2947 = vrot.slane %v2945, 4
        %v2948 = vrot.slane %v2845, 5
        %v2949 = vsel %vm1375, %v2947, %v2948
        %v2950 = vrot.slane %v2846, 5
        %v2951 = vrot.slane %v2950, 4
        %v2952 = vrot.slane %v2847, 5
        %v2953 = vsel %vm1375, %v2951, %v2952
        %v2954 = vrot.slane %v2952, 4
        %v2955 = vrot.slane %v2848, 5
        %v2956 = vsel %vm1375, %v2954, %v2955
        %v2957 = vrot.slane %v2849, 5
        %v2958 = vrot.slane %v2957, 4
        %v2959 = vrot.slane %v2850, 5
        %v2960 = vsel %vm1375, %v2958, %v2959
        %v2961 = vrot.slane %v2959, 4
        %v2962 = vrot.slane %v2851, 5
        %v2963 = vsel %vm1375, %v2961, %v2962
        %v2964 = vrot.slane %v2852, 5
        %v2965 = vrot.slane %v2964, 4
        %v2966 = vrot.slane %v2853, 5
        %v2967 = vsel %vm1375, %v2965, %v2966
        %v2968 = vrot.slane %v2966, 4
        %v2969 = vrot.slane %v2854, 5
        %v2970 = vsel %vm1375, %v2968, %v2969
        %v2971 = vrot.slane %v2855, 5
        %v2972 = vrot.slane %v2971, 4
        %v2973 = vrot.slane %v2856, 5
        %v2974 = vsel %vm1375, %v2972, %v2973
        %v2975 = vrot.slane %v2973, 4
        %v2976 = vrot.slane %v2857, 5
        %v2977 = vsel %vm1375, %v2975, %v2976
        %v2978 = vrot.slane %v2858, 5
        %v2979 = vrot.slane %v2978, 4
        %v2980 = vrot.slane %v2859, 5
        %v2981 = vsel %vm1375, %v2979, %v2980
        %v2982 = vrot.slane %v2980, 4
        %v2983 = vrot.slane %v2860, 5
        %v2984 = vsel %vm1375, %v2982, %v2983
        %v2985 = vrot.slane %v2861, 5
        %v2986 = vrot.slane %v2985, 4
        %v2987 = vrot.slane %v2862, 5
        %v2988 = vsel %vm1375, %v2986, %v2987
        %v2989 = vrot.slane %v2987, 4
        %v2990 = vrot.slane %v2863, 5
        %v2991 = vsel %vm1375, %v2989, %v2990
        %v2992 = vrot.slane %v2864, 5
        %v2993 = vrot.slane %v2992, 4
        %v2994 = vrot.slane %v2865, 5
        %v2995 = vsel %vm1375, %v2993, %v2994
        %v2996 = vrot.slane %v2994, 4
        %v2997 = vrot.slane %v2866, 5
        %v2998 = vsel %vm1375, %v2996, %v2997
        %v2999 = vrot.slane %v2867, 5
        %v3000 = vrot.slane %v2999, 4
        %v3001 = vrot.slane %v2868, 5
        %v3002 = vsel %vm1375, %v3000, %v3001
        %v3003 = vrot.slane %v3001, 4
        %v3004 = vrot.slane %v2869, 5
        %v3005 = vsel %vm1375, %v3003, %v3004
        %v3006 = vrot.slane %v2870, 5
        %v3007 = vrot.slane %v3006, 4
        %v3008 = vrot.slane %v2871, 5
        %v3009 = vsel %vm1375, %v3007, %v3008
        %v3010 = vrot.slane %v3008, 4
        %v3011 = vrot.slane %v2872, 5
        %v3012 = vsel %vm1375, %v3010, %v3011
        %v3013 = vrot.slane %v2873, 5
        %v3014 = vrot.slane %v3013, 4
        %v3015 = vrot.slane %v2874, 5
        %v3016 = vsel %vm1375, %v3014, %v3015
        %v3017 = vrot.slane %v3015, 4
        %v3018 = vrot.slane %v2875, 5
        %v3019 = vsel %vm1375, %v3017, %v3018
        %v3020 = vrot.slane %v2876, 5
        %v3021 = vrot.slane %v3020, 4
        %v3022 = vrot.slane %v2877, 5
        %v3023 = vsel %vm1375, %v3021, %v3022
        %v3024 = vrot.slane %v3022, 4
        %v3025 = vrot.slane %v2878, 5
        %v3026 = vsel %vm1375, %v3024, %v3025
        %v3027 = vrot.slane %v2879, 5
        %v3028 = vrot.slane %v3027, 4
        %v3029 = vrot.slane %v2880, 5
        %v3030 = vsel %vm1375, %v3028, %v3029
        %v3031 = vrot.slane %v3029, 4
        %v3032 = vrot.slane %v2881, 5
        %v3033 = vsel %vm1375, %v3031, %v3032
        %v3034 = vrot.slane %v2882, 5
        %v3035 = vrot.slane %v3034, 4
        %v3036 = vrot.slane %v2883, 5
        %v3037 = vsel %vm1375, %v3035, %v3036
        %v3038 = vrot.slane %v3036, 4
        %v3039 = vrot.slane %v2884, 5
        %v3040 = vsel %vm1375, %v3038, %v3039
        %v3041 = vrot.slane %v2885, 5
        %v3042 = vrot.slane %v3041, 4
        %v3043 = vrot.slane %v2886, 5
        %v3044 = vsel %vm1375, %v3042, %v3043
        %v3045 = vrot.slane %v3043, 4
        %v3046 = vrot.slane %v2887, 5
        %v3047 = vsel %vm1375, %v3045, %v3046
        %v3048 = vld [vmem:[%s1 + $0x14] sm:$0xf]
        %v3049 = vld [vmem:[%s163] sm:$0xff]
        %v3050 = vld [vmem:[%s163 + $0x8] sm:$0xff]
        %v3051 = vld [vmem:[%s163 + $0x10] sm:$0xff]
        %v3052 = vld [vmem:[%s163 + $0x18] sm:$0xff]
        %v3053 = vld [vmem:[%s163 + $0x20] sm:$0xff]
        %v3054 = vld [vmem:[%s163 + $0x28] sm:$0xff]
        %v3055 = vld [vmem:[%s163 + $0x30] sm:$0xff]
        %v3056 = vld [vmem:[%s163 + $0x38] sm:$0xff]
        %v3057 = vld [vmem:[%s163 + $0x40] sm:$0xff]
        %v3058 = vld [vmem:[%s163 + $0x48] sm:$0xff]
        %v3059 = vld [vmem:[%s163 + $0x50] sm:$0xff]
        %v3060 = vld [vmem:[%s163 + $0x58] sm:$0xff]
        %v3061 = vld [vmem:[%s163 + $0x60] sm:$0xff]
        %v3062 = vld [vmem:[%s163 + $0x68] sm:$0xff]
        %v3063 = vld [vmem:[%s163 + $0x70] sm:$0xff]
        %v3064 = vld [vmem:[%s163 + $0x78] sm:$0xff]
        %v3065 = vld [vmem:[%s163 + $0x80] sm:$0xff]
        %v3066 = vld [vmem:[%s163 + $0x88] sm:$0xff]
        %v3067 = vld [vmem:[%s163 + $0x90] sm:$0xff]
        %v3068 = vld [vmem:[%s163 + $0x98] sm:$0xff]
        %v3069 = vld [vmem:[%s163 + $0xa0] sm:$0xff]
        %v3070 = vld [vmem:[%s163 + $0xa8] sm:$0xff]
        %v3071 = vld [vmem:[%s163 + $0xb0] sm:$0xff]
        %v3072 = vld [vmem:[%s163 + $0xb8] sm:$0xff]
        %v3073 = vld [vmem:[%s163 + $0xc0] sm:$0xff]
        %v3074 = vld [vmem:[%s163 + $0xc8] sm:$0xff]
        %v3075 = vld [vmem:[%s163 + $0xd0] sm:$0xff]
        %v3076 = vld [vmem:[%s163 + $0xd8] sm:$0xff]
        %v3077 = vld [vmem:[%s163 + $0xe0] sm:$0xff]
        %v3078 = vld [vmem:[%s163 + $0xe8] sm:$0xff]
        %v3079 = vld [vmem:[%s163 + $0xf0] sm:$0xff]
        %v3080 = vld [vmem:[%s163 + $0xf8] sm:$0xff]
        %v3081 = vunpack.c.l.b16 %v2939
        %v3082 = vunpack.c.l.b16 %v2942
        %v3083 = vunpack.c.l.b16 %v2946
        %v3084 = vunpack.c.l.b16 %v2949
        %v3085 = vunpack.c.l.b16 %v2953
        %v3086 = vunpack.c.l.b16 %v2956
        %v3087 = vunpack.c.l.b16 %v2960
        %v3088 = vunpack.c.l.b16 %v2963
        %v3089 = vunpack.c.l.b16 %v2967
        %v3090 = vunpack.c.l.b16 %v2970
        %v3091 = vunpack.c.l.b16 %v2974
        %v3092 = vunpack.c.l.b16 %v2977
        %v3093 = vunpack.c.l.b16 %v2981
        %v3094 = vunpack.c.l.b16 %v2984
        %v3095 = vunpack.c.l.b16 %v2988
        %v3096 = vunpack.c.l.b16 %v2991
        %v3097 = vunpack.c.l.b16 %v2995
        %v3098 = vunpack.c.l.b16 %v2998
        %v3099 = vunpack.c.l.b16 %v3002
        %v3100 = vunpack.c.l.b16 %v3005
        %v3101 = vunpack.c.l.b16 %v3009
        %v3102 = vunpack.c.l.b16 %v3012
        %v3103 = vunpack.c.l.b16 %v3016
        %v3104 = vunpack.c.l.b16 %v3019
        %v3105 = vunpack.c.l.b16 %v3023
        %v3106 = vunpack.c.l.b16 %v3026
        %v3107 = vunpack.c.l.b16 %v3030
        %v3108 = vunpack.c.l.b16 %v3033
        %v3109 = vunpack.c.l.b16 %v3037
        %v3110 = vunpack.c.l.b16 %v3040
        %v3111 = vunpack.c.l.b16 %v3044
        %v3112 = vunpack.c.l.b16 %v3047
        %v3113 = vpack.c.b16 %v3082, %v3081
        %v3114 = vpack.c.b16 %v3084, %v3083
        %v3115 = vpack.c.b16 %v3086, %v3085
        %v3116 = vpack.c.b16 %v3088, %v3087
        %v3117 = vpack.c.b16 %v3090, %v3089
        %v3118 = vpack.c.b16 %v3092, %v3091
        %v3119 = vpack.c.b16 %v3094, %v3093
        %v3120 = vpack.c.b16 %v3096, %v3095
        %v3121 = vpack.c.b16 %v3098, %v3097
        %v3122 = vpack.c.b16 %v3100, %v3099
        %v3123 = vpack.c.b16 %v3102, %v3101
        %v3124 = vpack.c.b16 %v3104, %v3103
        %v3125 = vpack.c.b16 %v3106, %v3105
        %v3126 = vpack.c.b16 %v3108, %v3107
        %v3127 = vpack.c.b16 %v3110, %v3109
        %v3128 = vpack.c.b16 %v3112, %v3111
        %v3130 = vsel %vm351, %v3113, 0
        %v3133 = vsel %vm351, %v3114, 0
        %v3136 = vsel %vm351, %v3115, 0
        %v3139 = vsel %vm351, %v3116, 0
        %v3142 = vsel %vm351, %v3117, 0
        %v3145 = vsel %vm351, %v3118, 0
        %v3148 = vsel %vm351, %v3119, 0
        %v3151 = vsel %vm351, %v3120, 0
        %v3154 = vsel %vm351, %v3121, 0
        %v3157 = vsel %vm351, %v3122, 0
        %v3160 = vsel %vm351, %v3123, 0
        %v3163 = vsel %vm351, %v3124, 0
        %v3166 = vsel %vm351, %v3125, 0
        %v3169 = vsel %vm351, %v3126, 0
        %v3172 = vsel %vm351, %v3127, 0
        %v3175 = vsel %vm351, %v3128, 0
        %v3178 = vsel %vm400, %v3048, 0
        %3180 = vmatpush.bf16.msra.mxu0 0
        %3181 = vmatpush.bf16.msra.mxu0 0
        %3182 = vmatpush.bf16.msra.mxu0 0
        %3183 = vmatpush.bf16.msra.mxu0 0
        %3184 = vmatpush.bf16.msra.mxu0 0
        %3185 = vmatpush.bf16.msra.mxu0 0
        %3186 = vmatpush.bf16.msra.mxu0 0
        %3187 = vmatpush.bf16.msra.mxu0 %v3178
        %3188 = vmatmul.bf16.gmra.mxu0 %v3130
        %v3189 = vpop.f32.mrf.mxu0
        %v3190 = vadd.f32 0.0, %v3189
        %v3191 = vpop.f32.mrf.mxu0
        %v3192 = vadd.f32 0.0, %v3191
        %3193 = vmatmul.bf16.gmra.mxu0 %v3133
        %v3194 = vpop.f32.mrf.mxu0
        %v3195 = vadd.f32 0.0, %v3194
        %v3196 = vpop.f32.mrf.mxu0
        %v3197 = vadd.f32 0.0, %v3196
        %3198 = vmatmul.bf16.gmra.mxu0 %v3136
        %v3199 = vpop.f32.mrf.mxu0
        %v3200 = vadd.f32 0.0, %v3199
        %v3201 = vpop.f32.mrf.mxu0
        %v3202 = vadd.f32 0.0, %v3201
        %3203 = vmatmul.bf16.gmra.mxu0 %v3139
        %v3204 = vpop.f32.mrf.mxu0
        %v3205 = vadd.f32 0.0, %v3204
        %v3206 = vpop.f32.mrf.mxu0
        %v3207 = vadd.f32 0.0, %v3206
        %3208 = vmatmul.bf16.gmra.mxu0 %v3142
        %v3209 = vpop.f32.mrf.mxu0
        %v3210 = vadd.f32 0.0, %v3209
        %v3211 = vpop.f32.mrf.mxu0
        %v3212 = vadd.f32 0.0, %v3211
        %3213 = vmatmul.bf16.gmra.mxu0 %v3145
        %v3214 = vpop.f32.mrf.mxu0
        %v3215 = vadd.f32 0.0, %v3214
        %v3216 = vpop.f32.mrf.mxu0
        %v3217 = vadd.f32 0.0, %v3216
        %3218 = vmatmul.bf16.gmra.mxu0 %v3148
        %v3219 = vpop.f32.mrf.mxu0
        %v3220 = vadd.f32 0.0, %v3219
        %v3221 = vpop.f32.mrf.mxu0
        %v3222 = vadd.f32 0.0, %v3221
        %3223 = vmatmul.bf16.gmra.mxu0 %v3151
        %v3224 = vpop.f32.mrf.mxu0
        %v3225 = vadd.f32 0.0, %v3224
        %v3226 = vpop.f32.mrf.mxu0
        %v3227 = vadd.f32 0.0, %v3226
        %3228 = vmatmul.bf16.gmra.mxu0 %v3154
        %v3229 = vpop.f32.mrf.mxu0
        %v3230 = vadd.f32 0.0, %v3229
        %v3231 = vpop.f32.mrf.mxu0
        %v3232 = vadd.f32 0.0, %v3231
        %3233 = vmatmul.bf16.gmra.mxu0 %v3157
        %v3234 = vpop.f32.mrf.mxu0
        %v3235 = vadd.f32 0.0, %v3234
        %v3236 = vpop.f32.mrf.mxu0
        %v3237 = vadd.f32 0.0, %v3236
        %3238 = vmatmul.bf16.gmra.mxu0 %v3160
        %v3239 = vpop.f32.mrf.mxu0
        %v3240 = vadd.f32 0.0, %v3239
        %v3241 = vpop.f32.mrf.mxu0
        %v3242 = vadd.f32 0.0, %v3241
        %3243 = vmatmul.bf16.gmra.mxu0 %v3163
        %v3244 = vpop.f32.mrf.mxu0
        %v3245 = vadd.f32 0.0, %v3244
        %v3246 = vpop.f32.mrf.mxu0
        %v3247 = vadd.f32 0.0, %v3246
        %3248 = vmatmul.bf16.gmra.mxu0 %v3166
        %v3249 = vpop.f32.mrf.mxu0
        %v3250 = vadd.f32 0.0, %v3249
        %v3251 = vpop.f32.mrf.mxu0
        %v3252 = vadd.f32 0.0, %v3251
        %3253 = vmatmul.bf16.gmra.mxu0 %v3169
        %v3254 = vpop.f32.mrf.mxu0
        %v3255 = vadd.f32 0.0, %v3254
        %v3256 = vpop.f32.mrf.mxu0
        %v3257 = vadd.f32 0.0, %v3256
        %3258 = vmatmul.bf16.gmra.mxu0 %v3172
        %v3259 = vpop.f32.mrf.mxu0
        %v3260 = vadd.f32 0.0, %v3259
        %v3261 = vpop.f32.mrf.mxu0
        %v3262 = vadd.f32 0.0, %v3261
        %3263 = vmatmul.bf16.gmra.mxu0 %v3175
        %v3264 = vpop.f32.mrf.mxu0
        %v3265 = vadd.f32 0.0, %v3264
        %v3266 = vpop.f32.mrf.mxu0
        %v3267 = vadd.f32 0.0, %v3266
        %3268 = vdwg.mxu0
        %v3269 = vadd.f32 %v3049, %v3190
        %v3270 = vadd.f32 %v3050, %v3192
        %v3271 = vadd.f32 %v3051, %v3195
        %v3272 = vadd.f32 %v3052, %v3197
        %v3273 = vadd.f32 %v3053, %v3200
        %v3274 = vadd.f32 %v3054, %v3202
        %v3275 = vadd.f32 %v3055, %v3205
        %v3276 = vadd.f32 %v3056, %v3207
        %v3277 = vadd.f32 %v3057, %v3210
        %v3278 = vadd.f32 %v3058, %v3212
        %v3279 = vadd.f32 %v3059, %v3215
        %v3280 = vadd.f32 %v3060, %v3217
        %v3281 = vadd.f32 %v3061, %v3220
        %v3282 = vadd.f32 %v3062, %v3222
        %v3283 = vadd.f32 %v3063, %v3225
        %v3284 = vadd.f32 %v3064, %v3227
        %v3285 = vadd.f32 %v3065, %v3230
        %v3286 = vadd.f32 %v3066, %v3232
        %v3287 = vadd.f32 %v3067, %v3235
        %v3288 = vadd.f32 %v3068, %v3237
        %v3289 = vadd.f32 %v3069, %v3240
        %v3290 = vadd.f32 %v3070, %v3242
        %v3291 = vadd.f32 %v3071, %v3245
        %v3292 = vadd.f32 %v3072, %v3247
        %v3293 = vadd.f32 %v3073, %v3250
        %v3294 = vadd.f32 %v3074, %v3252
        %v3295 = vadd.f32 %v3075, %v3255
        %v3296 = vadd.f32 %v3076, %v3257
        %v3297 = vadd.f32 %v3077, %v3260
        %v3298 = vadd.f32 %v3078, %v3262
        %v3299 = vadd.f32 %v3079, %v3265
        %v3300 = vadd.f32 %v3080, %v3267
        %3301 = vst [vmem:[%s163] sm:$0xff] %v3269
        %3302 = vst [vmem:[%s163 + $0x8] sm:$0xff] %v3270
        %3303 = vst [vmem:[%s163 + $0x10] sm:$0xff] %v3271
        %3304 = vst [vmem:[%s163 + $0x18] sm:$0xff] %v3272
        %3305 = vst [vmem:[%s163 + $0x20] sm:$0xff] %v3273
        %3306 = vst [vmem:[%s163 + $0x28] sm:$0xff] %v3274
        %3307 = vst [vmem:[%s163 + $0x30] sm:$0xff] %v3275
        %3308 = vst [vmem:[%s163 + $0x38] sm:$0xff] %v3276
        %3309 = vst [vmem:[%s163 + $0x40] sm:$0xff] %v3277
        %3310 = vst [vmem:[%s163 + $0x48] sm:$0xff] %v3278
        %3311 = vst [vmem:[%s163 + $0x50] sm:$0xff] %v3279
        %3312 = vst [vmem:[%s163 + $0x58] sm:$0xff] %v3280
        %3313 = vst [vmem:[%s163 + $0x60] sm:$0xff] %v3281
        %3314 = vst [vmem:[%s163 + $0x68] sm:$0xff] %v3282
        %3315 = vst [vmem:[%s163 + $0x70] sm:$0xff] %v3283
        %3316 = vst [vmem:[%s163 + $0x78] sm:$0xff] %v3284
        %3317 = vst [vmem:[%s163 + $0x80] sm:$0xff] %v3285
        %3318 = vst [vmem:[%s163 + $0x88] sm:$0xff] %v3286
        %3319 = vst [vmem:[%s163 + $0x90] sm:$0xff] %v3287
        %3320 = vst [vmem:[%s163 + $0x98] sm:$0xff] %v3288
        %3321 = vst [vmem:[%s163 + $0xa0] sm:$0xff] %v3289
        %3322 = vst [vmem:[%s163 + $0xa8] sm:$0xff] %v3290
        %3323 = vst [vmem:[%s163 + $0xb0] sm:$0xff] %v3291
        %3324 = vst [vmem:[%s163 + $0xb8] sm:$0xff] %v3292
        %3325 = vst [vmem:[%s163 + $0xc0] sm:$0xff] %v3293
        %3326 = vst [vmem:[%s163 + $0xc8] sm:$0xff] %v3294
        %3327 = vst [vmem:[%s163 + $0xd0] sm:$0xff] %v3295
        %3328 = vst [vmem:[%s163 + $0xd8] sm:$0xff] %v3296
        %3329 = vst [vmem:[%s163 + $0xe0] sm:$0xff] %v3297
        %3330 = vst [vmem:[%s163 + $0xe8] sm:$0xff] %v3298
        %3331 = vst [vmem:[%s163 + $0xf0] sm:$0xff] %v3299
        %3332 = vst [vmem:[%s163 + $0xf8] sm:$0xff] %v3300
        %s3333 = scalar_lea.vmem %s168, 24
        %v3334 = vld [vmem:[%s3333] sm:$0xf]
        %v3335 = vld [vmem:[%s3333 + $0x4] sm:$0xf]
        %v3336 = vld [vmem:[%s3333 + $0xc] sm:$0xf]
        %v3337 = vld [vmem:[%s3333 + $0x10] sm:$0xf]
        %v3338 = vld [vmem:[%s3333 + $0x18] sm:$0xf]
        %v3339 = vld [vmem:[%s3333 + $0x1c] sm:$0xf]
        %v3340 = vld [vmem:[%s3333 + $0x24] sm:$0xf]
        %v3341 = vld [vmem:[%s3333 + $0x28] sm:$0xf]
        %v3342 = vld [vmem:[%s3333 + $0x30] sm:$0xf]
        %v3343 = vld [vmem:[%s3333 + $0x34] sm:$0xf]
        %v3344 = vld [vmem:[%s3333 + $0x3c] sm:$0xf]
        %v3345 = vld [vmem:[%s3333 + $0x40] sm:$0xf]
        %v3346 = vld [vmem:[%s3333 + $0x48] sm:$0xf]
        %v3347 = vld [vmem:[%s3333 + $0x4c] sm:$0xf]
        %v3348 = vld [vmem:[%s3333 + $0x54] sm:$0xf]
        %v3349 = vld [vmem:[%s3333 + $0x58] sm:$0xf]
        %v3350 = vld [vmem:[%s3333 + $0x60] sm:$0xf]
        %v3351 = vld [vmem:[%s3333 + $0x64] sm:$0xf]
        %v3352 = vld [vmem:[%s3333 + $0x6c] sm:$0xf]
        %v3353 = vld [vmem:[%s3333 + $0x70] sm:$0xf]
        %v3354 = vld [vmem:[%s3333 + $0x78] sm:$0xf]
        %v3355 = vld [vmem:[%s3333 + $0x7c] sm:$0xf]
        %v3356 = vld [vmem:[%s3333 + $0x84] sm:$0xf]
        %v3357 = vld [vmem:[%s3333 + $0x88] sm:$0xf]
        %v3358 = vld [vmem:[%s3333 + $0x90] sm:$0xf]
        %v3359 = vld [vmem:[%s3333 + $0x94] sm:$0xf]
        %v3360 = vld [vmem:[%s3333 + $0x9c] sm:$0xf]
        %v3361 = vld [vmem:[%s3333 + $0xa0] sm:$0xf]
        %v3362 = vld [vmem:[%s3333 + $0xa8] sm:$0xf]
        %v3363 = vld [vmem:[%s3333 + $0xac] sm:$0xf]
        %v3364 = vld [vmem:[%s3333 + $0xb4] sm:$0xf]
        %v3365 = vld [vmem:[%s3333 + $0xb8] sm:$0xf]
        %v3366 = vld [vmem:[%s1 + $0x18] sm:$0xf]
        %v3367 = vld [vmem:[%s163] sm:$0xff]
        %v3368 = vld [vmem:[%s163 + $0x8] sm:$0xff]
        %v3369 = vld [vmem:[%s163 + $0x10] sm:$0xff]
        %v3370 = vld [vmem:[%s163 + $0x18] sm:$0xff]
        %v3371 = vld [vmem:[%s163 + $0x20] sm:$0xff]
        %v3372 = vld [vmem:[%s163 + $0x28] sm:$0xff]
        %v3373 = vld [vmem:[%s163 + $0x30] sm:$0xff]
        %v3374 = vld [vmem:[%s163 + $0x38] sm:$0xff]
        %v3375 = vld [vmem:[%s163 + $0x40] sm:$0xff]
        %v3376 = vld [vmem:[%s163 + $0x48] sm:$0xff]
        %v3377 = vld [vmem:[%s163 + $0x50] sm:$0xff]
        %v3378 = vld [vmem:[%s163 + $0x58] sm:$0xff]
        %v3379 = vld [vmem:[%s163 + $0x60] sm:$0xff]
        %v3380 = vld [vmem:[%s163 + $0x68] sm:$0xff]
        %v3381 = vld [vmem:[%s163 + $0x70] sm:$0xff]
        %v3382 = vld [vmem:[%s163 + $0x78] sm:$0xff]
        %v3383 = vld [vmem:[%s163 + $0x80] sm:$0xff]
        %v3384 = vld [vmem:[%s163 + $0x88] sm:$0xff]
        %v3385 = vld [vmem:[%s163 + $0x90] sm:$0xff]
        %v3386 = vld [vmem:[%s163 + $0x98] sm:$0xff]
        %v3387 = vld [vmem:[%s163 + $0xa0] sm:$0xff]
        %v3388 = vld [vmem:[%s163 + $0xa8] sm:$0xff]
        %v3389 = vld [vmem:[%s163 + $0xb0] sm:$0xff]
        %v3390 = vld [vmem:[%s163 + $0xb8] sm:$0xff]
        %v3391 = vld [vmem:[%s163 + $0xc0] sm:$0xff]
        %v3392 = vld [vmem:[%s163 + $0xc8] sm:$0xff]
        %v3393 = vld [vmem:[%s163 + $0xd0] sm:$0xff]
        %v3394 = vld [vmem:[%s163 + $0xd8] sm:$0xff]
        %v3395 = vld [vmem:[%s163 + $0xe0] sm:$0xff]
        %v3396 = vld [vmem:[%s163 + $0xe8] sm:$0xff]
        %v3397 = vld [vmem:[%s163 + $0xf0] sm:$0xff]
        %v3398 = vld [vmem:[%s163 + $0xf8] sm:$0xff]
        %v3431 = vunpack.c.l.b16 %v3334
        %v3432 = vunpack.c.l.b16 %v3335
        %v3433 = vunpack.c.l.b16 %v3336
        %v3434 = vunpack.c.l.b16 %v3337
        %v3435 = vunpack.c.l.b16 %v3338
        %v3436 = vunpack.c.l.b16 %v3339
        %v3437 = vunpack.c.l.b16 %v3340
        %v3438 = vunpack.c.l.b16 %v3341
        %v3439 = vunpack.c.l.b16 %v3342
        %v3440 = vunpack.c.l.b16 %v3343
        %v3441 = vunpack.c.l.b16 %v3344
        %v3442 = vunpack.c.l.b16 %v3345
        %v3443 = vunpack.c.l.b16 %v3346
        %v3444 = vunpack.c.l.b16 %v3347
        %v3445 = vunpack.c.l.b16 %v3348
        %v3446 = vunpack.c.l.b16 %v3349
        %v3447 = vunpack.c.l.b16 %v3350
        %v3448 = vunpack.c.l.b16 %v3351
        %v3449 = vunpack.c.l.b16 %v3352
        %v3450 = vunpack.c.l.b16 %v3353
        %v3451 = vunpack.c.l.b16 %v3354
        %v3452 = vunpack.c.l.b16 %v3355
        %v3453 = vunpack.c.l.b16 %v3356
        %v3454 = vunpack.c.l.b16 %v3357
        %v3455 = vunpack.c.l.b16 %v3358
        %v3456 = vunpack.c.l.b16 %v3359
        %v3457 = vunpack.c.l.b16 %v3360
        %v3458 = vunpack.c.l.b16 %v3361
        %v3459 = vunpack.c.l.b16 %v3362
        %v3460 = vunpack.c.l.b16 %v3363
        %v3461 = vunpack.c.l.b16 %v3364
        %v3462 = vunpack.c.l.b16 %v3365
        %v3463 = vpack.c.b16 %v3432, %v3431
        %v3464 = vpack.c.b16 %v3434, %v3433
        %v3465 = vpack.c.b16 %v3436, %v3435
        %v3466 = vpack.c.b16 %v3438, %v3437
        %v3467 = vpack.c.b16 %v3440, %v3439
        %v3468 = vpack.c.b16 %v3442, %v3441
        %v3469 = vpack.c.b16 %v3444, %v3443
        %v3470 = vpack.c.b16 %v3446, %v3445
        %v3471 = vpack.c.b16 %v3448, %v3447
        %v3472 = vpack.c.b16 %v3450, %v3449
        %v3473 = vpack.c.b16 %v3452, %v3451
        %v3474 = vpack.c.b16 %v3454, %v3453
        %v3475 = vpack.c.b16 %v3456, %v3455
        %v3476 = vpack.c.b16 %v3458, %v3457
        %v3477 = vpack.c.b16 %v3460, %v3459
        %v3478 = vpack.c.b16 %v3462, %v3461
        %v3480 = vsel %vm351, %v3463, 0
        %v3483 = vsel %vm351, %v3464, 0
        %v3486 = vsel %vm351, %v3465, 0
        %v3489 = vsel %vm351, %v3466, 0
        %v3492 = vsel %vm351, %v3467, 0
        %v3495 = vsel %vm351, %v3468, 0
        %v3498 = vsel %vm351, %v3469, 0
        %v3501 = vsel %vm351, %v3470, 0
        %v3504 = vsel %vm351, %v3471, 0
        %v3507 = vsel %vm351, %v3472, 0
        %v3510 = vsel %vm351, %v3473, 0
        %v3513 = vsel %vm351, %v3474, 0
        %v3516 = vsel %vm351, %v3475, 0
        %v3519 = vsel %vm351, %v3476, 0
        %v3522 = vsel %vm351, %v3477, 0
        %v3525 = vsel %vm351, %v3478, 0
        %v3528 = vsel %vm400, %v3366, 0
        %3530 = vmatpush.bf16.msra.mxu0 0
        %3531 = vmatpush.bf16.msra.mxu0 0
        %3532 = vmatpush.bf16.msra.mxu0 0
        %3533 = vmatpush.bf16.msra.mxu0 0
        %3534 = vmatpush.bf16.msra.mxu0 0
        %3535 = vmatpush.bf16.msra.mxu0 0
        %3536 = vmatpush.bf16.msra.mxu0 0
        %3537 = vmatpush.bf16.msra.mxu0 %v3528
        %3538 = vmatmul.bf16.gmra.mxu0 %v3480
        %v3539 = vpop.f32.mrf.mxu0
        %v3540 = vadd.f32 0.0, %v3539
        %v3541 = vpop.f32.mrf.mxu0
        %v3542 = vadd.f32 0.0, %v3541
        %3543 = vmatmul.bf16.gmra.mxu0 %v3483
        %v3544 = vpop.f32.mrf.mxu0
        %v3545 = vadd.f32 0.0, %v3544
        %v3546 = vpop.f32.mrf.mxu0
        %v3547 = vadd.f32 0.0, %v3546
        %3548 = vmatmul.bf16.gmra.mxu0 %v3486
        %v3549 = vpop.f32.mrf.mxu0
        %v3550 = vadd.f32 0.0, %v3549
        %v3551 = vpop.f32.mrf.mxu0
        %v3552 = vadd.f32 0.0, %v3551
        %3553 = vmatmul.bf16.gmra.mxu0 %v3489
        %v3554 = vpop.f32.mrf.mxu0
        %v3555 = vadd.f32 0.0, %v3554
        %v3556 = vpop.f32.mrf.mxu0
        %v3557 = vadd.f32 0.0, %v3556
        %3558 = vmatmul.bf16.gmra.mxu0 %v3492
        %v3559 = vpop.f32.mrf.mxu0
        %v3560 = vadd.f32 0.0, %v3559
        %v3561 = vpop.f32.mrf.mxu0
        %v3562 = vadd.f32 0.0, %v3561
        %3563 = vmatmul.bf16.gmra.mxu0 %v3495
        %v3564 = vpop.f32.mrf.mxu0
        %v3565 = vadd.f32 0.0, %v3564
        %v3566 = vpop.f32.mrf.mxu0
        %v3567 = vadd.f32 0.0, %v3566
        %3568 = vmatmul.bf16.gmra.mxu0 %v3498
        %v3569 = vpop.f32.mrf.mxu0
        %v3570 = vadd.f32 0.0, %v3569
        %v3571 = vpop.f32.mrf.mxu0
        %v3572 = vadd.f32 0.0, %v3571
        %3573 = vmatmul.bf16.gmra.mxu0 %v3501
        %v3574 = vpop.f32.mrf.mxu0
        %v3575 = vadd.f32 0.0, %v3574
        %v3576 = vpop.f32.mrf.mxu0
        %v3577 = vadd.f32 0.0, %v3576
        %3578 = vmatmul.bf16.gmra.mxu0 %v3504
        %v3579 = vpop.f32.mrf.mxu0
        %v3580 = vadd.f32 0.0, %v3579
        %v3581 = vpop.f32.mrf.mxu0
        %v3582 = vadd.f32 0.0, %v3581
        %3583 = vmatmul.bf16.gmra.mxu0 %v3507
        %v3584 = vpop.f32.mrf.mxu0
        %v3585 = vadd.f32 0.0, %v3584
        %v3586 = vpop.f32.mrf.mxu0
        %v3587 = vadd.f32 0.0, %v3586
        %3588 = vmatmul.bf16.gmra.mxu0 %v3510
        %v3589 = vpop.f32.mrf.mxu0
        %v3590 = vadd.f32 0.0, %v3589
        %v3591 = vpop.f32.mrf.mxu0
        %v3592 = vadd.f32 0.0, %v3591
        %3593 = vmatmul.bf16.gmra.mxu0 %v3513
        %v3594 = vpop.f32.mrf.mxu0
        %v3595 = vadd.f32 0.0, %v3594
        %v3596 = vpop.f32.mrf.mxu0
        %v3597 = vadd.f32 0.0, %v3596
        %3598 = vmatmul.bf16.gmra.mxu0 %v3516
        %v3599 = vpop.f32.mrf.mxu0
        %v3600 = vadd.f32 0.0, %v3599
        %v3601 = vpop.f32.mrf.mxu0
        %v3602 = vadd.f32 0.0, %v3601
        %3603 = vmatmul.bf16.gmra.mxu0 %v3519
        %v3604 = vpop.f32.mrf.mxu0
        %v3605 = vadd.f32 0.0, %v3604
        %v3606 = vpop.f32.mrf.mxu0
        %v3607 = vadd.f32 0.0, %v3606
        %3608 = vmatmul.bf16.gmra.mxu0 %v3522
        %v3609 = vpop.f32.mrf.mxu0
        %v3610 = vadd.f32 0.0, %v3609
        %v3611 = vpop.f32.mrf.mxu0
        %v3612 = vadd.f32 0.0, %v3611
        %3613 = vmatmul.bf16.gmra.mxu0 %v3525
        %v3614 = vpop.f32.mrf.mxu0
        %v3615 = vadd.f32 0.0, %v3614
        %v3616 = vpop.f32.mrf.mxu0
        %v3617 = vadd.f32 0.0, %v3616
        %3618 = vdwg.mxu0
        %v3619 = vadd.f32 %v3367, %v3540
        %v3620 = vadd.f32 %v3368, %v3542
        %v3621 = vadd.f32 %v3369, %v3545
        %v3622 = vadd.f32 %v3370, %v3547
        %v3623 = vadd.f32 %v3371, %v3550
        %v3624 = vadd.f32 %v3372, %v3552
        %v3625 = vadd.f32 %v3373, %v3555
        %v3626 = vadd.f32 %v3374, %v3557
        %v3627 = vadd.f32 %v3375, %v3560
        %v3628 = vadd.f32 %v3376, %v3562
        %v3629 = vadd.f32 %v3377, %v3565
        %v3630 = vadd.f32 %v3378, %v3567
        %v3631 = vadd.f32 %v3379, %v3570
        %v3632 = vadd.f32 %v3380, %v3572
        %v3633 = vadd.f32 %v3381, %v3575
        %v3634 = vadd.f32 %v3382, %v3577
        %v3635 = vadd.f32 %v3383, %v3580
        %v3636 = vadd.f32 %v3384, %v3582
        %v3637 = vadd.f32 %v3385, %v3585
        %v3638 = vadd.f32 %v3386, %v3587
        %v3639 = vadd.f32 %v3387, %v3590
        %v3640 = vadd.f32 %v3388, %v3592
        %v3641 = vadd.f32 %v3389, %v3595
        %v3642 = vadd.f32 %v3390, %v3597
        %v3643 = vadd.f32 %v3391, %v3600
        %v3644 = vadd.f32 %v3392, %v3602
        %v3645 = vadd.f32 %v3393, %v3605
        %v3646 = vadd.f32 %v3394, %v3607
        %v3647 = vadd.f32 %v3395, %v3610
        %v3648 = vadd.f32 %v3396, %v3612
        %v3649 = vadd.f32 %v3397, %v3615
        %v3650 = vadd.f32 %v3398, %v3617
        %3651 = vst [vmem:[%s163] sm:$0xff] %v3619
        %3652 = vst [vmem:[%s163 + $0x8] sm:$0xff] %v3620
        %3653 = vst [vmem:[%s163 + $0x10] sm:$0xff] %v3621
        %3654 = vst [vmem:[%s163 + $0x18] sm:$0xff] %v3622
        %3655 = vst [vmem:[%s163 + $0x20] sm:$0xff] %v3623
        %3656 = vst [vmem:[%s163 + $0x28] sm:$0xff] %v3624
        %3657 = vst [vmem:[%s163 + $0x30] sm:$0xff] %v3625
        %3658 = vst [vmem:[%s163 + $0x38] sm:$0xff] %v3626
        %3659 = vst [vmem:[%s163 + $0x40] sm:$0xff] %v3627
        %3660 = vst [vmem:[%s163 + $0x48] sm:$0xff] %v3628
        %3661 = vst [vmem:[%s163 + $0x50] sm:$0xff] %v3629
        %3662 = vst [vmem:[%s163 + $0x58] sm:$0xff] %v3630
        %3663 = vst [vmem:[%s163 + $0x60] sm:$0xff] %v3631
        %3664 = vst [vmem:[%s163 + $0x68] sm:$0xff] %v3632
        %3665 = vst [vmem:[%s163 + $0x70] sm:$0xff] %v3633
        %3666 = vst [vmem:[%s163 + $0x78] sm:$0xff] %v3634
        %3667 = vst [vmem:[%s163 + $0x80] sm:$0xff] %v3635
        %3668 = vst [vmem:[%s163 + $0x88] sm:$0xff] %v3636
        %3669 = vst [vmem:[%s163 + $0x90] sm:$0xff] %v3637
        %3670 = vst [vmem:[%s163 + $0x98] sm:$0xff] %v3638
        %3671 = vst [vmem:[%s163 + $0xa0] sm:$0xff] %v3639
        %3672 = vst [vmem:[%s163 + $0xa8] sm:$0xff] %v3640
        %3673 = vst [vmem:[%s163 + $0xb0] sm:$0xff] %v3641
        %3674 = vst [vmem:[%s163 + $0xb8] sm:$0xff] %v3642
        %3675 = vst [vmem:[%s163 + $0xc0] sm:$0xff] %v3643
        %3676 = vst [vmem:[%s163 + $0xc8] sm:$0xff] %v3644
        %3677 = vst [vmem:[%s163 + $0xd0] sm:$0xff] %v3645
        %3678 = vst [vmem:[%s163 + $0xd8] sm:$0xff] %v3646
        %3679 = vst [vmem:[%s163 + $0xe0] sm:$0xff] %v3647
        %3680 = vst [vmem:[%s163 + $0xe8] sm:$0xff] %v3648
        %3681 = vst [vmem:[%s163 + $0xf0] sm:$0xff] %v3649
        %3682 = vst [vmem:[%s163 + $0xf8] sm:$0xff] %v3650
        %v3683 = vld [vmem:[%s3333] sm:$0xf]
        %v3684 = vld [vmem:[%s3333 + $0x4] sm:$0xf]
        %v3685 = vld [vmem:[%s3333 + $0x8] sm:$0x1]
        %v3686 = vld [vmem:[%s3333 + $0xc] sm:$0xf]
        %v3687 = vld [vmem:[%s3333 + $0x10] sm:$0xf]
        %v3688 = vld [vmem:[%s3333 + $0x14] sm:$0x1]
        %v3689 = vld [vmem:[%s3333 + $0x18] sm:$0xf]
        %v3690 = vld [vmem:[%s3333 + $0x1c] sm:$0xf]
        %v3691 = vld [vmem:[%s3333 + $0x20] sm:$0x1]
        %v3692 = vld [vmem:[%s3333 + $0x24] sm:$0xf]
        %v3693 = vld [vmem:[%s3333 + $0x28] sm:$0xf]
        %v3694 = vld [vmem:[%s3333 + $0x2c] sm:$0x1]
        %v3695 = vld [vmem:[%s3333 + $0x30] sm:$0xf]
        %v3696 = vld [vmem:[%s3333 + $0x34] sm:$0xf]
        %v3697 = vld [vmem:[%s3333 + $0x38] sm:$0x1]
        %v3698 = vld [vmem:[%s3333 + $0x3c] sm:$0xf]
        %v3699 = vld [vmem:[%s3333 + $0x40] sm:$0xf]
        %v3700 = vld [vmem:[%s3333 + $0x44] sm:$0x1]
        %v3701 = vld [vmem:[%s3333 + $0x48] sm:$0xf]
        %v3702 = vld [vmem:[%s3333 + $0x4c] sm:$0xf]
        %v3703 = vld [vmem:[%s3333 + $0x50] sm:$0x1]
        %v3704 = vld [vmem:[%s3333 + $0x54] sm:$0xf]
        %v3705 = vld [vmem:[%s3333 + $0x58] sm:$0xf]
        %v3706 = vld [vmem:[%s3333 + $0x5c] sm:$0x1]
        %v3707 = vld [vmem:[%s3333 + $0x60] sm:$0xf]
        %v3708 = vld [vmem:[%s3333 + $0x64] sm:$0xf]
        %v3709 = vld [vmem:[%s3333 + $0x68] sm:$0x1]
        %v3710 = vld [vmem:[%s3333 + $0x6c] sm:$0xf]
        %v3711 = vld [vmem:[%s3333 + $0x70] sm:$0xf]
        %v3712 = vld [vmem:[%s3333 + $0x74] sm:$0x1]
        %v3713 = vld [vmem:[%s3333 + $0x78] sm:$0xf]
        %v3714 = vld [vmem:[%s3333 + $0x7c] sm:$0xf]
        %v3715 = vld [vmem:[%s3333 + $0x80] sm:$0x1]
        %v3716 = vld [vmem:[%s3333 + $0x84] sm:$0xf]
        %v3717 = vld [vmem:[%s3333 + $0x88] sm:$0xf]
        %v3718 = vld [vmem:[%s3333 + $0x8c] sm:$0x1]
        %v3719 = vld [vmem:[%s3333 + $0x90] sm:$0xf]
        %v3720 = vld [vmem:[%s3333 + $0x94] sm:$0xf]
        %v3721 = vld [vmem:[%s3333 + $0x98] sm:$0x1]
        %v3722 = vld [vmem:[%s3333 + $0x9c] sm:$0xf]
        %v3723 = vld [vmem:[%s3333 + $0xa0] sm:$0xf]
        %v3724 = vld [vmem:[%s3333 + $0xa4] sm:$0x1]
        %v3725 = vld [vmem:[%s3333 + $0xa8] sm:$0xf]
        %v3726 = vld [vmem:[%s3333 + $0xac] sm:$0xf]
        %v3727 = vld [vmem:[%s3333 + $0xb0] sm:$0x1]
        %v3728 = vld [vmem:[%s3333 + $0xb4] sm:$0xf]
        %v3729 = vld [vmem:[%s3333 + $0xb8] sm:$0xf]
        %v3730 = vld [vmem:[%s3333 + $0xbc] sm:$0x1]
        %v3732 = vshrl.u32 %v3683, 16
        %v3734 = vrot.slane %v3732, 4
        %v3735 = vshll.u32 %v3683, 16
        %v3737 = vrot.slane %v3735, 5
        %v3738 = vor.u32 %v3734, %v3737
        %v3739 = vrot.slane %v3738, 4
        %v3741 = vshll.u32 %v3684, 16
        %v3743 = vrot.slane %v3741, 5
        %v3744 = vsel %vm607, %v3739, %v3743
        %v3745 = vshrl.u32 %v3684, 16
        %v3747 = vrot.slane %v3745, 4
        %v3748 = vor.u32 %v3747, %v3743
        %v3749 = vrot.slane %v3748, 4
        %v3751 = vshll.u32 %v3685, 16
        %v3753 = vrot.slane %v3751, 5
        %v3754 = vsel %vm607, %v3749, %v3753
        %v3756 = vshrl.u32 %v3686, 16
        %v3758 = vrot.slane %v3756, 4
        %v3759 = vshll.u32 %v3686, 16
        %v3761 = vrot.slane %v3759, 5
        %v3762 = vor.u32 %v3758, %v3761
        %v3763 = vrot.slane %v3762, 4
        %v3765 = vshll.u32 %v3687, 16
        %v3767 = vrot.slane %v3765, 5
        %v3768 = vsel %vm607, %v3763, %v3767
        %v3769 = vshrl.u32 %v3687, 16
        %v3771 = vrot.slane %v3769, 4
        %v3772 = vor.u32 %v3771, %v3767
        %v3773 = vrot.slane %v3772, 4
        %v3775 = vshll.u32 %v3688, 16
        %v3777 = vrot.slane %v3775, 5
        %v3778 = vsel %vm607, %v3773, %v3777
        %v3780 = vshrl.u32 %v3689, 16
        %v3782 = vrot.slane %v3780, 4
        %v3783 = vshll.u32 %v3689, 16
        %v3785 = vrot.slane %v3783, 5
        %v3786 = vor.u32 %v3782, %v3785
        %v3787 = vrot.slane %v3786, 4
        %v3789 = vshll.u32 %v3690, 16
        %v3791 = vrot.slane %v3789, 5
        %v3792 = vsel %vm607, %v3787, %v3791
        %v3793 = vshrl.u32 %v3690, 16
        %v3795 = vrot.slane %v3793, 4
        %v3796 = vor.u32 %v3795, %v3791
        %v3797 = vrot.slane %v3796, 4
        %v3799 = vshll.u32 %v3691, 16
        %v3801 = vrot.slane %v3799, 5
        %v3802 = vsel %vm607, %v3797, %v3801
        %v3804 = vshrl.u32 %v3692, 16
        %v3806 = vrot.slane %v3804, 4
        %v3807 = vshll.u32 %v3692, 16
        %v3809 = vrot.slane %v3807, 5
        %v3810 = vor.u32 %v3806, %v3809
        %v3811 = vrot.slane %v3810, 4
        %v3813 = vshll.u32 %v3693, 16
        %v3815 = vrot.slane %v3813, 5
        %v3816 = vsel %vm607, %v3811, %v3815
        %v3817 = vshrl.u32 %v3693, 16
        %v3819 = vrot.slane %v3817, 4
        %v3820 = vor.u32 %v3819, %v3815
        %v3821 = vrot.slane %v3820, 4
        %v3823 = vshll.u32 %v3694, 16
        %v3825 = vrot.slane %v3823, 5
        %v3826 = vsel %vm607, %v3821, %v3825
        %v3828 = vshrl.u32 %v3695, 16
        %v3830 = vrot.slane %v3828, 4
        %v3831 = vshll.u32 %v3695, 16
        %v3833 = vrot.slane %v3831, 5
        %v3834 = vor.u32 %v3830, %v3833
        %v3835 = vrot.slane %v3834, 4
        %v3837 = vshll.u32 %v3696, 16
        %v3839 = vrot.slane %v3837, 5
        %v3840 = vsel %vm607, %v3835, %v3839
        %v3841 = vshrl.u32 %v3696, 16
        %v3843 = vrot.slane %v3841, 4
        %v3844 = vor.u32 %v3843, %v3839
        %v3845 = vrot.slane %v3844, 4
        %v3847 = vshll.u32 %v3697, 16
        %v3849 = vrot.slane %v3847, 5
        %v3850 = vsel %vm607, %v3845, %v3849
        %v3852 = vshrl.u32 %v3698, 16
        %v3854 = vrot.slane %v3852, 4
        %v3855 = vshll.u32 %v3698, 16
        %v3857 = vrot.slane %v3855, 5
        %v3858 = vor.u32 %v3854, %v3857
        %v3859 = vrot.slane %v3858, 4
        %v3861 = vshll.u32 %v3699, 16
        %v3863 = vrot.slane %v3861, 5
        %v3864 = vsel %vm607, %v3859, %v3863
        %v3865 = vshrl.u32 %v3699, 16
        %v3867 = vrot.slane %v3865, 4
        %v3868 = vor.u32 %v3867, %v3863
        %v3869 = vrot.slane %v3868, 4
        %v3871 = vshll.u32 %v3700, 16
        %v3873 = vrot.slane %v3871, 5
        %v3874 = vsel %vm607, %v3869, %v3873
        %v3876 = vshrl.u32 %v3701, 16
        %v3878 = vrot.slane %v3876, 4
        %v3879 = vshll.u32 %v3701, 16
        %v3881 = vrot.slane %v3879, 5
        %v3882 = vor.u32 %v3878, %v3881
        %v3883 = vrot.slane %v3882, 4
        %v3885 = vshll.u32 %v3702, 16
        %v3887 = vrot.slane %v3885, 5
        %v3888 = vsel %vm607, %v3883, %v3887
        %v3889 = vshrl.u32 %v3702, 16
        %v3891 = vrot.slane %v3889, 4
        %v3892 = vor.u32 %v3891, %v3887
        %v3893 = vrot.slane %v3892, 4
        %v3895 = vshll.u32 %v3703, 16
        %v3897 = vrot.slane %v3895, 5
        %v3898 = vsel %vm607, %v3893, %v3897
        %v3900 = vshrl.u32 %v3704, 16
        %v3902 = vrot.slane %v3900, 4
        %v3903 = vshll.u32 %v3704, 16
        %v3905 = vrot.slane %v3903, 5
        %v3906 = vor.u32 %v3902, %v3905
        %v3907 = vrot.slane %v3906, 4
        %v3909 = vshll.u32 %v3705, 16
        %v3911 = vrot.slane %v3909, 5
        %v3912 = vsel %vm607, %v3907, %v3911
        %v3913 = vshrl.u32 %v3705, 16
        %v3915 = vrot.slane %v3913, 4
        %v3916 = vor.u32 %v3915, %v3911
        %v3917 = vrot.slane %v3916, 4
        %v3919 = vshll.u32 %v3706, 16
        %v3921 = vrot.slane %v3919, 5
        %v3922 = vsel %vm607, %v3917, %v3921
        %v3924 = vshrl.u32 %v3707, 16
        %v3926 = vrot.slane %v3924, 4
        %v3927 = vshll.u32 %v3707, 16
        %v3929 = vrot.slane %v3927, 5
        %v3930 = vor.u32 %v3926, %v3929
        %v3931 = vrot.slane %v3930, 4
        %v3933 = vshll.u32 %v3708, 16
        %v3935 = vrot.slane %v3933, 5
        %v3936 = vsel %vm607, %v3931, %v3935
        %v3937 = vshrl.u32 %v3708, 16
        %v3939 = vrot.slane %v3937, 4
        %v3940 = vor.u32 %v3939, %v3935
        %v3941 = vrot.slane %v3940, 4
        %v3943 = vshll.u32 %v3709, 16
        %v3945 = vrot.slane %v3943, 5
        %v3946 = vsel %vm607, %v3941, %v3945
        %v3948 = vshrl.u32 %v3710, 16
        %v3950 = vrot.slane %v3948, 4
        %v3951 = vshll.u32 %v3710, 16
        %v3953 = vrot.slane %v3951, 5
        %v3954 = vor.u32 %v3950, %v3953
        %v3955 = vrot.slane %v3954, 4
        %v3957 = vshll.u32 %v3711, 16
        %v3959 = vrot.slane %v3957, 5
        %v3960 = vsel %vm607, %v3955, %v3959
        %v3961 = vshrl.u32 %v3711, 16
        %v3963 = vrot.slane %v3961, 4
        %v3964 = vor.u32 %v3963, %v3959
        %v3965 = vrot.slane %v3964, 4
        %v3967 = vshll.u32 %v3712, 16
        %v3969 = vrot.slane %v3967, 5
        %v3970 = vsel %vm607, %v3965, %v3969
        %v3972 = vshrl.u32 %v3713, 16
        %v3974 = vrot.slane %v3972, 4
        %v3975 = vshll.u32 %v3713, 16
        %v3977 = vrot.slane %v3975, 5
        %v3978 = vor.u32 %v3974, %v3977
        %v3979 = vrot.slane %v3978, 4
        %v3981 = vshll.u32 %v3714, 16
        %v3983 = vrot.slane %v3981, 5
        %v3984 = vsel %vm607, %v3979, %v3983
        %v3985 = vshrl.u32 %v3714, 16
        %v3987 = vrot.slane %v3985, 4
        %v3988 = vor.u32 %v3987, %v3983
        %v3989 = vrot.slane %v3988, 4
        %v3991 = vshll.u32 %v3715, 16
        %v3993 = vrot.slane %v3991, 5
        %v3994 = vsel %vm607, %v3989, %v3993
        %v3996 = vshrl.u32 %v3716, 16
        %v3998 = vrot.slane %v3996, 4
        %v3999 = vshll.u32 %v3716, 16
        %v4001 = vrot.slane %v3999, 5
        %v4002 = vor.u32 %v3998, %v4001
        %v4003 = vrot.slane %v4002, 4
        %v4005 = vshll.u32 %v3717, 16
        %v4007 = vrot.slane %v4005, 5
        %v4008 = vsel %vm607, %v4003, %v4007
        %v4009 = vshrl.u32 %v3717, 16
        %v4011 = vrot.slane %v4009, 4
        %v4012 = vor.u32 %v4011, %v4007
        %v4013 = vrot.slane %v4012, 4
        %v4015 = vshll.u32 %v3718, 16
        %v4017 = vrot.slane %v4015, 5
        %v4018 = vsel %vm607, %v4013, %v4017
        %v4020 = vshrl.u32 %v3719, 16
        %v4022 = vrot.slane %v4020, 4
        %v4023 = vshll.u32 %v3719, 16
        %v4025 = vrot.slane %v4023, 5
        %v4026 = vor.u32 %v4022, %v4025
        %v4027 = vrot.slane %v4026, 4
        %v4029 = vshll.u32 %v3720, 16
        %v4031 = vrot.slane %v4029, 5
        %v4032 = vsel %vm607, %v4027, %v4031
        %v4033 = vshrl.u32 %v3720, 16
        %v4035 = vrot.slane %v4033, 4
        %v4036 = vor.u32 %v4035, %v4031
        %v4037 = vrot.slane %v4036, 4
        %v4039 = vshll.u32 %v3721, 16
        %v4041 = vrot.slane %v4039, 5
        %v4042 = vsel %vm607, %v4037, %v4041
        %v4044 = vshrl.u32 %v3722, 16
        %v4046 = vrot.slane %v4044, 4
        %v4047 = vshll.u32 %v3722, 16
        %v4049 = vrot.slane %v4047, 5
        %v4050 = vor.u32 %v4046, %v4049
        %v4051 = vrot.slane %v4050, 4
        %v4053 = vshll.u32 %v3723, 16
        %v4055 = vrot.slane %v4053, 5
        %v4056 = vsel %vm607, %v4051, %v4055
        %v4057 = vshrl.u32 %v3723, 16
        %v4059 = vrot.slane %v4057, 4
        %v4060 = vor.u32 %v4059, %v4055
        %v4061 = vrot.slane %v4060, 4
        %v4063 = vshll.u32 %v3724, 16
        %v4065 = vrot.slane %v4063, 5
        %v4066 = vsel %vm607, %v4061, %v4065
        %v4068 = vshrl.u32 %v3725, 16
        %v4070 = vrot.slane %v4068, 4
        %v4071 = vshll.u32 %v3725, 16
        %v4073 = vrot.slane %v4071, 5
        %v4074 = vor.u32 %v4070, %v4073
        %v4075 = vrot.slane %v4074, 4
        %v4077 = vshll.u32 %v3726, 16
        %v4079 = vrot.slane %v4077, 5
        %v4080 = vsel %vm607, %v4075, %v4079
        %v4081 = vshrl.u32 %v3726, 16
        %v4083 = vrot.slane %v4081, 4
        %v4084 = vor.u32 %v4083, %v4079
        %v4085 = vrot.slane %v4084, 4
        %v4087 = vshll.u32 %v3727, 16
        %v4089 = vrot.slane %v4087, 5
        %v4090 = vsel %vm607, %v4085, %v4089
        %v4092 = vshrl.u32 %v3728, 16
        %v4094 = vrot.slane %v4092, 4
        %v4095 = vshll.u32 %v3728, 16
        %v4097 = vrot.slane %v4095, 5
        %v4098 = vor.u32 %v4094, %v4097
        %v4099 = vrot.slane %v4098, 4
        %v4101 = vshll.u32 %v3729, 16
        %v4103 = vrot.slane %v4101, 5
        %v4104 = vsel %vm607, %v4099, %v4103
        %v4105 = vshrl.u32 %v3729, 16
        %v4107 = vrot.slane %v4105, 4
        %v4108 = vor.u32 %v4107, %v4103
        %v4109 = vrot.slane %v4108, 4
        %v4111 = vshll.u32 %v3730, 16
        %v4113 = vrot.slane %v4111, 5
        %v4114 = vsel %vm607, %v4109, %v4113
        %v4115 = vld [vmem:[%s1 + $0x1c] sm:$0xf]
        %v4116 = vld [vmem:[%s163] sm:$0xff]
        %v4117 = vld [vmem:[%s163 + $0x8] sm:$0xff]
        %v4118 = vld [vmem:[%s163 + $0x10] sm:$0xff]
        %v4119 = vld [vmem:[%s163 + $0x18] sm:$0xff]
        %v4120 = vld [vmem:[%s163 + $0x20] sm:$0xff]
        %v4121 = vld [vmem:[%s163 + $0x28] sm:$0xff]
        %v4122 = vld [vmem:[%s163 + $0x30] sm:$0xff]
        %v4123 = vld [vmem:[%s163 + $0x38] sm:$0xff]
        %v4124 = vld [vmem:[%s163 + $0x40] sm:$0xff]
        %v4125 = vld [vmem:[%s163 + $0x48] sm:$0xff]
        %v4126 = vld [vmem:[%s163 + $0x50] sm:$0xff]
        %v4127 = vld [vmem:[%s163 + $0x58] sm:$0xff]
        %v4128 = vld [vmem:[%s163 + $0x60] sm:$0xff]
        %v4129 = vld [vmem:[%s163 + $0x68] sm:$0xff]
        %v4130 = vld [vmem:[%s163 + $0x70] sm:$0xff]
        %v4131 = vld [vmem:[%s163 + $0x78] sm:$0xff]
        %v4132 = vld [vmem:[%s163 + $0x80] sm:$0xff]
        %v4133 = vld [vmem:[%s163 + $0x88] sm:$0xff]
        %v4134 = vld [vmem:[%s163 + $0x90] sm:$0xff]
        %v4135 = vld [vmem:[%s163 + $0x98] sm:$0xff]
        %v4136 = vld [vmem:[%s163 + $0xa0] sm:$0xff]
        %v4137 = vld [vmem:[%s163 + $0xa8] sm:$0xff]
        %v4138 = vld [vmem:[%s163 + $0xb0] sm:$0xff]
        %v4139 = vld [vmem:[%s163 + $0xb8] sm:$0xff]
        %v4140 = vld [vmem:[%s163 + $0xc0] sm:$0xff]
        %v4141 = vld [vmem:[%s163 + $0xc8] sm:$0xff]
        %v4142 = vld [vmem:[%s163 + $0xd0] sm:$0xff]
        %v4143 = vld [vmem:[%s163 + $0xd8] sm:$0xff]
        %v4144 = vld [vmem:[%s163 + $0xe0] sm:$0xff]
        %v4145 = vld [vmem:[%s163 + $0xe8] sm:$0xff]
        %v4146 = vld [vmem:[%s163 + $0xf0] sm:$0xff]
        %v4147 = vld [vmem:[%s163 + $0xf8] sm:$0xff]
        %v4148 = vunpack.c.l.b16 %v3744
        %v4149 = vunpack.c.l.b16 %v3754
        %v4150 = vunpack.c.l.b16 %v3768
        %v4151 = vunpack.c.l.b16 %v3778
        %v4152 = vunpack.c.l.b16 %v3792
        %v4153 = vunpack.c.l.b16 %v3802
        %v4154 = vunpack.c.l.b16 %v3816
        %v4155 = vunpack.c.l.b16 %v3826
        %v4156 = vunpack.c.l.b16 %v3840
        %v4157 = vunpack.c.l.b16 %v3850
        %v4158 = vunpack.c.l.b16 %v3864
        %v4159 = vunpack.c.l.b16 %v3874
        %v4160 = vunpack.c.l.b16 %v3888
        %v4161 = vunpack.c.l.b16 %v3898
        %v4162 = vunpack.c.l.b16 %v3912
        %v4163 = vunpack.c.l.b16 %v3922
        %v4164 = vunpack.c.l.b16 %v3936
        %v4165 = vunpack.c.l.b16 %v3946
        %v4166 = vunpack.c.l.b16 %v3960
        %v4167 = vunpack.c.l.b16 %v3970
        %v4168 = vunpack.c.l.b16 %v3984
        %v4169 = vunpack.c.l.b16 %v3994
        %v4170 = vunpack.c.l.b16 %v4008
        %v4171 = vunpack.c.l.b16 %v4018
        %v4172 = vunpack.c.l.b16 %v4032
        %v4173 = vunpack.c.l.b16 %v4042
        %v4174 = vunpack.c.l.b16 %v4056
        %v4175 = vunpack.c.l.b16 %v4066
        %v4176 = vunpack.c.l.b16 %v4080
        %v4177 = vunpack.c.l.b16 %v4090
        %v4178 = vunpack.c.l.b16 %v4104
        %v4179 = vunpack.c.l.b16 %v4114
        %v4180 = vpack.c.b16 %v4149, %v4148
        %v4181 = vpack.c.b16 %v4151, %v4150
        %v4182 = vpack.c.b16 %v4153, %v4152
        %v4183 = vpack.c.b16 %v4155, %v4154
        %v4184 = vpack.c.b16 %v4157, %v4156
        %v4185 = vpack.c.b16 %v4159, %v4158
        %v4186 = vpack.c.b16 %v4161, %v4160
        %v4187 = vpack.c.b16 %v4163, %v4162
        %v4188 = vpack.c.b16 %v4165, %v4164
        %v4189 = vpack.c.b16 %v4167, %v4166
        %v4190 = vpack.c.b16 %v4169, %v4168
        %v4191 = vpack.c.b16 %v4171, %v4170
        %v4192 = vpack.c.b16 %v4173, %v4172
        %v4193 = vpack.c.b16 %v4175, %v4174
        %v4194 = vpack.c.b16 %v4177, %v4176
        %v4195 = vpack.c.b16 %v4179, %v4178
        %v4197 = vsel %vm351, %v4180, 0
        %v4200 = vsel %vm351, %v4181, 0
        %v4203 = vsel %vm351, %v4182, 0
        %v4206 = vsel %vm351, %v4183, 0
        %v4209 = vsel %vm351, %v4184, 0
        %v4212 = vsel %vm351, %v4185, 0
        %v4215 = vsel %vm351, %v4186, 0
        %v4218 = vsel %vm351, %v4187, 0
        %v4221 = vsel %vm351, %v4188, 0
        %v4224 = vsel %vm351, %v4189, 0
        %v4227 = vsel %vm351, %v4190, 0
        %v4230 = vsel %vm351, %v4191, 0
        %v4233 = vsel %vm351, %v4192, 0
        %v4236 = vsel %vm351, %v4193, 0
        %v4239 = vsel %vm351, %v4194, 0
        %v4242 = vsel %vm351, %v4195, 0
        %v4245 = vsel %vm400, %v4115, 0
        %4247 = vmatpush.bf16.msra.mxu0 0
        %4248 = vmatpush.bf16.msra.mxu0 0
        %4249 = vmatpush.bf16.msra.mxu0 0
        %4250 = vmatpush.bf16.msra.mxu0 0
        %4251 = vmatpush.bf16.msra.mxu0 0
        %4252 = vmatpush.bf16.msra.mxu0 0
        %4253 = vmatpush.bf16.msra.mxu0 0
        %4254 = vmatpush.bf16.msra.mxu0 %v4245
        %4255 = vmatmul.bf16.gmra.mxu0 %v4197
        %v4256 = vpop.f32.mrf.mxu0
        %v4257 = vadd.f32 0.0, %v4256
        %v4258 = vpop.f32.mrf.mxu0
        %v4259 = vadd.f32 0.0, %v4258
        %4260 = vmatmul.bf16.gmra.mxu0 %v4200
        %v4261 = vpop.f32.mrf.mxu0
        %v4262 = vadd.f32 0.0, %v4261
        %v4263 = vpop.f32.mrf.mxu0
        %v4264 = vadd.f32 0.0, %v4263
        %4265 = vmatmul.bf16.gmra.mxu0 %v4203
        %v4266 = vpop.f32.mrf.mxu0
        %v4267 = vadd.f32 0.0, %v4266
        %v4268 = vpop.f32.mrf.mxu0
        %v4269 = vadd.f32 0.0, %v4268
        %4270 = vmatmul.bf16.gmra.mxu0 %v4206
        %v4271 = vpop.f32.mrf.mxu0
        %v4272 = vadd.f32 0.0, %v4271
        %v4273 = vpop.f32.mrf.mxu0
        %v4274 = vadd.f32 0.0, %v4273
        %4275 = vmatmul.bf16.gmra.mxu0 %v4209
        %v4276 = vpop.f32.mrf.mxu0
        %v4277 = vadd.f32 0.0, %v4276
        %v4278 = vpop.f32.mrf.mxu0
        %v4279 = vadd.f32 0.0, %v4278
        %4280 = vmatmul.bf16.gmra.mxu0 %v4212
        %v4281 = vpop.f32.mrf.mxu0
        %v4282 = vadd.f32 0.0, %v4281
        %v4283 = vpop.f32.mrf.mxu0
        %v4284 = vadd.f32 0.0, %v4283
        %4285 = vmatmul.bf16.gmra.mxu0 %v4215
        %v4286 = vpop.f32.mrf.mxu0
        %v4287 = vadd.f32 0.0, %v4286
        %v4288 = vpop.f32.mrf.mxu0
        %v4289 = vadd.f32 0.0, %v4288
        %4290 = vmatmul.bf16.gmra.mxu0 %v4218
        %v4291 = vpop.f32.mrf.mxu0
        %v4292 = vadd.f32 0.0, %v4291
        %v4293 = vpop.f32.mrf.mxu0
        %v4294 = vadd.f32 0.0, %v4293
        %4295 = vmatmul.bf16.gmra.mxu0 %v4221
        %v4296 = vpop.f32.mrf.mxu0
        %v4297 = vadd.f32 0.0, %v4296
        %v4298 = vpop.f32.mrf.mxu0
        %v4299 = vadd.f32 0.0, %v4298
        %4300 = vmatmul.bf16.gmra.mxu0 %v4224
        %v4301 = vpop.f32.mrf.mxu0
        %v4302 = vadd.f32 0.0, %v4301
        %v4303 = vpop.f32.mrf.mxu0
        %v4304 = vadd.f32 0.0, %v4303
        %4305 = vmatmul.bf16.gmra.mxu0 %v4227
        %v4306 = vpop.f32.mrf.mxu0
        %v4307 = vadd.f32 0.0, %v4306
        %v4308 = vpop.f32.mrf.mxu0
        %v4309 = vadd.f32 0.0, %v4308
        %4310 = vmatmul.bf16.gmra.mxu0 %v4230
        %v4311 = vpop.f32.mrf.mxu0
        %v4312 = vadd.f32 0.0, %v4311
        %v4313 = vpop.f32.mrf.mxu0
        %v4314 = vadd.f32 0.0, %v4313
        %4315 = vmatmul.bf16.gmra.mxu0 %v4233
        %v4316 = vpop.f32.mrf.mxu0
        %v4317 = vadd.f32 0.0, %v4316
        %v4318 = vpop.f32.mrf.mxu0
        %v4319 = vadd.f32 0.0, %v4318
        %4320 = vmatmul.bf16.gmra.mxu0 %v4236
        %v4321 = vpop.f32.mrf.mxu0
        %v4322 = vadd.f32 0.0, %v4321
        %v4323 = vpop.f32.mrf.mxu0
        %v4324 = vadd.f32 0.0, %v4323
        %4325 = vmatmul.bf16.gmra.mxu0 %v4239
        %v4326 = vpop.f32.mrf.mxu0
        %v4327 = vadd.f32 0.0, %v4326
        %v4328 = vpop.f32.mrf.mxu0
        %v4329 = vadd.f32 0.0, %v4328
        %4330 = vmatmul.bf16.gmra.mxu0 %v4242
        %v4331 = vpop.f32.mrf.mxu0
        %v4332 = vadd.f32 0.0, %v4331
        %v4333 = vpop.f32.mrf.mxu0
        %v4334 = vadd.f32 0.0, %v4333
        %4335 = vdwg.mxu0
        %v4336 = vadd.f32 %v4116, %v4257
        %v4337 = vadd.f32 %v4117, %v4259
        %v4338 = vadd.f32 %v4118, %v4262
        %v4339 = vadd.f32 %v4119, %v4264
        %v4340 = vadd.f32 %v4120, %v4267
        %v4341 = vadd.f32 %v4121, %v4269
        %v4342 = vadd.f32 %v4122, %v4272
        %v4343 = vadd.f32 %v4123, %v4274
        %v4344 = vadd.f32 %v4124, %v4277
        %v4345 = vadd.f32 %v4125, %v4279
        %v4346 = vadd.f32 %v4126, %v4282
        %v4347 = vadd.f32 %v4127, %v4284
        %v4348 = vadd.f32 %v4128, %v4287
        %v4349 = vadd.f32 %v4129, %v4289
        %v4350 = vadd.f32 %v4130, %v4292
        %v4351 = vadd.f32 %v4131, %v4294
        %v4352 = vadd.f32 %v4132, %v4297
        %v4353 = vadd.f32 %v4133, %v4299
        %v4354 = vadd.f32 %v4134, %v4302
        %v4355 = vadd.f32 %v4135, %v4304
        %v4356 = vadd.f32 %v4136, %v4307
        %v4357 = vadd.f32 %v4137, %v4309
        %v4358 = vadd.f32 %v4138, %v4312
        %v4359 = vadd.f32 %v4139, %v4314
        %v4360 = vadd.f32 %v4140, %v4317
        %v4361 = vadd.f32 %v4141, %v4319
        %v4362 = vadd.f32 %v4142, %v4322
        %v4363 = vadd.f32 %v4143, %v4324
        %v4364 = vadd.f32 %v4144, %v4327
        %v4365 = vadd.f32 %v4145, %v4329
        %v4366 = vadd.f32 %v4146, %v4332
        %v4367 = vadd.f32 %v4147, %v4334
        %4368 = vst [vmem:[%s163] sm:$0xff] %v4336
        %4369 = vst [vmem:[%s163 + $0x8] sm:$0xff] %v4337
        %4370 = vst [vmem:[%s163 + $0x10] sm:$0xff] %v4338
        %4371 = vst [vmem:[%s163 + $0x18] sm:$0xff] %v4339
        %4372 = vst [vmem:[%s163 + $0x20] sm:$0xff] %v4340
        %4373 = vst [vmem:[%s163 + $0x28] sm:$0xff] %v4341
        %4374 = vst [vmem:[%s163 + $0x30] sm:$0xff] %v4342
        %4375 = vst [vmem:[%s163 + $0x38] sm:$0xff] %v4343
        %4376 = vst [vmem:[%s163 + $0x40] sm:$0xff] %v4344
        %4377 = vst [vmem:[%s163 + $0x48] sm:$0xff] %v4345
        %4378 = vst [vmem:[%s163 + $0x50] sm:$0xff] %v4346
        %4379 = vst [vmem:[%s163 + $0x58] sm:$0xff] %v4347
        %4380 = vst [vmem:[%s163 + $0x60] sm:$0xff] %v4348
        %4381 = vst [vmem:[%s163 + $0x68] sm:$0xff] %v4349
        %4382 = vst [vmem:[%s163 + $0x70] sm:$0xff] %v4350
        %4383 = vst [vmem:[%s163 + $0x78] sm:$0xff] %v4351
        %4384 = vst [vmem:[%s163 + $0x80] sm:$0xff] %v4352
        %4385 = vst [vmem:[%s163 + $0x88] sm:$0xff] %v4353
        %4386 = vst [vmem:[%s163 + $0x90] sm:$0xff] %v4354
        %4387 = vst [vmem:[%s163 + $0x98] sm:$0xff] %v4355
        %4388 = vst [vmem:[%s163 + $0xa0] sm:$0xff] %v4356
        %4389 = vst [vmem:[%s163 + $0xa8] sm:$0xff] %v4357
        %4390 = vst [vmem:[%s163 + $0xb0] sm:$0xff] %v4358
        %4391 = vst [vmem:[%s163 + $0xb8] sm:$0xff] %v4359
        %4392 = vst [vmem:[%s163 + $0xc0] sm:$0xff] %v4360
        %4393 = vst [vmem:[%s163 + $0xc8] sm:$0xff] %v4361
        %4394 = vst [vmem:[%s163 + $0xd0] sm:$0xff] %v4362
        %4395 = vst [vmem:[%s163 + $0xd8] sm:$0xff] %v4363
        %4396 = vst [vmem:[%s163 + $0xe0] sm:$0xff] %v4364
        %4397 = vst [vmem:[%s163 + $0xe8] sm:$0xff] %v4365
        %4398 = vst [vmem:[%s163 + $0xf0] sm:$0xff] %v4366
        %4399 = vst [vmem:[%s163 + $0xf8] sm:$0xff] %v4367
        %v4400 = vld [vmem:[%s3333] sm:$0xe]
        %v4401 = vld [vmem:[%s3333 + $0x4] sm:$0xf]
        %v4402 = vld [vmem:[%s3333 + $0x8] sm:$0x1]
        %v4403 = vld [vmem:[%s3333 + $0xc] sm:$0xe]
        %v4404 = vld [vmem:[%s3333 + $0x10] sm:$0xf]
        %v4405 = vld [vmem:[%s3333 + $0x14] sm:$0x1]
        %v4406 = vld [vmem:[%s3333 + $0x18] sm:$0xe]
        %v4407 = vld [vmem:[%s3333 + $0x1c] sm:$0xf]
        %v4408 = vld [vmem:[%s3333 + $0x20] sm:$0x1]
        %v4409 = vld [vmem:[%s3333 + $0x24] sm:$0xe]
        %v4410 = vld [vmem:[%s3333 + $0x28] sm:$0xf]
        %v4411 = vld [vmem:[%s3333 + $0x2c] sm:$0x1]
        %v4412 = vld [vmem:[%s3333 + $0x30] sm:$0xe]
        %v4413 = vld [vmem:[%s3333 + $0x34] sm:$0xf]
        %v4414 = vld [vmem:[%s3333 + $0x38] sm:$0x1]
        %v4415 = vld [vmem:[%s3333 + $0x3c] sm:$0xe]
        %v4416 = vld [vmem:[%s3333 + $0x40] sm:$0xf]
        %v4417 = vld [vmem:[%s3333 + $0x44] sm:$0x1]
        %v4418 = vld [vmem:[%s3333 + $0x48] sm:$0xe]
        %v4419 = vld [vmem:[%s3333 + $0x4c] sm:$0xf]
        %v4420 = vld [vmem:[%s3333 + $0x50] sm:$0x1]
        %v4421 = vld [vmem:[%s3333 + $0x54] sm:$0xe]
        %v4422 = vld [vmem:[%s3333 + $0x58] sm:$0xf]
        %v4423 = vld [vmem:[%s3333 + $0x5c] sm:$0x1]
        %v4424 = vld [vmem:[%s3333 + $0x60] sm:$0xe]
        %v4425 = vld [vmem:[%s3333 + $0x64] sm:$0xf]
        %v4426 = vld [vmem:[%s3333 + $0x68] sm:$0x1]
        %v4427 = vld [vmem:[%s3333 + $0x6c] sm:$0xe]
        %v4428 = vld [vmem:[%s3333 + $0x70] sm:$0xf]
        %v4429 = vld [vmem:[%s3333 + $0x74] sm:$0x1]
        %v4430 = vld [vmem:[%s3333 + $0x78] sm:$0xe]
        %v4431 = vld [vmem:[%s3333 + $0x7c] sm:$0xf]
        %v4432 = vld [vmem:[%s3333 + $0x80] sm:$0x1]
        %v4433 = vld [vmem:[%s3333 + $0x84] sm:$0xe]
        %v4434 = vld [vmem:[%s3333 + $0x88] sm:$0xf]
        %v4435 = vld [vmem:[%s3333 + $0x8c] sm:$0x1]
        %v4436 = vld [vmem:[%s3333 + $0x90] sm:$0xe]
        %v4437 = vld [vmem:[%s3333 + $0x94] sm:$0xf]
        %v4438 = vld [vmem:[%s3333 + $0x98] sm:$0x1]
        %v4439 = vld [vmem:[%s3333 + $0x9c] sm:$0xe]
        %v4440 = vld [vmem:[%s3333 + $0xa0] sm:$0xf]
        %v4441 = vld [vmem:[%s3333 + $0xa4] sm:$0x1]
        %v4442 = vld [vmem:[%s3333 + $0xa8] sm:$0xe]
        %v4443 = vld [vmem:[%s3333 + $0xac] sm:$0xf]
        %v4444 = vld [vmem:[%s3333 + $0xb0] sm:$0x1]
        %v4445 = vld [vmem:[%s3333 + $0xb4] sm:$0xe]
        %v4446 = vld [vmem:[%s3333 + $0xb8] sm:$0xf]
        %v4447 = vld [vmem:[%s3333 + $0xbc] sm:$0x1]
        %v4496 = vrot.slane %v4400, 5
        %v4497 = vrot.slane %v4496, 4
        %v4498 = vrot.slane %v4401, 5
        %v4499 = vsel %vm1375, %v4497, %v4498
        %v4500 = vrot.slane %v4498, 4
        %v4501 = vrot.slane %v4402, 5
        %v4502 = vsel %vm1375, %v4500, %v4501
        %v4503 = vrot.slane %v4403, 5
        %v4504 = vrot.slane %v4503, 4
        %v4505 = vrot.slane %v4404, 5
        %v4506 = vsel %vm1375, %v4504, %v4505
        %v4507 = vrot.slane %v4505, 4
        %v4508 = vrot.slane %v4405, 5
        %v4509 = vsel %vm1375, %v4507, %v4508
        %v4510 = vrot.slane %v4406, 5
        %v4511 = vrot.slane %v4510, 4
        %v4512 = vrot.slane %v4407, 5
        %v4513 = vsel %vm1375, %v4511, %v4512
        %v4514 = vrot.slane %v4512, 4
        %v4515 = vrot.slane %v4408, 5
        %v4516 = vsel %vm1375, %v4514, %v4515
        %v4517 = vrot.slane %v4409, 5
        %v4518 = vrot.slane %v4517, 4
        %v4519 = vrot.slane %v4410, 5
        %v4520 = vsel %vm1375, %v4518, %v4519
        %v4521 = vrot.slane %v4519, 4
        %v4522 = vrot.slane %v4411, 5
        %v4523 = vsel %vm1375, %v4521, %v4522
        %v4524 = vrot.slane %v4412, 5
        %v4525 = vrot.slane %v4524, 4
        %v4526 = vrot.slane %v4413, 5
        %v4527 = vsel %vm1375, %v4525, %v4526
        %v4528 = vrot.slane %v4526, 4
        %v4529 = vrot.slane %v4414, 5
        %v4530 = vsel %vm1375, %v4528, %v4529
        %v4531 = vrot.slane %v4415, 5
        %v4532 = vrot.slane %v4531, 4
        %v4533 = vrot.slane %v4416, 5
        %v4534 = vsel %vm1375, %v4532, %v4533
        %v4535 = vrot.slane %v4533, 4
        %v4536 = vrot.slane %v4417, 5
        %v4537 = vsel %vm1375, %v4535, %v4536
        %v4538 = vrot.slane %v4418, 5
        %v4539 = vrot.slane %v4538, 4
        %v4540 = vrot.slane %v4419, 5
        %v4541 = vsel %vm1375, %v4539, %v4540
        %v4542 = vrot.slane %v4540, 4
        %v4543 = vrot.slane %v4420, 5
        %v4544 = vsel %vm1375, %v4542, %v4543
        %v4545 = vrot.slane %v4421, 5
        %v4546 = vrot.slane %v4545, 4
        %v4547 = vrot.slane %v4422, 5
        %v4548 = vsel %vm1375, %v4546, %v4547
        %v4549 = vrot.slane %v4547, 4
        %v4550 = vrot.slane %v4423, 5
        %v4551 = vsel %vm1375, %v4549, %v4550
        %v4552 = vrot.slane %v4424, 5
        %v4553 = vrot.slane %v4552, 4
        %v4554 = vrot.slane %v4425, 5
        %v4555 = vsel %vm1375, %v4553, %v4554
        %v4556 = vrot.slane %v4554, 4
        %v4557 = vrot.slane %v4426, 5
        %v4558 = vsel %vm1375, %v4556, %v4557
        %v4559 = vrot.slane %v4427, 5
        %v4560 = vrot.slane %v4559, 4
        %v4561 = vrot.slane %v4428, 5
        %v4562 = vsel %vm1375, %v4560, %v4561
        %v4563 = vrot.slane %v4561, 4
        %v4564 = vrot.slane %v4429, 5
        %v4565 = vsel %vm1375, %v4563, %v4564
        %v4566 = vrot.slane %v4430, 5
        %v4567 = vrot.slane %v4566, 4
        %v4568 = vrot.slane %v4431, 5
        %v4569 = vsel %vm1375, %v4567, %v4568
        %v4570 = vrot.slane %v4568, 4
        %v4571 = vrot.slane %v4432, 5
        %v4572 = vsel %vm1375, %v4570, %v4571
        %v4573 = vrot.slane %v4433, 5
        %v4574 = vrot.slane %v4573, 4
        %v4575 = vrot.slane %v4434, 5
        %v4576 = vsel %vm1375, %v4574, %v4575
        %v4577 = vrot.slane %v4575, 4
        %v4578 = vrot.slane %v4435, 5
        %v4579 = vsel %vm1375, %v4577, %v4578
        %v4580 = vrot.slane %v4436, 5
        %v4581 = vrot.slane %v4580, 4
        %v4582 = vrot.slane %v4437, 5
        %v4583 = vsel %vm1375, %v4581, %v4582
        %v4584 = vrot.slane %v4582, 4
        %v4585 = vrot.slane %v4438, 5
        %v4586 = vsel %vm1375, %v4584, %v4585
        %v4587 = vrot.slane %v4439, 5
        %v4588 = vrot.slane %v4587, 4
        %v4589 = vrot.slane %v4440, 5
        %v4590 = vsel %vm1375, %v4588, %v4589
        %v4591 = vrot.slane %v4589, 4
        %v4592 = vrot.slane %v4441, 5
        %v4593 = vsel %vm1375, %v4591, %v4592
        %v4594 = vrot.slane %v4442, 5
        %v4595 = vrot.slane %v4594, 4
        %v4596 = vrot.slane %v4443, 5
        %v4597 = vsel %vm1375, %v4595, %v4596
        %v4598 = vrot.slane %v4596, 4
        %v4599 = vrot.slane %v4444, 5
        %v4600 = vsel %vm1375, %v4598, %v4599
        %v4601 = vrot.slane %v4445, 5
        %v4602 = vrot.slane %v4601, 4
        %v4603 = vrot.slane %v4446, 5
        %v4604 = vsel %vm1375, %v4602, %v4603
        %v4605 = vrot.slane %v4603, 4
        %v4606 = vrot.slane %v4447, 5
        %v4607 = vsel %vm1375, %v4605, %v4606
        %v4608 = vld [vmem:[%s1 + $0x20] sm:$0xf]
        %v4609 = vld [vmem:[%s163] sm:$0xff]
        %v4610 = vld [vmem:[%s163 + $0x8] sm:$0xff]
        %v4611 = vld [vmem:[%s163 + $0x10] sm:$0xff]
        %v4612 = vld [vmem:[%s163 + $0x18] sm:$0xff]
        %v4613 = vld [vmem:[%s163 + $0x20] sm:$0xff]
        %v4614 = vld [vmem:[%s163 + $0x28] sm:$0xff]
        %v4615 = vld [vmem:[%s163 + $0x30] sm:$0xff]
        %v4616 = vld [vmem:[%s163 + $0x38] sm:$0xff]
        %v4617 = vld [vmem:[%s163 + $0x40] sm:$0xff]
        %v4618 = vld [vmem:[%s163 + $0x48] sm:$0xff]
        %v4619 = vld [vmem:[%s163 + $0x50] sm:$0xff]
        %v4620 = vld [vmem:[%s163 + $0x58] sm:$0xff]
        %v4621 = vld [vmem:[%s163 + $0x60] sm:$0xff]
        %v4622 = vld [vmem:[%s163 + $0x68] sm:$0xff]
        %v4623 = vld [vmem:[%s163 + $0x70] sm:$0xff]
        %v4624 = vld [vmem:[%s163 + $0x78] sm:$0xff]
        %v4625 = vld [vmem:[%s163 + $0x80] sm:$0xff]
        %v4626 = vld [vmem:[%s163 + $0x88] sm:$0xff]
        %v4627 = vld [vmem:[%s163 + $0x90] sm:$0xff]
        %v4628 = vld [vmem:[%s163 + $0x98] sm:$0xff]
        %v4629 = vld [vmem:[%s163 + $0xa0] sm:$0xff]
        %v4630 = vld [vmem:[%s163 + $0xa8] sm:$0xff]
        %v4631 = vld [vmem:[%s163 + $0xb0] sm:$0xff]
        %v4632 = vld [vmem:[%s163 + $0xb8] sm:$0xff]
        %v4633 = vld [vmem:[%s163 + $0xc0] sm:$0xff]
        %v4634 = vld [vmem:[%s163 + $0xc8] sm:$0xff]
        %v4635 = vld [vmem:[%s163 + $0xd0] sm:$0xff]
        %v4636 = vld [vmem:[%s163 + $0xd8] sm:$0xff]
        %v4637 = vld [vmem:[%s163 + $0xe0] sm:$0xff]
        %v4638 = vld [vmem:[%s163 + $0xe8] sm:$0xff]
        %v4639 = vld [vmem:[%s163 + $0xf0] sm:$0xff]
        %v4640 = vld [vmem:[%s163 + $0xf8] sm:$0xff]
        %v4641 = vunpack.c.l.b16 %v4499
        %v4642 = vunpack.c.l.b16 %v4502
        %v4643 = vunpack.c.l.b16 %v4506
        %v4644 = vunpack.c.l.b16 %v4509
        %v4645 = vunpack.c.l.b16 %v4513
        %v4646 = vunpack.c.l.b16 %v4516
        %v4647 = vunpack.c.l.b16 %v4520
        %v4648 = vunpack.c.l.b16 %v4523
        %v4649 = vunpack.c.l.b16 %v4527
        %v4650 = vunpack.c.l.b16 %v4530
        %v4651 = vunpack.c.l.b16 %v4534
        %v4652 = vunpack.c.l.b16 %v4537
        %v4653 = vunpack.c.l.b16 %v4541
        %v4654 = vunpack.c.l.b16 %v4544
        %v4655 = vunpack.c.l.b16 %v4548
        %v4656 = vunpack.c.l.b16 %v4551
        %v4657 = vunpack.c.l.b16 %v4555
        %v4658 = vunpack.c.l.b16 %v4558
        %v4659 = vunpack.c.l.b16 %v4562
        %v4660 = vunpack.c.l.b16 %v4565
        %v4661 = vunpack.c.l.b16 %v4569
        %v4662 = vunpack.c.l.b16 %v4572
        %v4663 = vunpack.c.l.b16 %v4576
        %v4664 = vunpack.c.l.b16 %v4579
        %v4665 = vunpack.c.l.b16 %v4583
        %v4666 = vunpack.c.l.b16 %v4586
        %v4667 = vunpack.c.l.b16 %v4590
        %v4668 = vunpack.c.l.b16 %v4593
        %v4669 = vunpack.c.l.b16 %v4597
        %v4670 = vunpack.c.l.b16 %v4600
        %v4671 = vunpack.c.l.b16 %v4604
        %v4672 = vunpack.c.l.b16 %v4607
        %v4673 = vpack.c.b16 %v4642, %v4641
        %v4674 = vpack.c.b16 %v4644, %v4643
        %v4675 = vpack.c.b16 %v4646, %v4645
        %v4676 = vpack.c.b16 %v4648, %v4647
        %v4677 = vpack.c.b16 %v4650, %v4649
        %v4678 = vpack.c.b16 %v4652, %v4651
        %v4679 = vpack.c.b16 %v4654, %v4653
        %v4680 = vpack.c.b16 %v4656, %v4655
        %v4681 = vpack.c.b16 %v4658, %v4657
        %v4682 = vpack.c.b16 %v4660, %v4659
        %v4683 = vpack.c.b16 %v4662, %v4661
        %v4684 = vpack.c.b16 %v4664, %v4663
        %v4685 = vpack.c.b16 %v4666, %v4665
        %v4686 = vpack.c.b16 %v4668, %v4667
        %v4687 = vpack.c.b16 %v4670, %v4669
        %v4688 = vpack.c.b16 %v4672, %v4671
        %v4690 = vsel %vm351, %v4673, 0
        %v4693 = vsel %vm351, %v4674, 0
        %v4696 = vsel %vm351, %v4675, 0
        %v4699 = vsel %vm351, %v4676, 0
        %v4702 = vsel %vm351, %v4677, 0
        %v4705 = vsel %vm351, %v4678, 0
        %v4708 = vsel %vm351, %v4679, 0
        %v4711 = vsel %vm351, %v4680, 0
        %v4714 = vsel %vm351, %v4681, 0
        %v4717 = vsel %vm351, %v4682, 0
        %v4720 = vsel %vm351, %v4683, 0
        %v4723 = vsel %vm351, %v4684, 0
        %v4726 = vsel %vm351, %v4685, 0
        %v4729 = vsel %vm351, %v4686, 0
        %v4732 = vsel %vm351, %v4687, 0
        %v4735 = vsel %vm351, %v4688, 0
        %v4738 = vsel %vm400, %v4608, 0
        %4740 = vmatpush.bf16.msra.mxu0 0
        %4741 = vmatpush.bf16.msra.mxu0 0
        %4742 = vmatpush.bf16.msra.mxu0 0
        %4743 = vmatpush.bf16.msra.mxu0 0
        %4744 = vmatpush.bf16.msra.mxu0 0
        %4745 = vmatpush.bf16.msra.mxu0 0
        %4746 = vmatpush.bf16.msra.mxu0 0
        %4747 = vmatpush.bf16.msra.mxu0 %v4738
        %4748 = vmatmul.bf16.gmra.mxu0 %v4690
        %v4749 = vpop.f32.mrf.mxu0
        %v4750 = vadd.f32 0.0, %v4749
        %v4751 = vpop.f32.mrf.mxu0
        %v4752 = vadd.f32 0.0, %v4751
        %4753 = vmatmul.bf16.gmra.mxu0 %v4693
        %v4754 = vpop.f32.mrf.mxu0
        %v4755 = vadd.f32 0.0, %v4754
        %v4756 = vpop.f32.mrf.mxu0
        %v4757 = vadd.f32 0.0, %v4756
        %4758 = vmatmul.bf16.gmra.mxu0 %v4696
        %v4759 = vpop.f32.mrf.mxu0
        %v4760 = vadd.f32 0.0, %v4759
        %v4761 = vpop.f32.mrf.mxu0
        %v4762 = vadd.f32 0.0, %v4761
        %4763 = vmatmul.bf16.gmra.mxu0 %v4699
        %v4764 = vpop.f32.mrf.mxu0
        %v4765 = vadd.f32 0.0, %v4764
        %v4766 = vpop.f32.mrf.mxu0
        %v4767 = vadd.f32 0.0, %v4766
        %4768 = vmatmul.bf16.gmra.mxu0 %v4702
        %v4769 = vpop.f32.mrf.mxu0
        %v4770 = vadd.f32 0.0, %v4769
        %v4771 = vpop.f32.mrf.mxu0
        %v4772 = vadd.f32 0.0, %v4771
        %4773 = vmatmul.bf16.gmra.mxu0 %v4705
        %v4774 = vpop.f32.mrf.mxu0
        %v4775 = vadd.f32 0.0, %v4774
        %v4776 = vpop.f32.mrf.mxu0
        %v4777 = vadd.f32 0.0, %v4776
        %4778 = vmatmul.bf16.gmra.mxu0 %v4708
        %v4779 = vpop.f32.mrf.mxu0
        %v4780 = vadd.f32 0.0, %v4779
        %v4781 = vpop.f32.mrf.mxu0
        %v4782 = vadd.f32 0.0, %v4781
        %4783 = vmatmul.bf16.gmra.mxu0 %v4711
        %v4784 = vpop.f32.mrf.mxu0
        %v4785 = vadd.f32 0.0, %v4784
        %v4786 = vpop.f32.mrf.mxu0
        %v4787 = vadd.f32 0.0, %v4786
        %4788 = vmatmul.bf16.gmra.mxu0 %v4714
        %v4789 = vpop.f32.mrf.mxu0
        %v4790 = vadd.f32 0.0, %v4789
        %v4791 = vpop.f32.mrf.mxu0
        %v4792 = vadd.f32 0.0, %v4791
        %4793 = vmatmul.bf16.gmra.mxu0 %v4717
        %v4794 = vpop.f32.mrf.mxu0
        %v4795 = vadd.f32 0.0, %v4794
        %v4796 = vpop.f32.mrf.mxu0
        %v4797 = vadd.f32 0.0, %v4796
        %4798 = vmatmul.bf16.gmra.mxu0 %v4720
        %v4799 = vpop.f32.mrf.mxu0
        %v4800 = vadd.f32 0.0, %v4799
        %v4801 = vpop.f32.mrf.mxu0
        %v4802 = vadd.f32 0.0, %v4801
        %4803 = vmatmul.bf16.gmra.mxu0 %v4723
        %v4804 = vpop.f32.mrf.mxu0
        %v4805 = vadd.f32 0.0, %v4804
        %v4806 = vpop.f32.mrf.mxu0
        %v4807 = vadd.f32 0.0, %v4806
        %4808 = vmatmul.bf16.gmra.mxu0 %v4726
        %v4809 = vpop.f32.mrf.mxu0
        %v4810 = vadd.f32 0.0, %v4809
        %v4811 = vpop.f32.mrf.mxu0
        %v4812 = vadd.f32 0.0, %v4811
        %4813 = vmatmul.bf16.gmra.mxu0 %v4729
        %v4814 = vpop.f32.mrf.mxu0
        %v4815 = vadd.f32 0.0, %v4814
        %v4816 = vpop.f32.mrf.mxu0
        %v4817 = vadd.f32 0.0, %v4816
        %4818 = vmatmul.bf16.gmra.mxu0 %v4732
        %v4819 = vpop.f32.mrf.mxu0
        %v4820 = vadd.f32 0.0, %v4819
        %v4821 = vpop.f32.mrf.mxu0
        %v4822 = vadd.f32 0.0, %v4821
        %4823 = vmatmul.bf16.gmra.mxu0 %v4735
        %v4824 = vpop.f32.mrf.mxu0
        %v4825 = vadd.f32 0.0, %v4824
        %v4826 = vpop.f32.mrf.mxu0
        %v4827 = vadd.f32 0.0, %v4826
        %4828 = vdwg.mxu0
        %v4829 = vadd.f32 %v4609, %v4750
        %v4830 = vadd.f32 %v4610, %v4752
        %v4831 = vadd.f32 %v4611, %v4755
        %v4832 = vadd.f32 %v4612, %v4757
        %v4833 = vadd.f32 %v4613, %v4760
        %v4834 = vadd.f32 %v4614, %v4762
        %v4835 = vadd.f32 %v4615, %v4765
        %v4836 = vadd.f32 %v4616, %v4767
        %v4837 = vadd.f32 %v4617, %v4770
        %v4838 = vadd.f32 %v4618, %v4772
        %v4839 = vadd.f32 %v4619, %v4775
        %v4840 = vadd.f32 %v4620, %v4777
        %v4841 = vadd.f32 %v4621, %v4780
        %v4842 = vadd.f32 %v4622, %v4782
        %v4843 = vadd.f32 %v4623, %v4785
        %v4844 = vadd.f32 %v4624, %v4787
        %v4845 = vadd.f32 %v4625, %v4790
        %v4846 = vadd.f32 %v4626, %v4792
        %v4847 = vadd.f32 %v4627, %v4795
        %v4848 = vadd.f32 %v4628, %v4797
        %v4849 = vadd.f32 %v4629, %v4800
        %v4850 = vadd.f32 %v4630, %v4802
        %v4851 = vadd.f32 %v4631, %v4805
        %v4852 = vadd.f32 %v4632, %v4807
        %v4853 = vadd.f32 %v4633, %v4810
        %v4854 = vadd.f32 %v4634, %v4812
        %v4855 = vadd.f32 %v4635, %v4815
        %v4856 = vadd.f32 %v4636, %v4817
        %v4857 = vadd.f32 %v4637, %v4820
        %v4858 = vadd.f32 %v4638, %v4822
        %v4859 = vadd.f32 %v4639, %v4825
        %v4860 = vadd.f32 %v4640, %v4827
        %4861 = vst [vmem:[%s163] sm:$0xff] %v4829
        %4862 = vst [vmem:[%s163 + $0x8] sm:$0xff] %v4830
        %4863 = vst [vmem:[%s163 + $0x10] sm:$0xff] %v4831
        %4864 = vst [vmem:[%s163 + $0x18] sm:$0xff] %v4832
        %4865 = vst [vmem:[%s163 + $0x20] sm:$0xff] %v4833
        %4866 = vst [vmem:[%s163 + $0x28] sm:$0xff] %v4834
        %4867 = vst [vmem:[%s163 + $0x30] sm:$0xff] %v4835
        %4868 = vst [vmem:[%s163 + $0x38] sm:$0xff] %v4836
        %4869 = vst [vmem:[%s163 + $0x40] sm:$0xff] %v4837
        %4870 = vst [vmem:[%s163 + $0x48] sm:$0xff] %v4838
        %4871 = vst [vmem:[%s163 + $0x50] sm:$0xff] %v4839
        %4872 = vst [vmem:[%s163 + $0x58] sm:$0xff] %v4840
        %4873 = vst [vmem:[%s163 + $0x60] sm:$0xff] %v4841
        %4874 = vst [vmem:[%s163 + $0x68] sm:$0xff] %v4842
        %4875 = vst [vmem:[%s163 + $0x70] sm:$0xff] %v4843
        %4876 = vst [vmem:[%s163 + $0x78] sm:$0xff] %v4844
        %4877 = vst [vmem:[%s163 + $0x80] sm:$0xff] %v4845
        %4878 = vst [vmem:[%s163 + $0x88] sm:$0xff] %v4846
        %4879 = vst [vmem:[%s163 + $0x90] sm:$0xff] %v4847
        %4880 = vst [vmem:[%s163 + $0x98] sm:$0xff] %v4848
        %4881 = vst [vmem:[%s163 + $0xa0] sm:$0xff] %v4849
        %4882 = vst [vmem:[%s163 + $0xa8] sm:$0xff] %v4850
        %4883 = vst [vmem:[%s163 + $0xb0] sm:$0xff] %v4851
        %4884 = vst [vmem:[%s163 + $0xb8] sm:$0xff] %v4852
        %4885 = vst [vmem:[%s163 + $0xc0] sm:$0xff] %v4853
        %4886 = vst [vmem:[%s163 + $0xc8] sm:$0xff] %v4854
        %4887 = vst [vmem:[%s163 + $0xd0] sm:$0xff] %v4855
        %4888 = vst [vmem:[%s163 + $0xd8] sm:$0xff] %v4856
        %4889 = vst [vmem:[%s163 + $0xe0] sm:$0xff] %v4857
        %4890 = vst [vmem:[%s163 + $0xe8] sm:$0xff] %v4858
        %4891 = vst [vmem:[%s163 + $0xf0] sm:$0xff] %v4859
        %4892 = vst [vmem:[%s163 + $0xf8] sm:$0xff] %v4860
        %s4893 = sand.u32 %s93, 1
        %s4894 = scalar_lea.sflag [#allocation3], %s4893
        %s4895 = sand.u32 %s93, 1
        %s4896 = smul.addr %s4895, 256
        %s4897 = scalar_lea.vmem [#allocation2], %s4896
        // Predicated region
        $region33: #{tpu_custom_call.1} parent=31 // pred_check
          %p4898 = pneg %p103
        $region34: #{tpu_custom_call.1} parent=31 // pred_check_branch
          %4900 = sbr.rel (%p4898) target = $region36
        $region35: #{tpu_custom_call.1} parent=31 // pred_region
          %4902 = vsyncadd %s4894, 0
          %s4903 = smul.addr %s17, 32
          %s4904 = smul.addr %s4903, 8
          %s4905 = scalar_lea.hbm %s3, %s4904
          %s4906 = sshll.u32 %s4897, 4
          %s4907 = int_to_ptr.vmem [resolvable:$true] %s4906
          %s4908 = sshll.u32 %s4905, 4
          %s4909 = int_to_ptr.hbm [resolvable:$true] %s4908
          %4914 = dma.vmem_to_hbm [thread:$0]  %s4907, 4096, %s4909, %s4894, 128, 128, 8
        $region36: #{tpu_custom_call.1} parent=31 // pred_fallthru
          _
      $region32: #{tpu_custom_call.1} parent=5 // pred_fallthru
        _
      %p4915 = scmp.le.s32.totalorder 2, %s12
      // Predicated region
      $region37: #{tpu_custom_call.1} parent=5 // pred_check
        %p4916 = pneg %p4915
      $region38: #{tpu_custom_call.1} parent=5 // pred_check_branch
        %4918 = sbr.rel (%p4916) target = $region40
      $region39: #{tpu_custom_call.1} parent=5 // pred_region
        %s4919 = ssub.s32 %s12, 2
        // Predicated region
        $region41: #{tpu_custom_call.1} parent=39 // pred_check
          %p4920 = pneg %p109
        $region42: #{tpu_custom_call.1} parent=39 // pred_check_branch
          %4922 = sbr.rel (%p4920) target = $region44
        $region43: #{tpu_custom_call.1} parent=39 // pred_region
          %s4923 = sand.u32 %s94, 1
          %s4924 = scalar_lea.sflag [#allocation3], %s4923
          %s4925 = sand.u32 %s94, 1
          %s4926 = smul.addr %s4925, 256
          %s4927 = scalar_lea.vmem [#allocation2], %s4926
          %4929 = dma.done %s4924, 4096
        $region44: #{tpu_custom_call.1} parent=39 // pred_fallthru
          _
      $region40: #{tpu_custom_call.1} parent=5 // pred_fallthru
        _
    $region6: #{tpu_custom_call.1} parent=1 // loop_footer
      %s16 = sadd.s32 1, %s12
    $region7: #{tpu_custom_call.1} parent=1 // loop_footer_branch
      %11 = sbr.rel target = $region3
    $region8: #{tpu_custom_call.1} parent=1 // loop_exit
      _
    %4930 = vsyncpa [#allocation3], 1
    %s4931 = scalar_lea.sflag [#allocation3], 1
    %4932 = vsyncpa %s4931, 1

</llo_original>
